<compile_context>
chip_gen: v7x
topology: tpu7x:2x2x1
jax: 0.10.0
libtpu: 0.0.40
codegen_flags: <defaults>
</compile_context>

<pallas_src>
import functools

import jax
import jax.numpy as jnp
import numpy as np
from jax.experimental import pallas as pl
from jax.experimental.pallas import tpu as pltpu


def _temporal_block_kernel(T, B, H,
                           x_ref,
                           w1i_ref, wcomb_ref, b1_ref, b2_ref,
                           wl_ref, bl_ref,
                           out_ref):
    H3 = 3 * H
    H4 = 4 * H

    def apply_gates(gates, c):
        # Gate layout (i, f, o, g): one sigmoid over the first 3H columns,
        # one tanh over the last H columns.
        s = jax.nn.sigmoid(gates[:, :H3])
        g = jnp.tanh(gates[:, H3:])
        i_g = s[:, 0 * H:1 * H]
        f_g = s[:, 1 * H:2 * H]
        o_g = s[:, 2 * H:3 * H]
        c_new = f_g * c + i_g * g
        h_new = o_g * jnp.tanh(c_new)
        return h_new, c_new

    # Prologue: non-recurrent layer-1 input projection for all time steps at
    # once -> one (T*B, H) @ (H, 4H) matmul instead of T tiny ones.
    x_all = x_ref[...].reshape(T * B, H)                         # (T*B, H)
    xg_all = (jnp.dot(x_all, w1i_ref[...],
                      preferred_element_type=jnp.float32)
              + b1_ref[...])                                     # (T*B, 4H)

    wcomb = wcomb_ref[...]                                       # (2H, 8H)
    b2 = b2_ref[...]                                             # (1, 4H)

    zero = jnp.zeros((B, H), jnp.float32)
    h2, c1, c2 = zero, zero, zero
    r1 = None  # h1_{t-1} @ W1_hh, produced by the previous step's fused matmul

    # T is tiny and static: fully unroll so the scheduler can overlap layer-2
    # gate math of step t with layer-1 gate math of step t+1.
    for t in range(T):
        # LSTM layer 1: recurrent term comes from the previous fused matmul.
        xg_t = xg_all[t * B:(t + 1) * B, :]
        g1 = xg_t if r1 is None else xg_t + r1
        h1, c1 = apply_gates(g1, c1)

        # Single fused MXU call per step:
        #   cols [0, 4H)  -> layer-2 gates  ([h1_t, h2_{t-1}] @ [W2_ih ; W2_hh])
        #   cols [4H, 8H) -> h1_t @ W1_hh   (layer-1 recurrent term, step t+1)
        comb = jnp.dot(jnp.concatenate([h1, h2], axis=-1), wcomb,
                       preferred_element_type=jnp.float32)       # (B, 8H)
        g2 = comb[:, :H4] + b2
        r1 = comb[:, H4:]
        h2, c2 = apply_gates(g2, c2)

    # Last-step Linear + ReLU.
    y = (jnp.dot(h2, wl_ref[...], preferred_element_type=jnp.float32)
         + bl_ref[...])
    out_ref[...] = jnp.maximum(y, 0.0).astype(out_ref.dtype)


def prepare_kernel_params(params, H):
    """PyTorch-layout params -> kernel layout.

    Input params (already pre-transposed to (in, 4H)/(in, H), torch LSTM gate
    order i, f, g, o; biases are b_ih + b_hh):
      w1i (H,4H), w1h (H,4H), b1 (1,4H),
      w2i (H,4H), w2h (H,4H), b2 (1,4H),
      wl  (H,H),  bl (1,H)
    Output: gate columns permuted to (i, f, o, g); per-step weights packed
    into a single (2H, 8H) matrix Wcomb:
      rows [0,H)  = [ W2_ih | W1_hh ]
      rows [H,2H) = [ W2_hh |   0   ]
    so [h1_t, h2_{t-1}] @ Wcomb yields layer-2 gates in cols [0,4H) and the
    next step's layer-1 recurrent term in cols [4H,8H).
    """
    (w1i, w1h, b1, w2i, w2h, b2, wl, bl) = params
    perm = jnp.concatenate([jnp.arange(0, 2 * H),
                            jnp.arange(3 * H, 4 * H),
                            jnp.arange(2 * H, 3 * H)])
    reord = lambda a: a[..., perm]
    w1i_r, w1h_r, b1_r = reord(w1i), reord(w1h), reord(b1)
    w2i_r, w2h_r, b2_r = reord(w2i), reord(w2h), reord(b2)
    top = jnp.concatenate([w2i_r, w1h_r], axis=1)                        # (H, 8H)
    bot = jnp.concatenate([w2h_r, jnp.zeros((H, 4 * H), w2h_r.dtype)],
                          axis=1)                                        # (H, 8H)
    wcomb = jnp.concatenate([top, bot], axis=0)                          # (2H, 8H)
    return (w1i_r, wcomb, b1_r, b2_r, wl, bl)


def temporal_block_pallas(x_tbh, kernel_params):
    """x_tbh: (T, B, H) float32; kernel_params from prepare_kernel_params.
    Returns (B, H) float32."""
    T, B, H = x_tbh.shape
    kernel = functools.partial(_temporal_block_kernel, T, B, H)
    vmem = lambda: pl.BlockSpec(memory_space=pltpu.MemorySpace.VMEM)
    return pl.pallas_call(
        kernel,
        out_shape=jax.ShapeDtypeStruct((B, H), jnp.float32),
        in_specs=[vmem() for _ in range(1 + len(kernel_params))],
        out_specs=vmem(),
    )(x_tbh, *kernel_params)


# ----------------------- pure-JAX reference --------------------------------
def _lstm_ref(xs, wi, wh, b):
    B, H = xs.shape[1], wh.shape[0]

    def step(carry, x_t):
        h, c = carry
        gates = x_t @ wi + h @ wh + b
        i_g, f_g, g_g, o_g = jnp.split(gates, 4, axis=-1)
        i_g = jax.nn.sigmoid(i_g)
        f_g = jax.nn.sigmoid(f_g)
        g_g = jnp.tanh(g_g)
        o_g = jax.nn.sigmoid(o_g)
        c = f_g * c + i_g * g_g
        h = o_g * jnp.tanh(c)
        return (h, c), h

    init = (jnp.zeros((B, H), jnp.float32), jnp.zeros((B, H), jnp.float32))
    _, hs = jax.lax.scan(step, init, xs)
    return hs


def temporal_block_ref(x_btnf, params):
    (w1i, w1h, b1, w2i, w2h, b2, wl, bl) = params
    batch, time, node, feature = x_btnf.shape
    out = x_btnf.reshape(batch, time, node * feature)
    out = jnp.transpose(out, (1, 0, 2))                 # (T, B, H)
    out = _lstm_ref(out, w1i, w1h, b1[0])
    out = _lstm_ref(out, w2i, w2h, b2[0])
    out = out[-1]
    out = jax.nn.relu(out @ wl + bl[0])
    return out


# ----------------------------- main -----------------------------------------
if __name__ == "__main__":
    # Shapes consistent with the module: n (nodes) = 8, feature_dim = 16
    # => hidden H = n * feature_dim = 128; batch = 8, time = 6.
    batch, time, node, feature = 8, 6, 8, 16
    H = node * feature

    key = jax.random.PRNGKey(0)
    keys = jax.random.split(key, 12)
    bound = 1.0 / np.sqrt(H)
    u = lambda k, shape: jax.random.uniform(k, shape, jnp.float32, -bound, bound)

    # PyTorch LSTM weights are (4H, in)/(4H, H); pre-transposed to (in, 4H),
    # gate order i, f, g, o (torch layout). Biases are b_ih + b_hh.
    w1i = u(keys[0], (H, 4 * H))
    w1h = u(keys[1], (H, 4 * H))
    b1 = (u(keys[2], (4 * H,)) + u(keys[3], (4 * H,))).reshape(1, 4 * H)
    w2i = u(keys[4], (H, 4 * H))
    w2h = u(keys[5], (H, 4 * H))
    b2 = (u(keys[6], (4 * H,)) + u(keys[7], (4 * H,))).reshape(1, 4 * H)
    # Linear: (out, in) in torch -> transposed to (in, out).
    wl = u(keys[8], (H, H))
    bl = u(keys[9], (H,)).reshape(1, H)
    params = (w1i, w1h, b1, w2i, w2h, b2, wl, bl)

    x = jax.random.normal(keys[10], (batch, time, node, feature), jnp.float32)

    # Glue (reshape / permute / weight re-layout) in plain JAX; the hot path
    # (two stacked LSTMs + Linear + ReLU) runs as one Pallas invocation.
    x_tbh = jnp.transpose(x.reshape(batch, time, H), (1, 0, 2))
    kparams = prepare_kernel_params(params, H)

    out = temporal_block_pallas(x_tbh, kparams)
    out = jax.block_until_ready(out)

    ref = jax.block_until_ready(temporal_block_ref(x, params))
    np.testing.assert_allclose(np.asarray(out), np.asarray(ref),
                               rtol=1e-4, atol=1e-4)

    print("KERNEL_OK")
</pallas_src>

<mosaic_0001>
module attributes {stable_mosaic.version = 11 : i64} {
  func.func @_temporal_block_kernel(%arg0: memref<6x8x128xf32, #tpu.memory_space<vmem>>, %arg1: memref<128x512xf32, #tpu.memory_space<vmem>>, %arg2: memref<256x1024xf32, #tpu.memory_space<vmem>>, %arg3: memref<1x512xf32, #tpu.memory_space<vmem>>, %arg4: memref<1x512xf32, #tpu.memory_space<vmem>>, %arg5: memref<128x128xf32, #tpu.memory_space<vmem>>, %arg6: memref<1x128xf32, #tpu.memory_space<vmem>>, %arg7: memref<8x128xf32, #tpu.memory_space<vmem>>) attributes {dimension_semantics = [], scalar_prefetch = 0 : i64, scratch_operands = 0 : i64, tpu.core_type = #tpu.core_type<tc>} {
    %c0 = arith.constant 0 : index
    %c0_0 = arith.constant 0 : index
    %c0_1 = arith.constant 0 : index
    %0 = vector.load %arg0[%c0, %c0_0, %c0_1] : memref<6x8x128xf32, #tpu.memory_space<vmem>>, vector<6x8x128xf32>
    %1 = vector.shape_cast %0 : vector<6x8x128xf32> to vector<48x128xf32>
    %c0_2 = arith.constant 0 : index
    %c0_3 = arith.constant 0 : index
    %2 = vector.load %arg1[%c0_2, %c0_3] : memref<128x512xf32, #tpu.memory_space<vmem>>, vector<128x512xf32>
    %cst = arith.constant dense<0.000000e+00> : vector<48x512xf32>
    %3 = tpu.matmul %1, %2, %cst {dimension_numbers = #tpu.dot_dimension_numbers<[1], [0], [0], [1], [0, 0, 1, 1], [], []>} : vector<48x128xf32>, vector<128x512xf32>, vector<48x512xf32> -> vector<48x512xf32>
    %c0_4 = arith.constant 0 : index
    %c0_5 = arith.constant 0 : index
    %4 = vector.load %arg3[%c0_4, %c0_5] : memref<1x512xf32, #tpu.memory_space<vmem>>, vector<1x512xf32>
    %5 = vector.broadcast %4 : vector<1x512xf32> to vector<48x512xf32>
    %6 = arith.addf %3, %5 : vector<48x512xf32>
    %c0_6 = arith.constant 0 : index
    %c0_7 = arith.constant 0 : index
    %7 = vector.load %arg2[%c0_6, %c0_7] : memref<256x1024xf32, #tpu.memory_space<vmem>>, vector<256x1024xf32>
    %c0_8 = arith.constant 0 : index
    %c0_9 = arith.constant 0 : index
    %8 = vector.load %arg4[%c0_8, %c0_9] : memref<1x512xf32, #tpu.memory_space<vmem>>, vector<1x512xf32>
    %cst_10 = arith.constant 0.000000e+00 : f32
    %9 = vector.broadcast %cst_10 : f32 to vector<8x128xf32>
    %10 = vector.extract_strided_slice %6 {offsets = [0, 0], sizes = [8, 512], strides = [1, 1]} : vector<48x512xf32> to vector<8x512xf32>
    %11 = vector.extract_strided_slice %10 {offsets = [0, 0], sizes = [8, 384], strides = [1, 1]} : vector<8x512xf32> to vector<8x384xf32>
    %12 = arith.negf %11 : vector<8x384xf32>
    %13 = math.exp %12 : vector<8x384xf32>
    %cst_11 = arith.constant 1.000000e+00 : f32
    %14 = vector.broadcast %cst_11 : f32 to vector<8x384xf32>
    %15 = arith.addf %14, %13 : vector<8x384xf32>
    %16 = arith.divf %14, %15 : vector<8x384xf32>
    %17 = vector.extract_strided_slice %10 {offsets = [0, 384], sizes = [8, 128], strides = [1, 1]} : vector<8x512xf32> to vector<8x128xf32>
    %18 = math.tanh %17 : vector<8x128xf32>
    %19 = vector.extract_strided_slice %16 {offsets = [0, 0], sizes = [8, 128], strides = [1, 1]} : vector<8x384xf32> to vector<8x128xf32>
    %20 = vector.extract_strided_slice %16 {offsets = [0, 128], sizes = [8, 128], strides = [1, 1]} : vector<8x384xf32> to vector<8x128xf32>
    %21 = vector.extract_strided_slice %16 {offsets = [0, 256], sizes = [8, 128], strides = [1, 1]} : vector<8x384xf32> to vector<8x128xf32>
    %22 = arith.mulf %20, %9 : vector<8x128xf32>
    %23 = arith.mulf %19, %18 : vector<8x128xf32>
    %24 = arith.addf %22, %23 : vector<8x128xf32>
    %25 = math.tanh %24 : vector<8x128xf32>
    %26 = arith.mulf %21, %25 : vector<8x128xf32>
    %27 = tpu.concatenate %26, %9 in 1 : vector<8x128xf32>, vector<8x128xf32> -> vector<8x256xf32>
    %cst_12 = arith.constant dense<0.000000e+00> : vector<8x1024xf32>
    %28 = tpu.matmul %27, %7, %cst_12 {dimension_numbers = #tpu.dot_dimension_numbers<[1], [0], [0], [1], [0, 0, 1, 1], [], []>} : vector<8x256xf32>, vector<256x1024xf32>, vector<8x1024xf32> -> vector<8x1024xf32>
    %29 = vector.extract_strided_slice %28 {offsets = [0, 0], sizes = [8, 512], strides = [1, 1]} : vector<8x1024xf32> to vector<8x512xf32>
    %30 = vector.broadcast %8 : vector<1x512xf32> to vector<8x512xf32>
    %31 = arith.addf %29, %30 : vector<8x512xf32>
    %32 = vector.extract_strided_slice %28 {offsets = [0, 512], sizes = [8, 512], strides = [1, 1]} : vector<8x1024xf32> to vector<8x512xf32>
    %33 = vector.extract_strided_slice %31 {offsets = [0, 0], sizes = [8, 384], strides = [1, 1]} : vector<8x512xf32> to vector<8x384xf32>
    %34 = arith.negf %33 : vector<8x384xf32>
    %35 = math.exp %34 : vector<8x384xf32>
    %cst_13 = arith.constant 1.000000e+00 : f32
    %36 = vector.broadcast %cst_13 : f32 to vector<8x384xf32>
    %37 = arith.addf %36, %35 : vector<8x384xf32>
    %38 = arith.divf %36, %37 : vector<8x384xf32>
    %39 = vector.extract_strided_slice %31 {offsets = [0, 384], sizes = [8, 128], strides = [1, 1]} : vector<8x512xf32> to vector<8x128xf32>
    %40 = math.tanh %39 : vector<8x128xf32>
    %41 = vector.extract_strided_slice %38 {offsets = [0, 0], sizes = [8, 128], strides = [1, 1]} : vector<8x384xf32> to vector<8x128xf32>
    %42 = vector.extract_strided_slice %38 {offsets = [0, 128], sizes = [8, 128], strides = [1, 1]} : vector<8x384xf32> to vector<8x128xf32>
    %43 = vector.extract_strided_slice %38 {offsets = [0, 256], sizes = [8, 128], strides = [1, 1]} : vector<8x384xf32> to vector<8x128xf32>
    %44 = arith.mulf %42, %9 : vector<8x128xf32>
    %45 = arith.mulf %41, %40 : vector<8x128xf32>
    %46 = arith.addf %44, %45 : vector<8x128xf32>
    %47 = math.tanh %46 : vector<8x128xf32>
    %48 = arith.mulf %43, %47 : vector<8x128xf32>
    %49 = vector.extract_strided_slice %6 {offsets = [8, 0], sizes = [8, 512], strides = [1, 1]} : vector<48x512xf32> to vector<8x512xf32>
    %50 = arith.addf %49, %32 : vector<8x512xf32>
    %51 = vector.extract_strided_slice %50 {offsets = [0, 0], sizes = [8, 384], strides = [1, 1]} : vector<8x512xf32> to vector<8x384xf32>
    %52 = arith.negf %51 : vector<8x384xf32>
    %53 = math.exp %52 : vector<8x384xf32>
    %cst_14 = arith.constant 1.000000e+00 : f32
    %54 = vector.broadcast %cst_14 : f32 to vector<8x384xf32>
    %55 = arith.addf %54, %53 : vector<8x384xf32>
    %56 = arith.divf %54, %55 : vector<8x384xf32>
    %57 = vector.extract_strided_slice %50 {offsets = [0, 384], sizes = [8, 128], strides = [1, 1]} : vector<8x512xf32> to vector<8x128xf32>
    %58 = math.tanh %57 : vector<8x128xf32>
    %59 = vector.extract_strided_slice %56 {offsets = [0, 0], sizes = [8, 128], strides = [1, 1]} : vector<8x384xf32> to vector<8x128xf32>
    %60 = vector.extract_strided_slice %56 {offsets = [0, 128], sizes = [8, 128], strides = [1, 1]} : vector<8x384xf32> to vector<8x128xf32>
    %61 = vector.extract_strided_slice %56 {offsets = [0, 256], sizes = [8, 128], strides = [1, 1]} : vector<8x384xf32> to vector<8x128xf32>
    %62 = arith.mulf %60, %24 : vector<8x128xf32>
    %63 = arith.mulf %59, %58 : vector<8x128xf32>
    %64 = arith.addf %62, %63 : vector<8x128xf32>
    %65 = math.tanh %64 : vector<8x128xf32>
    %66 = arith.mulf %61, %65 : vector<8x128xf32>
    %67 = tpu.concatenate %66, %48 in 1 : vector<8x128xf32>, vector<8x128xf32> -> vector<8x256xf32>
    %cst_15 = arith.constant dense<0.000000e+00> : vector<8x1024xf32>
    %68 = tpu.matmul %67, %7, %cst_15 {dimension_numbers = #tpu.dot_dimension_numbers<[1], [0], [0], [1], [0, 0, 1, 1], [], []>} : vector<8x256xf32>, vector<256x1024xf32>, vector<8x1024xf32> -> vector<8x1024xf32>
    %69 = vector.extract_strided_slice %68 {offsets = [0, 0], sizes = [8, 512], strides = [1, 1]} : vector<8x1024xf32> to vector<8x512xf32>
    %70 = vector.broadcast %8 : vector<1x512xf32> to vector<8x512xf32>
    %71 = arith.addf %69, %70 : vector<8x512xf32>
    %72 = vector.extract_strided_slice %68 {offsets = [0, 512], sizes = [8, 512], strides = [1, 1]} : vector<8x1024xf32> to vector<8x512xf32>
    %73 = vector.extract_strided_slice %71 {offsets = [0, 0], sizes = [8, 384], strides = [1, 1]} : vector<8x512xf32> to vector<8x384xf32>
    %74 = arith.negf %73 : vector<8x384xf32>
    %75 = math.exp %74 : vector<8x384xf32>
    %cst_16 = arith.constant 1.000000e+00 : f32
    %76 = vector.broadcast %cst_16 : f32 to vector<8x384xf32>
    %77 = arith.addf %76, %75 : vector<8x384xf32>
    %78 = arith.divf %76, %77 : vector<8x384xf32>
    %79 = vector.extract_strided_slice %71 {offsets = [0, 384], sizes = [8, 128], strides = [1, 1]} : vector<8x512xf32> to vector<8x128xf32>
    %80 = math.tanh %79 : vector<8x128xf32>
    %81 = vector.extract_strided_slice %78 {offsets = [0, 0], sizes = [8, 128], strides = [1, 1]} : vector<8x384xf32> to vector<8x128xf32>
    %82 = vector.extract_strided_slice %78 {offsets = [0, 128], sizes = [8, 128], strides = [1, 1]} : vector<8x384xf32> to vector<8x128xf32>
    %83 = vector.extract_strided_slice %78 {offsets = [0, 256], sizes = [8, 128], strides = [1, 1]} : vector<8x384xf32> to vector<8x128xf32>
    %84 = arith.mulf %82, %46 : vector<8x128xf32>
    %85 = arith.mulf %81, %80 : vector<8x128xf32>
    %86 = arith.addf %84, %85 : vector<8x128xf32>
    %87 = math.tanh %86 : vector<8x128xf32>
    %88 = arith.mulf %83, %87 : vector<8x128xf32>
    %89 = vector.extract_strided_slice %6 {offsets = [16, 0], sizes = [8, 512], strides = [1, 1]} : vector<48x512xf32> to vector<8x512xf32>
    %90 = arith.addf %89, %72 : vector<8x512xf32>
    %91 = vector.extract_strided_slice %90 {offsets = [0, 0], sizes = [8, 384], strides = [1, 1]} : vector<8x512xf32> to vector<8x384xf32>
    %92 = arith.negf %91 : vector<8x384xf32>
    %93 = math.exp %92 : vector<8x384xf32>
    %cst_17 = arith.constant 1.000000e+00 : f32
    %94 = vector.broadcast %cst_17 : f32 to vector<8x384xf32>
    %95 = arith.addf %94, %93 : vector<8x384xf32>
    %96 = arith.divf %94, %95 : vector<8x384xf32>
    %97 = vector.extract_strided_slice %90 {offsets = [0, 384], sizes = [8, 128], strides = [1, 1]} : vector<8x512xf32> to vector<8x128xf32>
    %98 = math.tanh %97 : vector<8x128xf32>
    %99 = vector.extract_strided_slice %96 {offsets = [0, 0], sizes = [8, 128], strides = [1, 1]} : vector<8x384xf32> to vector<8x128xf32>
    %100 = vector.extract_strided_slice %96 {offsets = [0, 128], sizes = [8, 128], strides = [1, 1]} : vector<8x384xf32> to vector<8x128xf32>
    %101 = vector.extract_strided_slice %96 {offsets = [0, 256], sizes = [8, 128], strides = [1, 1]} : vector<8x384xf32> to vector<8x128xf32>
    %102 = arith.mulf %100, %64 : vector<8x128xf32>
    %103 = arith.mulf %99, %98 : vector<8x128xf32>
    %104 = arith.addf %102, %103 : vector<8x128xf32>
    %105 = math.tanh %104 : vector<8x128xf32>
    %106 = arith.mulf %101, %105 : vector<8x128xf32>
    %107 = tpu.concatenate %106, %88 in 1 : vector<8x128xf32>, vector<8x128xf32> -> vector<8x256xf32>
    %cst_18 = arith.constant dense<0.000000e+00> : vector<8x1024xf32>
    %108 = tpu.matmul %107, %7, %cst_18 {dimension_numbers = #tpu.dot_dimension_numbers<[1], [0], [0], [1], [0, 0, 1, 1], [], []>} : vector<8x256xf32>, vector<256x1024xf32>, vector<8x1024xf32> -> vector<8x1024xf32>
    %109 = vector.extract_strided_slice %108 {offsets = [0, 0], sizes = [8, 512], strides = [1, 1]} : vector<8x1024xf32> to vector<8x512xf32>
    %110 = vector.broadcast %8 : vector<1x512xf32> to vector<8x512xf32>
    %111 = arith.addf %109, %110 : vector<8x512xf32>
    %112 = vector.extract_strided_slice %108 {offsets = [0, 512], sizes = [8, 512], strides = [1, 1]} : vector<8x1024xf32> to vector<8x512xf32>
    %113 = vector.extract_strided_slice %111 {offsets = [0, 0], sizes = [8, 384], strides = [1, 1]} : vector<8x512xf32> to vector<8x384xf32>
    %114 = arith.negf %113 : vector<8x384xf32>
    %115 = math.exp %114 : vector<8x384xf32>
    %cst_19 = arith.constant 1.000000e+00 : f32
    %116 = vector.broadcast %cst_19 : f32 to vector<8x384xf32>
    %117 = arith.addf %116, %115 : vector<8x384xf32>
    %118 = arith.divf %116, %117 : vector<8x384xf32>
    %119 = vector.extract_strided_slice %111 {offsets = [0, 384], sizes = [8, 128], strides = [1, 1]} : vector<8x512xf32> to vector<8x128xf32>
    %120 = math.tanh %119 : vector<8x128xf32>
    %121 = vector.extract_strided_slice %118 {offsets = [0, 0], sizes = [8, 128], strides = [1, 1]} : vector<8x384xf32> to vector<8x128xf32>
    %122 = vector.extract_strided_slice %118 {offsets = [0, 128], sizes = [8, 128], strides = [1, 1]} : vector<8x384xf32> to vector<8x128xf32>
    %123 = vector.extract_strided_slice %118 {offsets = [0, 256], sizes = [8, 128], strides = [1, 1]} : vector<8x384xf32> to vector<8x128xf32>
    %124 = arith.mulf %122, %86 : vector<8x128xf32>
    %125 = arith.mulf %121, %120 : vector<8x128xf32>
    %126 = arith.addf %124, %125 : vector<8x128xf32>
    %127 = math.tanh %126 : vector<8x128xf32>
    %128 = arith.mulf %123, %127 : vector<8x128xf32>
    %129 = vector.extract_strided_slice %6 {offsets = [24, 0], sizes = [8, 512], strides = [1, 1]} : vector<48x512xf32> to vector<8x512xf32>
    %130 = arith.addf %129, %112 : vector<8x512xf32>
    %131 = vector.extract_strided_slice %130 {offsets = [0, 0], sizes = [8, 384], strides = [1, 1]} : vector<8x512xf32> to vector<8x384xf32>
    %132 = arith.negf %131 : vector<8x384xf32>
    %133 = math.exp %132 : vector<8x384xf32>
    %cst_20 = arith.constant 1.000000e+00 : f32
    %134 = vector.broadcast %cst_20 : f32 to vector<8x384xf32>
    %135 = arith.addf %134, %133 : vector<8x384xf32>
    %136 = arith.divf %134, %135 : vector<8x384xf32>
    %137 = vector.extract_strided_slice %130 {offsets = [0, 384], sizes = [8, 128], strides = [1, 1]} : vector<8x512xf32> to vector<8x128xf32>
    %138 = math.tanh %137 : vector<8x128xf32>
    %139 = vector.extract_strided_slice %136 {offsets = [0, 0], sizes = [8, 128], strides = [1, 1]} : vector<8x384xf32> to vector<8x128xf32>
    %140 = vector.extract_strided_slice %136 {offsets = [0, 128], sizes = [8, 128], strides = [1, 1]} : vector<8x384xf32> to vector<8x128xf32>
    %141 = vector.extract_strided_slice %136 {offsets = [0, 256], sizes = [8, 128], strides = [1, 1]} : vector<8x384xf32> to vector<8x128xf32>
    %142 = arith.mulf %140, %104 : vector<8x128xf32>
    %143 = arith.mulf %139, %138 : vector<8x128xf32>
    %144 = arith.addf %142, %143 : vector<8x128xf32>
    %145 = math.tanh %144 : vector<8x128xf32>
    %146 = arith.mulf %141, %145 : vector<8x128xf32>
    %147 = tpu.concatenate %146, %128 in 1 : vector<8x128xf32>, vector<8x128xf32> -> vector<8x256xf32>
    %cst_21 = arith.constant dense<0.000000e+00> : vector<8x1024xf32>
    %148 = tpu.matmul %147, %7, %cst_21 {dimension_numbers = #tpu.dot_dimension_numbers<[1], [0], [0], [1], [0, 0, 1, 1], [], []>} : vector<8x256xf32>, vector<256x1024xf32>, vector<8x1024xf32> -> vector<8x1024xf32>
    %149 = vector.extract_strided_slice %148 {offsets = [0, 0], sizes = [8, 512], strides = [1, 1]} : vector<8x1024xf32> to vector<8x512xf32>
    %150 = vector.broadcast %8 : vector<1x512xf32> to vector<8x512xf32>
    %151 = arith.addf %149, %150 : vector<8x512xf32>
    %152 = vector.extract_strided_slice %148 {offsets = [0, 512], sizes = [8, 512], strides = [1, 1]} : vector<8x1024xf32> to vector<8x512xf32>
    %153 = vector.extract_strided_slice %151 {offsets = [0, 0], sizes = [8, 384], strides = [1, 1]} : vector<8x512xf32> to vector<8x384xf32>
    %154 = arith.negf %153 : vector<8x384xf32>
    %155 = math.exp %154 : vector<8x384xf32>
    %cst_22 = arith.constant 1.000000e+00 : f32
    %156 = vector.broadcast %cst_22 : f32 to vector<8x384xf32>
    %157 = arith.addf %156, %155 : vector<8x384xf32>
    %158 = arith.divf %156, %157 : vector<8x384xf32>
    %159 = vector.extract_strided_slice %151 {offsets = [0, 384], sizes = [8, 128], strides = [1, 1]} : vector<8x512xf32> to vector<8x128xf32>
    %160 = math.tanh %159 : vector<8x128xf32>
    %161 = vector.extract_strided_slice %158 {offsets = [0, 0], sizes = [8, 128], strides = [1, 1]} : vector<8x384xf32> to vector<8x128xf32>
    %162 = vector.extract_strided_slice %158 {offsets = [0, 128], sizes = [8, 128], strides = [1, 1]} : vector<8x384xf32> to vector<8x128xf32>
    %163 = vector.extract_strided_slice %158 {offsets = [0, 256], sizes = [8, 128], strides = [1, 1]} : vector<8x384xf32> to vector<8x128xf32>
    %164 = arith.mulf %162, %126 : vector<8x128xf32>
    %165 = arith.mulf %161, %160 : vector<8x128xf32>
    %166 = arith.addf %164, %165 : vector<8x128xf32>
    %167 = math.tanh %166 : vector<8x128xf32>
    %168 = arith.mulf %163, %167 : vector<8x128xf32>
    %169 = vector.extract_strided_slice %6 {offsets = [32, 0], sizes = [8, 512], strides = [1, 1]} : vector<48x512xf32> to vector<8x512xf32>
    %170 = arith.addf %169, %152 : vector<8x512xf32>
    %171 = vector.extract_strided_slice %170 {offsets = [0, 0], sizes = [8, 384], strides = [1, 1]} : vector<8x512xf32> to vector<8x384xf32>
    %172 = arith.negf %171 : vector<8x384xf32>
    %173 = math.exp %172 : vector<8x384xf32>
    %cst_23 = arith.constant 1.000000e+00 : f32
    %174 = vector.broadcast %cst_23 : f32 to vector<8x384xf32>
    %175 = arith.addf %174, %173 : vector<8x384xf32>
    %176 = arith.divf %174, %175 : vector<8x384xf32>
    %177 = vector.extract_strided_slice %170 {offsets = [0, 384], sizes = [8, 128], strides = [1, 1]} : vector<8x512xf32> to vector<8x128xf32>
    %178 = math.tanh %177 : vector<8x128xf32>
    %179 = vector.extract_strided_slice %176 {offsets = [0, 0], sizes = [8, 128], strides = [1, 1]} : vector<8x384xf32> to vector<8x128xf32>
    %180 = vector.extract_strided_slice %176 {offsets = [0, 128], sizes = [8, 128], strides = [1, 1]} : vector<8x384xf32> to vector<8x128xf32>
    %181 = vector.extract_strided_slice %176 {offsets = [0, 256], sizes = [8, 128], strides = [1, 1]} : vector<8x384xf32> to vector<8x128xf32>
    %182 = arith.mulf %180, %144 : vector<8x128xf32>
    %183 = arith.mulf %179, %178 : vector<8x128xf32>
    %184 = arith.addf %182, %183 : vector<8x128xf32>
    %185 = math.tanh %184 : vector<8x128xf32>
    %186 = arith.mulf %181, %185 : vector<8x128xf32>
    %187 = tpu.concatenate %186, %168 in 1 : vector<8x128xf32>, vector<8x128xf32> -> vector<8x256xf32>
    %cst_24 = arith.constant dense<0.000000e+00> : vector<8x1024xf32>
    %188 = tpu.matmul %187, %7, %cst_24 {dimension_numbers = #tpu.dot_dimension_numbers<[1], [0], [0], [1], [0, 0, 1, 1], [], []>} : vector<8x256xf32>, vector<256x1024xf32>, vector<8x1024xf32> -> vector<8x1024xf32>
    %189 = vector.extract_strided_slice %188 {offsets = [0, 0], sizes = [8, 512], strides = [1, 1]} : vector<8x1024xf32> to vector<8x512xf32>
    %190 = vector.broadcast %8 : vector<1x512xf32> to vector<8x512xf32>
    %191 = arith.addf %189, %190 : vector<8x512xf32>
    %192 = vector.extract_strided_slice %188 {offsets = [0, 512], sizes = [8, 512], strides = [1, 1]} : vector<8x1024xf32> to vector<8x512xf32>
    %193 = vector.extract_strided_slice %191 {offsets = [0, 0], sizes = [8, 384], strides = [1, 1]} : vector<8x512xf32> to vector<8x384xf32>
    %194 = arith.negf %193 : vector<8x384xf32>
    %195 = math.exp %194 : vector<8x384xf32>
    %cst_25 = arith.constant 1.000000e+00 : f32
    %196 = vector.broadcast %cst_25 : f32 to vector<8x384xf32>
    %197 = arith.addf %196, %195 : vector<8x384xf32>
    %198 = arith.divf %196, %197 : vector<8x384xf32>
    %199 = vector.extract_strided_slice %191 {offsets = [0, 384], sizes = [8, 128], strides = [1, 1]} : vector<8x512xf32> to vector<8x128xf32>
    %200 = math.tanh %199 : vector<8x128xf32>
    %201 = vector.extract_strided_slice %198 {offsets = [0, 0], sizes = [8, 128], strides = [1, 1]} : vector<8x384xf32> to vector<8x128xf32>
    %202 = vector.extract_strided_slice %198 {offsets = [0, 128], sizes = [8, 128], strides = [1, 1]} : vector<8x384xf32> to vector<8x128xf32>
    %203 = vector.extract_strided_slice %198 {offsets = [0, 256], sizes = [8, 128], strides = [1, 1]} : vector<8x384xf32> to vector<8x128xf32>
    %204 = arith.mulf %202, %166 : vector<8x128xf32>
    %205 = arith.mulf %201, %200 : vector<8x128xf32>
    %206 = arith.addf %204, %205 : vector<8x128xf32>
    %207 = math.tanh %206 : vector<8x128xf32>
    %208 = arith.mulf %203, %207 : vector<8x128xf32>
    %209 = vector.extract_strided_slice %6 {offsets = [40, 0], sizes = [8, 512], strides = [1, 1]} : vector<48x512xf32> to vector<8x512xf32>
    %210 = arith.addf %209, %192 : vector<8x512xf32>
    %211 = vector.extract_strided_slice %210 {offsets = [0, 0], sizes = [8, 384], strides = [1, 1]} : vector<8x512xf32> to vector<8x384xf32>
    %212 = arith.negf %211 : vector<8x384xf32>
    %213 = math.exp %212 : vector<8x384xf32>
    %cst_26 = arith.constant 1.000000e+00 : f32
    %214 = vector.broadcast %cst_26 : f32 to vector<8x384xf32>
    %215 = arith.addf %214, %213 : vector<8x384xf32>
    %216 = arith.divf %214, %215 : vector<8x384xf32>
    %217 = vector.extract_strided_slice %210 {offsets = [0, 384], sizes = [8, 128], strides = [1, 1]} : vector<8x512xf32> to vector<8x128xf32>
    %218 = math.tanh %217 : vector<8x128xf32>
    %219 = vector.extract_strided_slice %216 {offsets = [0, 0], sizes = [8, 128], strides = [1, 1]} : vector<8x384xf32> to vector<8x128xf32>
    %220 = vector.extract_strided_slice %216 {offsets = [0, 128], sizes = [8, 128], strides = [1, 1]} : vector<8x384xf32> to vector<8x128xf32>
    %221 = vector.extract_strided_slice %216 {offsets = [0, 256], sizes = [8, 128], strides = [1, 1]} : vector<8x384xf32> to vector<8x128xf32>
    %222 = arith.mulf %220, %184 : vector<8x128xf32>
    %223 = arith.mulf %219, %218 : vector<8x128xf32>
    %224 = arith.addf %222, %223 : vector<8x128xf32>
    %225 = math.tanh %224 : vector<8x128xf32>
    %226 = arith.mulf %221, %225 : vector<8x128xf32>
    %227 = tpu.concatenate %226, %208 in 1 : vector<8x128xf32>, vector<8x128xf32> -> vector<8x256xf32>
    %cst_27 = arith.constant dense<0.000000e+00> : vector<8x1024xf32>
    %228 = tpu.matmul %227, %7, %cst_27 {dimension_numbers = #tpu.dot_dimension_numbers<[1], [0], [0], [1], [0, 0, 1, 1], [], []>} : vector<8x256xf32>, vector<256x1024xf32>, vector<8x1024xf32> -> vector<8x1024xf32>
    %229 = vector.extract_strided_slice %228 {offsets = [0, 0], sizes = [8, 512], strides = [1, 1]} : vector<8x1024xf32> to vector<8x512xf32>
    %230 = vector.broadcast %8 : vector<1x512xf32> to vector<8x512xf32>
    %231 = arith.addf %229, %230 : vector<8x512xf32>
    %232 = vector.extract_strided_slice %231 {offsets = [0, 0], sizes = [8, 384], strides = [1, 1]} : vector<8x512xf32> to vector<8x384xf32>
    %233 = arith.negf %232 : vector<8x384xf32>
    %234 = math.exp %233 : vector<8x384xf32>
    %cst_28 = arith.constant 1.000000e+00 : f32
    %235 = vector.broadcast %cst_28 : f32 to vector<8x384xf32>
    %236 = arith.addf %235, %234 : vector<8x384xf32>
    %237 = arith.divf %235, %236 : vector<8x384xf32>
    %238 = vector.extract_strided_slice %231 {offsets = [0, 384], sizes = [8, 128], strides = [1, 1]} : vector<8x512xf32> to vector<8x128xf32>
    %239 = math.tanh %238 : vector<8x128xf32>
    %240 = vector.extract_strided_slice %237 {offsets = [0, 0], sizes = [8, 128], strides = [1, 1]} : vector<8x384xf32> to vector<8x128xf32>
    %241 = vector.extract_strided_slice %237 {offsets = [0, 128], sizes = [8, 128], strides = [1, 1]} : vector<8x384xf32> to vector<8x128xf32>
    %242 = vector.extract_strided_slice %237 {offsets = [0, 256], sizes = [8, 128], strides = [1, 1]} : vector<8x384xf32> to vector<8x128xf32>
    %243 = arith.mulf %241, %206 : vector<8x128xf32>
    %244 = arith.mulf %240, %239 : vector<8x128xf32>
    %245 = arith.addf %243, %244 : vector<8x128xf32>
    %246 = math.tanh %245 : vector<8x128xf32>
    %247 = arith.mulf %242, %246 : vector<8x128xf32>
    %c0_29 = arith.constant 0 : index
    %c0_30 = arith.constant 0 : index
    %248 = vector.load %arg5[%c0_29, %c0_30] : memref<128x128xf32, #tpu.memory_space<vmem>>, vector<128x128xf32>
    %cst_31 = arith.constant dense<0.000000e+00> : vector<8x128xf32>
    %249 = tpu.matmul %247, %248, %cst_31 {dimension_numbers = #tpu.dot_dimension_numbers<[1], [0], [0], [1], [0, 0, 1, 1], [], []>} : vector<8x128xf32>, vector<128x128xf32>, vector<8x128xf32> -> vector<8x128xf32>
    %c0_32 = arith.constant 0 : index
    %c0_33 = arith.constant 0 : index
    %250 = vector.load %arg6[%c0_32, %c0_33] : memref<1x128xf32, #tpu.memory_space<vmem>>, vector<1x128xf32>
    %251 = vector.broadcast %250 : vector<1x128xf32> to vector<8x128xf32>
    %252 = arith.addf %249, %251 : vector<8x128xf32>
    %cst_34 = arith.constant 0.000000e+00 : f32
    %253 = vector.broadcast %cst_34 : f32 to vector<8x128xf32>
    %254 = arith.maximumf %252, %253 : vector<8x128xf32>
    %c0_35 = arith.constant 0 : index
    %c0_36 = arith.constant 0 : index
    %255 = vector.load %arg7[%c0_35, %c0_36] : memref<8x128xf32, #tpu.memory_space<vmem>>, vector<8x128xf32>
    tpu.vector_store %arg7[%c0_35, %c0_36], %254 {strides = array<i32>} : memref<8x128xf32, #tpu.memory_space<vmem>>, vector<8x128xf32>,
    return
  }
}

</mosaic_0001>

<llo_original>
// kernel: tpu_custom_call.1
$region0: #{tpu_custom_call.1}
  #allocation0 [shape = 'u32[]', space=smem, size = 0x4, offset = 0x4, fixed_abs, tag = 'smem constant byte address 0x4 - core index']
  #allocation1 [shape = 'u32[144,128]{1,0:T(1,128)}', space=vmem, size = 0x12000, scoped, tag = 'internal scratch']
  %s0 = inlined_call_operand.hbm [shape: f32[6,8,128], index: 0, kind: input, shape index: {}]
  %s1 = inlined_call_operand.hbm [shape: f32[128,512], index: 1, kind: input, shape index: {}]
  %s2 = inlined_call_operand.hbm [shape: f32[256,1024], index: 2, kind: input, shape index: {}]
  %s3 = inlined_call_operand.vmem [shape: f32[1,512], index: 3, kind: input, shape index: {}]
  %s4 = inlined_call_operand.vmem [shape: f32[1,512], index: 4, kind: input, shape index: {}]
  %s5 = inlined_call_operand.hbm [shape: f32[128,128], index: 5, kind: input, shape index: {}]
  %s6 = inlined_call_operand.vmem [shape: f32[1,128], index: 6, kind: input, shape index: {}]
  %s7 = inlined_call_operand.hbm [shape: f32[8,128], index: 7, kind: output, shape index: {}]
  %s8 = sld [smem:[#allocation0]]
  $region54: #{tpu_custom_call.1} parent=0
    _
  %s10 = ssub.s32 1, %s8
  %s11 = scalar_select 0, %s10, %s8
  $region1: #{tpu_custom_call.1} parent=0
    #allocation2 [shape = 'u8[24576]{0}', space=vmem, size = 0x6000, scoped, tag = 'input window, operand 0, single buffered']
    #allocation3 [shape = 's32[1]{0}', space=sflag, size = 0x4, scoped, tag = 'scoped memory for tpu_custom_call.1']
    #allocation4 [shape = 's32[1]{0}', space=sflag, size = 0x4, scoped, tag = 'scoped memory for tpu_custom_call.1']
    #allocation5 [shape = 'u8[262144]{0}', space=vmem, size = 0x40000, scoped, tag = 'input window, operand 1, single buffered']
    #allocation6 [shape = 's32[1]{0}', space=sflag, size = 0x4, scoped, tag = 'scoped memory for tpu_custom_call.1']
    #allocation7 [shape = 'u8[1048576]{0}', space=vmem, size = 0x100000, scoped, tag = 'input window, operand 2, single buffered']
    #allocation8 [shape = 'u8[65536]{0}', space=vmem, size = 0x10000, scoped, tag = 'input window, operand 5, single buffered']
    #allocation9 [shape = 's32[1]{0}', space=sflag, size = 0x4, scoped, tag = 'scoped memory for tpu_custom_call.1']
    #allocation10 [shape = 'u8[4096]{0}', space=vmem, size = 0x1000, scoped, tag = 'output window, operand 0, single buffered']
    %12 = vsyncpa [#allocation3], 0
    %13 = vsyncpa [#allocation6], 0
    %14 = vsyncpa [#allocation9], 0
    %15 = vsyncpa [#allocation4], 0
    // Predicated region
    $region2: #{tpu_custom_call.1} parent=1 // pred_check
      _
    $region3: #{tpu_custom_call.1} parent=1 // pred_check_branch
      %17 = sbr.rel (0) target = $region5
    $region4: #{tpu_custom_call.1} parent=1 // pred_region
      %s19 = ssub.s32 768, 768
      %20 = vsyncadd [#allocation3], %s19
      %s21 = sshll.u32 [#allocation2], 4
      %s22 = int_to_ptr.vmem [resolvable:$true] %s21
      %27 = dma.hbm_to_vmem [thread:$0]  %s0, 768, %s22, [#allocation3], 128, 128, 8
    $region5: #{tpu_custom_call.1} parent=1 // pred_fallthru
      _
    // Predicated region
    $region6: #{tpu_custom_call.1} parent=1 // pred_check
      _
    $region7: #{tpu_custom_call.1} parent=1 // pred_check_branch
      %29 = sbr.rel (0) target = $region9
    $region8: #{tpu_custom_call.1} parent=1 // pred_region
      %s31 = ssub.s32 8192, 8192
      %32 = vsyncadd [#allocation6], %s31
      %s33 = sshll.u32 [#allocation5], 4
      %s34 = int_to_ptr.vmem [resolvable:$true] %s33
      %39 = dma.hbm_to_vmem [thread:$0]  %s1, 8192, %s34, [#allocation6], 512, 512, 32
    $region9: #{tpu_custom_call.1} parent=1 // pred_fallthru
      _
    // Predicated region
    $region10: #{tpu_custom_call.1} parent=1 // pred_check
      _
    $region11: #{tpu_custom_call.1} parent=1 // pred_check_branch
      %41 = sbr.rel (0) target = $region13
    $region12: #{tpu_custom_call.1} parent=1 // pred_region
      %s43 = ssub.s32 32768, 32768
      %44 = vsyncadd [#allocation6], %s43
      %s45 = sshll.u32 [#allocation7], 4
      %s46 = int_to_ptr.vmem [resolvable:$true] %s45
      %51 = dma.hbm_to_vmem [thread:$0]  %s2, 32768, %s46, [#allocation6], 1024, 1024, 64
    $region13: #{tpu_custom_call.1} parent=1 // pred_fallthru
      _
    // Predicated region
    $region14: #{tpu_custom_call.1} parent=1 // pred_check
      _
    $region15: #{tpu_custom_call.1} parent=1 // pred_check_branch
      %53 = sbr.rel (0) target = $region17
    $region16: #{tpu_custom_call.1} parent=1 // pred_region
      _
    $region17: #{tpu_custom_call.1} parent=1 // pred_fallthru
      _
    // Predicated region
    $region18: #{tpu_custom_call.1} parent=1 // pred_check
      _
    $region19: #{tpu_custom_call.1} parent=1 // pred_check_branch
      %55 = sbr.rel (0) target = $region21
    $region20: #{tpu_custom_call.1} parent=1 // pred_region
      _
    $region21: #{tpu_custom_call.1} parent=1 // pred_fallthru
      _
    // Predicated region
    $region22: #{tpu_custom_call.1} parent=1 // pred_check
      _
    $region23: #{tpu_custom_call.1} parent=1 // pred_check_branch
      %57 = sbr.rel (0) target = $region25
    $region24: #{tpu_custom_call.1} parent=1 // pred_region
      %s59 = ssub.s32 2048, 2048
      %60 = vsyncadd [#allocation9], %s59
      %s61 = sshll.u32 [#allocation8], 4
      %s62 = int_to_ptr.vmem [resolvable:$true] %s61
      %67 = dma.hbm_to_vmem [thread:$0]  %s5, 2048, %s62, [#allocation9], 128, 128, 8
    $region25: #{tpu_custom_call.1} parent=1 // pred_fallthru
      _
    // Predicated region
    $region26: #{tpu_custom_call.1} parent=1 // pred_check
      _
    $region27: #{tpu_custom_call.1} parent=1 // pred_check_branch
      %69 = sbr.rel (0) target = $region29
    $region28: #{tpu_custom_call.1} parent=1 // pred_region
      _
    $region29: #{tpu_custom_call.1} parent=1 // pred_fallthru
      _
    // Predicated region
    $region30: #{tpu_custom_call.1} parent=1 // pred_check
      _
    $region31: #{tpu_custom_call.1} parent=1 // pred_check_branch
      %71 = sbr.rel (0) target = $region33
    $region32: #{tpu_custom_call.1} parent=1 // pred_region
      %72 = dma.done [#allocation3], 768
    $region33: #{tpu_custom_call.1} parent=1 // pred_fallthru
      _
    // Predicated region
    $region34: #{tpu_custom_call.1} parent=1 // pred_check
      _
    $region35: #{tpu_custom_call.1} parent=1 // pred_check_branch
      %74 = sbr.rel (0) target = $region37
    $region36: #{tpu_custom_call.1} parent=1 // pred_region
      %75 = dma.done [#allocation6], 8192
    $region37: #{tpu_custom_call.1} parent=1 // pred_fallthru
      _
    // Predicated region
    $region38: #{tpu_custom_call.1} parent=1 // pred_check
      _
    $region39: #{tpu_custom_call.1} parent=1 // pred_check_branch
      %77 = sbr.rel (0) target = $region41
    $region40: #{tpu_custom_call.1} parent=1 // pred_region
      %78 = dma.done [#allocation6], 32768
    $region41: #{tpu_custom_call.1} parent=1 // pred_fallthru
      _
    // Predicated region
    $region42: #{tpu_custom_call.1} parent=1 // pred_check
      _
    $region43: #{tpu_custom_call.1} parent=1 // pred_check_branch
      %80 = sbr.rel (0) target = $region45
    $region44: #{tpu_custom_call.1} parent=1 // pred_region
      %81 = dma.done [#allocation9], 2048
    $region45: #{tpu_custom_call.1} parent=1 // pred_fallthru
      _
    %v82 = vld [vmem:[#allocation2] sm:$0xff]
    %v83 = vld [vmem:[#allocation2 + $0x8] sm:$0xff]
    %v84 = vld [vmem:[#allocation2 + $0x10] sm:$0xff]
    %v85 = vld [vmem:[#allocation2 + $0x18] sm:$0xff]
    %v86 = vld [vmem:[#allocation2 + $0x20] sm:$0xff]
    %v87 = vld [vmem:[#allocation2 + $0x28] sm:$0xff]
    %v88 = vld [vmem:[#allocation5] sm:$0xff]
    %v89 = vld [vmem:[#allocation5 + $0x8] sm:$0xff]
    %v90 = vld [vmem:[#allocation5 + $0x10] sm:$0xff]
    %v91 = vld [vmem:[#allocation5 + $0x18] sm:$0xff]
    %v92 = vld [vmem:[#allocation5 + $0x20] sm:$0xff]
    %v93 = vld [vmem:[#allocation5 + $0x28] sm:$0xff]
    %v94 = vld [vmem:[#allocation5 + $0x30] sm:$0xff]
    %v95 = vld [vmem:[#allocation5 + $0x38] sm:$0xff]
    %v96 = vld [vmem:[#allocation5 + $0x40] sm:$0xff]
    %v97 = vld [vmem:[#allocation5 + $0x48] sm:$0xff]
    %v98 = vld [vmem:[#allocation5 + $0x50] sm:$0xff]
    %v99 = vld [vmem:[#allocation5 + $0x58] sm:$0xff]
    %v100 = vld [vmem:[#allocation5 + $0x60] sm:$0xff]
    %v101 = vld [vmem:[#allocation5 + $0x68] sm:$0xff]
    %v102 = vld [vmem:[#allocation5 + $0x70] sm:$0xff]
    %v103 = vld [vmem:[#allocation5 + $0x78] sm:$0xff]
    %v104 = vld [vmem:[#allocation5 + $0x80] sm:$0xff]
    %v105 = vld [vmem:[#allocation5 + $0x88] sm:$0xff]
    %v106 = vld [vmem:[#allocation5 + $0x90] sm:$0xff]
    %v107 = vld [vmem:[#allocation5 + $0x98] sm:$0xff]
    %v108 = vld [vmem:[#allocation5 + $0xa0] sm:$0xff]
    %v109 = vld [vmem:[#allocation5 + $0xa8] sm:$0xff]
    %v110 = vld [vmem:[#allocation5 + $0xb0] sm:$0xff]
    %v111 = vld [vmem:[#allocation5 + $0xb8] sm:$0xff]
    %v112 = vld [vmem:[#allocation5 + $0xc0] sm:$0xff]
    %v113 = vld [vmem:[#allocation5 + $0xc8] sm:$0xff]
    %v114 = vld [vmem:[#allocation5 + $0xd0] sm:$0xff]
    %v115 = vld [vmem:[#allocation5 + $0xd8] sm:$0xff]
    %v116 = vld [vmem:[#allocation5 + $0xe0] sm:$0xff]
    %v117 = vld [vmem:[#allocation5 + $0xe8] sm:$0xff]
    %v118 = vld [vmem:[#allocation5 + $0xf0] sm:$0xff]
    %v119 = vld [vmem:[#allocation5 + $0xf8] sm:$0xff]
    %v120 = vld [vmem:[#allocation5 + $0x100] sm:$0xff]
    %v121 = vld [vmem:[#allocation5 + $0x108] sm:$0xff]
    %v122 = vld [vmem:[#allocation5 + $0x110] sm:$0xff]
    %v123 = vld [vmem:[#allocation5 + $0x118] sm:$0xff]
    %v124 = vld [vmem:[#allocation5 + $0x120] sm:$0xff]
    %v125 = vld [vmem:[#allocation5 + $0x128] sm:$0xff]
    %v126 = vld [vmem:[#allocation5 + $0x130] sm:$0xff]
    %v127 = vld [vmem:[#allocation5 + $0x138] sm:$0xff]
    %v128 = vld [vmem:[#allocation5 + $0x140] sm:$0xff]
    %v129 = vld [vmem:[#allocation5 + $0x148] sm:$0xff]
    %v130 = vld [vmem:[#allocation5 + $0x150] sm:$0xff]
    %v131 = vld [vmem:[#allocation5 + $0x158] sm:$0xff]
    %v132 = vld [vmem:[#allocation5 + $0x160] sm:$0xff]
    %v133 = vld [vmem:[#allocation5 + $0x168] sm:$0xff]
    %v134 = vld [vmem:[#allocation5 + $0x170] sm:$0xff]
    %v135 = vld [vmem:[#allocation5 + $0x178] sm:$0xff]
    %v136 = vld [vmem:[#allocation5 + $0x180] sm:$0xff]
    %v137 = vld [vmem:[#allocation5 + $0x188] sm:$0xff]
    %v138 = vld [vmem:[#allocation5 + $0x190] sm:$0xff]
    %v139 = vld [vmem:[#allocation5 + $0x198] sm:$0xff]
    %v140 = vld [vmem:[#allocation5 + $0x1a0] sm:$0xff]
    %v141 = vld [vmem:[#allocation5 + $0x1a8] sm:$0xff]
    %v142 = vld [vmem:[#allocation5 + $0x1b0] sm:$0xff]
    %v143 = vld [vmem:[#allocation5 + $0x1b8] sm:$0xff]
    %v144 = vld [vmem:[#allocation5 + $0x1c0] sm:$0xff]
    %v145 = vld [vmem:[#allocation5 + $0x1c8] sm:$0xff]
    %v146 = vld [vmem:[#allocation5 + $0x1d0] sm:$0xff]
    %v147 = vld [vmem:[#allocation5 + $0x1d8] sm:$0xff]
    %v148 = vld [vmem:[#allocation5 + $0x1e0] sm:$0xff]
    %v149 = vld [vmem:[#allocation5 + $0x1e8] sm:$0xff]
    %v150 = vld [vmem:[#allocation5 + $0x1f0] sm:$0xff]
    %v151 = vld [vmem:[#allocation5 + $0x1f8] sm:$0xff]
    %v152 = vld [vmem:[%s3] sm:$0xf]
    %v154 = vlaneseq
    %v155 = vshrl.u32 %v154, 7
    %v156 = vsub.s32 0, %v155
    %v157 = vrot.slane %v152, %v156
    %v158 = vlaneseq
    %v159 = vshrl.u32 %v158, 7
    %v160 = vsub.s32 1, %v159
    %v161 = vrot.slane %v152, %v160
    %v162 = vlaneseq
    %v163 = vshrl.u32 %v162, 7
    %v164 = vsub.s32 2, %v163
    %v165 = vrot.slane %v152, %v164
    %v166 = vlaneseq
    %v167 = vshrl.u32 %v166, 7
    %v168 = vsub.s32 3, %v167
    %v169 = vrot.slane %v152, %v168
    %174 = vmatprep.subr.mxu0 %v89
    %175 = vmatpush1.msra.mxu0 %v88
    %176 = vmatprep.subr.mxu0 %v93
    %177 = vmatpush1.msra.mxu0 %v92
    %178 = vmatprep.subr.mxu0 %v97
    %179 = vmatpush1.msra.mxu0 %v96
    %180 = vmatprep.subr.mxu0 %v101
    %181 = vmatpush1.msra.mxu0 %v100
    %182 = vmatprep.subr.mxu0 %v105
    %183 = vmatpush1.msra.mxu0 %v104
    %184 = vmatprep.subr.mxu0 %v109
    %185 = vmatpush1.msra.mxu0 %v108
    %186 = vmatprep.subr.mxu0 %v113
    %187 = vmatpush1.msra.mxu0 %v112
    %188 = vmatprep.subr.mxu0 %v117
    %189 = vmatpush1.msra.mxu0 %v116
    %190 = vmatprep.subr.mxu0 %v121
    %191 = vmatpush1.msra.mxu0 %v120
    %192 = vmatprep.subr.mxu0 %v125
    %193 = vmatpush1.msra.mxu0 %v124
    %194 = vmatprep.subr.mxu0 %v129
    %195 = vmatpush1.msra.mxu0 %v128
    %196 = vmatprep.subr.mxu0 %v133
    %197 = vmatpush1.msra.mxu0 %v132
    %198 = vmatprep.subr.mxu0 %v137
    %199 = vmatpush1.msra.mxu0 %v136
    %200 = vmatprep.subr.mxu0 %v141
    %201 = vmatpush1.msra.mxu0 %v140
    %202 = vmatprep.subr.mxu0 %v145
    %203 = vmatpush1.msra.mxu0 %v144
    %204 = vmatprep.subr.mxu0 %v149
    %205 = vmatpush1.msra.mxu0 %v148
    %206 = vmatprep.subr.mxu0 0.0
    %207 = vmatpush1.msra.mxu0 0.0
    %208 = vmatprep.subr.mxu0 0.0
    %209 = vmatpush1.msra.mxu0 0.0
    %210 = vmatprep.subr.mxu0 0.0
    %211 = vmatpush1.msra.mxu0 0.0
    %212 = vmatprep.subr.mxu0 0.0
    %213 = vmatpush1.msra.mxu0 0.0
    %214 = vmatprep.subr.mxu0 0.0
    %215 = vmatpush1.msra.mxu0 0.0
    %216 = vmatprep.subr.mxu0 0.0
    %217 = vmatpush1.msra.mxu0 0.0
    %218 = vmatprep.subr.mxu0 0.0
    %219 = vmatpush1.msra.mxu0 0.0
    %220 = vmatprep.subr.mxu0 0.0
    %221 = vmatpush1.msra.mxu0 0.0
    %222 = vmatprep.subr.mxu0 0.0
    %223 = vmatpush1.msra.mxu0 0.0
    %224 = vmatprep.subr.mxu0 0.0
    %225 = vmatpush1.msra.mxu0 0.0
    %226 = vmatprep.subr.mxu0 0.0
    %227 = vmatpush1.msra.mxu0 0.0
    %228 = vmatprep.subr.mxu0 0.0
    %229 = vmatpush1.msra.mxu0 0.0
    %230 = vmatprep.subr.mxu0 0.0
    %231 = vmatpush1.msra.mxu0 0.0
    %232 = vmatprep.subr.mxu0 0.0
    %233 = vmatpush1.msra.mxu0 0.0
    %234 = vmatprep.subr.mxu0 0.0
    %235 = vmatpush1.msra.mxu0 0.0
    %236 = vmatprep.subr.mxu0 0.0
    %237 = vmatpush1.msra.mxu0 0.0
    %238 = vmatprep.mubr.f32.mxu0 0.0
    %239 = vmatmul.mubr.f32.gmra.mrb[0].mxu0 %v82
    %v240 = vpop.f32.mrb[0].mxu0
    %v241 = vadd.f32 %v157, %v240
    %v242 = vpop.f32.mrb[0].mxu0
    %v243 = vadd.f32 %v161, %v242
    %244 = vmatprep.mubr.f32.mxu0 0.0
    %245 = vmatmul.mubr.f32.gmra.mrb[0].mxu0 %v83
    %v246 = vpop.f32.mrb[0].mxu0
    %v247 = vadd.f32 %v157, %v246
    %v248 = vpop.f32.mrb[0].mxu0
    %v249 = vadd.f32 %v161, %v248
    %250 = vmatprep.mubr.f32.mxu0 0.0
    %251 = vmatmul.mubr.f32.gmra.mrb[0].mxu0 %v84
    %v252 = vpop.f32.mrb[0].mxu0
    %v253 = vadd.f32 %v157, %v252
    %v254 = vpop.f32.mrb[0].mxu0
    %v255 = vadd.f32 %v161, %v254
    %256 = vmatprep.mubr.f32.mxu0 0.0
    %257 = vmatmul.mubr.f32.gmra.mrb[0].mxu0 %v85
    %v258 = vpop.f32.mrb[0].mxu0
    %v259 = vadd.f32 %v157, %v258
    %v260 = vpop.f32.mrb[0].mxu0
    %v261 = vadd.f32 %v161, %v260
    %262 = vmatprep.mubr.f32.mxu0 0.0
    %263 = vmatmul.mubr.f32.gmra.mrb[0].mxu0 %v86
    %v264 = vpop.f32.mrb[0].mxu0
    %v265 = vadd.f32 %v157, %v264
    %v266 = vpop.f32.mrb[0].mxu0
    %v267 = vadd.f32 %v161, %v266
    %268 = vmatprep.mubr.f32.mxu0 0.0
    %269 = vmatmul.mubr.f32.gmra.mrb[0].mxu0 %v87
    %v270 = vpop.f32.mrb[0].mxu0
    %v271 = vadd.f32 %v157, %v270
    %v272 = vpop.f32.mrb[0].mxu0
    %v273 = vadd.f32 %v161, %v272
    %274 = vdwg.mxu0
    %275 = vmatprep.subr.mxu0 %v91
    %276 = vmatpush1.msra.mxu0 %v90
    %277 = vmatprep.subr.mxu0 %v95
    %278 = vmatpush1.msra.mxu0 %v94
    %279 = vmatprep.subr.mxu0 %v99
    %280 = vmatpush1.msra.mxu0 %v98
    %281 = vmatprep.subr.mxu0 %v103
    %282 = vmatpush1.msra.mxu0 %v102
    %283 = vmatprep.subr.mxu0 %v107
    %284 = vmatpush1.msra.mxu0 %v106
    %285 = vmatprep.subr.mxu0 %v111
    %286 = vmatpush1.msra.mxu0 %v110
    %287 = vmatprep.subr.mxu0 %v115
    %288 = vmatpush1.msra.mxu0 %v114
    %289 = vmatprep.subr.mxu0 %v119
    %290 = vmatpush1.msra.mxu0 %v118
    %291 = vmatprep.subr.mxu0 %v123
    %292 = vmatpush1.msra.mxu0 %v122
    %293 = vmatprep.subr.mxu0 %v127
    %294 = vmatpush1.msra.mxu0 %v126
    %295 = vmatprep.subr.mxu0 %v131
    %296 = vmatpush1.msra.mxu0 %v130
    %297 = vmatprep.subr.mxu0 %v135
    %298 = vmatpush1.msra.mxu0 %v134
    %299 = vmatprep.subr.mxu0 %v139
    %300 = vmatpush1.msra.mxu0 %v138
    %301 = vmatprep.subr.mxu0 %v143
    %302 = vmatpush1.msra.mxu0 %v142
    %303 = vmatprep.subr.mxu0 %v147
    %304 = vmatpush1.msra.mxu0 %v146
    %305 = vmatprep.subr.mxu0 %v151
    %306 = vmatpush1.msra.mxu0 %v150
    %307 = vmatprep.subr.mxu0 0.0
    %308 = vmatpush1.msra.mxu0 0.0
    %309 = vmatprep.subr.mxu0 0.0
    %310 = vmatpush1.msra.mxu0 0.0
    %311 = vmatprep.subr.mxu0 0.0
    %312 = vmatpush1.msra.mxu0 0.0
    %313 = vmatprep.subr.mxu0 0.0
    %314 = vmatpush1.msra.mxu0 0.0
    %315 = vmatprep.subr.mxu0 0.0
    %316 = vmatpush1.msra.mxu0 0.0
    %317 = vmatprep.subr.mxu0 0.0
    %318 = vmatpush1.msra.mxu0 0.0
    %319 = vmatprep.subr.mxu0 0.0
    %320 = vmatpush1.msra.mxu0 0.0
    %321 = vmatprep.subr.mxu0 0.0
    %322 = vmatpush1.msra.mxu0 0.0
    %323 = vmatprep.subr.mxu0 0.0
    %324 = vmatpush1.msra.mxu0 0.0
    %325 = vmatprep.subr.mxu0 0.0
    %326 = vmatpush1.msra.mxu0 0.0
    %327 = vmatprep.subr.mxu0 0.0
    %328 = vmatpush1.msra.mxu0 0.0
    %329 = vmatprep.subr.mxu0 0.0
    %330 = vmatpush1.msra.mxu0 0.0
    %331 = vmatprep.subr.mxu0 0.0
    %332 = vmatpush1.msra.mxu0 0.0
    %333 = vmatprep.subr.mxu0 0.0
    %334 = vmatpush1.msra.mxu0 0.0
    %335 = vmatprep.subr.mxu0 0.0
    %336 = vmatpush1.msra.mxu0 0.0
    %337 = vmatprep.subr.mxu0 0.0
    %338 = vmatpush1.msra.mxu0 0.0
    %339 = vmatprep.mubr.f32.mxu0 0.0
    %340 = vmatmul.mubr.f32.gmra.mrb[0].mxu0 %v82
    %v341 = vpop.f32.mrb[0].mxu0
    %v342 = vadd.f32 %v165, %v341
    %v343 = vpop.f32.mrb[0].mxu0
    %v344 = vadd.f32 %v169, %v343
    %345 = vmatprep.mubr.f32.mxu0 0.0
    %346 = vmatmul.mubr.f32.gmra.mrb[0].mxu0 %v83
    %v347 = vpop.f32.mrb[0].mxu0
    %v348 = vadd.f32 %v165, %v347
    %v349 = vpop.f32.mrb[0].mxu0
    %v350 = vadd.f32 %v169, %v349
    %351 = vmatprep.mubr.f32.mxu0 0.0
    %352 = vmatmul.mubr.f32.gmra.mrb[0].mxu0 %v84
    %v353 = vpop.f32.mrb[0].mxu0
    %v354 = vadd.f32 %v165, %v353
    %v355 = vpop.f32.mrb[0].mxu0
    %v356 = vadd.f32 %v169, %v355
    %357 = vmatprep.mubr.f32.mxu0 0.0
    %358 = vmatmul.mubr.f32.gmra.mrb[0].mxu0 %v85
    %v359 = vpop.f32.mrb[0].mxu0
    %v360 = vadd.f32 %v165, %v359
    %v361 = vpop.f32.mrb[0].mxu0
    %v362 = vadd.f32 %v169, %v361
    %363 = vmatprep.mubr.f32.mxu0 0.0
    %364 = vmatmul.mubr.f32.gmra.mrb[0].mxu0 %v86
    %v365 = vpop.f32.mrb[0].mxu0
    %v366 = vadd.f32 %v165, %v365
    %v367 = vpop.f32.mrb[0].mxu0
    %v368 = vadd.f32 %v169, %v367
    %369 = vmatprep.mubr.f32.mxu0 0.0
    %370 = vmatmul.mubr.f32.gmra.mrb[0].mxu0 %v87
    %v371 = vpop.f32.mrb[0].mxu0
    %v372 = vadd.f32 %v165, %v371
    %v373 = vpop.f32.mrb[0].mxu0
    %v374 = vadd.f32 %v169, %v373
    %375 = vdwg.mxu0
    %v376 = vld [vmem:[#allocation7] sm:$0xff]
    %v377 = vld [vmem:[#allocation7 + $0x8] sm:$0xff]
    %v378 = vld [vmem:[#allocation7 + $0x10] sm:$0xff]
    %v379 = vld [vmem:[#allocation7 + $0x18] sm:$0xff]
    %v380 = vld [vmem:[#allocation7 + $0x20] sm:$0xff]
    %v381 = vld [vmem:[#allocation7 + $0x28] sm:$0xff]
    %v382 = vld [vmem:[#allocation7 + $0x30] sm:$0xff]
    %v383 = vld [vmem:[#allocation7 + $0x38] sm:$0xff]
    %v384 = vld [vmem:[#allocation7 + $0x40] sm:$0xff]
    %v385 = vld [vmem:[#allocation7 + $0x48] sm:$0xff]
    %v386 = vld [vmem:[#allocation7 + $0x50] sm:$0xff]
    %v387 = vld [vmem:[#allocation7 + $0x58] sm:$0xff]
    %v388 = vld [vmem:[#allocation7 + $0x60] sm:$0xff]
    %v389 = vld [vmem:[#allocation7 + $0x68] sm:$0xff]
    %v390 = vld [vmem:[#allocation7 + $0x70] sm:$0xff]
    %v391 = vld [vmem:[#allocation7 + $0x78] sm:$0xff]
    %v392 = vld [vmem:[#allocation7 + $0x80] sm:$0xff]
    %v393 = vld [vmem:[#allocation7 + $0x88] sm:$0xff]
    %v394 = vld [vmem:[#allocation7 + $0x90] sm:$0xff]
    %v395 = vld [vmem:[#allocation7 + $0x98] sm:$0xff]
    %v396 = vld [vmem:[#allocation7 + $0xa0] sm:$0xff]
    %v397 = vld [vmem:[#allocation7 + $0xa8] sm:$0xff]
    %v398 = vld [vmem:[#allocation7 + $0xb0] sm:$0xff]
    %v399 = vld [vmem:[#allocation7 + $0xb8] sm:$0xff]
    %v400 = vld [vmem:[#allocation7 + $0xc0] sm:$0xff]
    %v401 = vld [vmem:[#allocation7 + $0xc8] sm:$0xff]
    %v402 = vld [vmem:[#allocation7 + $0xd0] sm:$0xff]
    %v403 = vld [vmem:[#allocation7 + $0xd8] sm:$0xff]
    %v404 = vld [vmem:[#allocation7 + $0xe0] sm:$0xff]
    %v405 = vld [vmem:[#allocation7 + $0xe8] sm:$0xff]
    %v406 = vld [vmem:[#allocation7 + $0xf0] sm:$0xff]
    %v407 = vld [vmem:[#allocation7 + $0xf8] sm:$0xff]
    %v408 = vld [vmem:[#allocation7 + $0x100] sm:$0xff]
    %v409 = vld [vmem:[#allocation7 + $0x108] sm:$0xff]
    %v410 = vld [vmem:[#allocation7 + $0x110] sm:$0xff]
    %v411 = vld [vmem:[#allocation7 + $0x118] sm:$0xff]
    %v412 = vld [vmem:[#allocation7 + $0x120] sm:$0xff]
    %v413 = vld [vmem:[#allocation7 + $0x128] sm:$0xff]
    %v414 = vld [vmem:[#allocation7 + $0x130] sm:$0xff]
    %v415 = vld [vmem:[#allocation7 + $0x138] sm:$0xff]
    %v416 = vld [vmem:[#allocation7 + $0x140] sm:$0xff]
    %v417 = vld [vmem:[#allocation7 + $0x148] sm:$0xff]
    %v418 = vld [vmem:[#allocation7 + $0x150] sm:$0xff]
    %v419 = vld [vmem:[#allocation7 + $0x158] sm:$0xff]
    %v420 = vld [vmem:[#allocation7 + $0x160] sm:$0xff]
    %v421 = vld [vmem:[#allocation7 + $0x168] sm:$0xff]
    %v422 = vld [vmem:[#allocation7 + $0x170] sm:$0xff]
    %v423 = vld [vmem:[#allocation7 + $0x178] sm:$0xff]
    %v424 = vld [vmem:[#allocation7 + $0x180] sm:$0xff]
    %v425 = vld [vmem:[#allocation7 + $0x188] sm:$0xff]
    %v426 = vld [vmem:[#allocation7 + $0x190] sm:$0xff]
    %v427 = vld [vmem:[#allocation7 + $0x198] sm:$0xff]
    %v428 = vld [vmem:[#allocation7 + $0x1a0] sm:$0xff]
    %v429 = vld [vmem:[#allocation7 + $0x1a8] sm:$0xff]
    %v430 = vld [vmem:[#allocation7 + $0x1b0] sm:$0xff]
    %v431 = vld [vmem:[#allocation7 + $0x1b8] sm:$0xff]
    %v432 = vld [vmem:[#allocation7 + $0x1c0] sm:$0xff]
    %v433 = vld [vmem:[#allocation7 + $0x1c8] sm:$0xff]
    %v434 = vld [vmem:[#allocation7 + $0x1d0] sm:$0xff]
    %v435 = vld [vmem:[#allocation7 + $0x1d8] sm:$0xff]
    %v436 = vld [vmem:[#allocation7 + $0x1e0] sm:$0xff]
    %v437 = vld [vmem:[#allocation7 + $0x1e8] sm:$0xff]
    %v438 = vld [vmem:[#allocation7 + $0x1f0] sm:$0xff]
    %v439 = vld [vmem:[#allocation7 + $0x1f8] sm:$0xff]
    %v440 = vld [vmem:[#allocation7 + $0x200] sm:$0xff]
    %v441 = vld [vmem:[#allocation7 + $0x208] sm:$0xff]
    %v442 = vld [vmem:[#allocation7 + $0x210] sm:$0xff]
    %v443 = vld [vmem:[#allocation7 + $0x218] sm:$0xff]
    %v444 = vld [vmem:[#allocation7 + $0x220] sm:$0xff]
    %v445 = vld [vmem:[#allocation7 + $0x228] sm:$0xff]
    %v446 = vld [vmem:[#allocation7 + $0x230] sm:$0xff]
    %v447 = vld [vmem:[#allocation7 + $0x238] sm:$0xff]
    %v448 = vld [vmem:[#allocation7 + $0x240] sm:$0xff]
    %v449 = vld [vmem:[#allocation7 + $0x248] sm:$0xff]
    %v450 = vld [vmem:[#allocation7 + $0x250] sm:$0xff]
    %v451 = vld [vmem:[#allocation7 + $0x258] sm:$0xff]
    %v452 = vld [vmem:[#allocation7 + $0x260] sm:$0xff]
    %v453 = vld [vmem:[#allocation7 + $0x268] sm:$0xff]
    %v454 = vld [vmem:[#allocation7 + $0x270] sm:$0xff]
    %v455 = vld [vmem:[#allocation7 + $0x278] sm:$0xff]
    %v456 = vld [vmem:[#allocation7 + $0x280] sm:$0xff]
    %v457 = vld [vmem:[#allocation7 + $0x288] sm:$0xff]
    %v458 = vld [vmem:[#allocation7 + $0x290] sm:$0xff]
    %v459 = vld [vmem:[#allocation7 + $0x298] sm:$0xff]
    %v460 = vld [vmem:[#allocation7 + $0x2a0] sm:$0xff]
    %v461 = vld [vmem:[#allocation7 + $0x2a8] sm:$0xff]
    %v462 = vld [vmem:[#allocation7 + $0x2b0] sm:$0xff]
    %v463 = vld [vmem:[#allocation7 + $0x2b8] sm:$0xff]
    %v464 = vld [vmem:[#allocation7 + $0x2c0] sm:$0xff]
    %v465 = vld [vmem:[#allocation7 + $0x2c8] sm:$0xff]
    %v466 = vld [vmem:[#allocation7 + $0x2d0] sm:$0xff]
    %v467 = vld [vmem:[#allocation7 + $0x2d8] sm:$0xff]
    %v468 = vld [vmem:[#allocation7 + $0x2e0] sm:$0xff]
    %v469 = vld [vmem:[#allocation7 + $0x2e8] sm:$0xff]
    %v470 = vld [vmem:[#allocation7 + $0x2f0] sm:$0xff]
    %v471 = vld [vmem:[#allocation7 + $0x2f8] sm:$0xff]
    %v472 = vld [vmem:[#allocation7 + $0x300] sm:$0xff]
    %v473 = vld [vmem:[#allocation7 + $0x308] sm:$0xff]
    %v474 = vld [vmem:[#allocation7 + $0x310] sm:$0xff]
    %v475 = vld [vmem:[#allocation7 + $0x318] sm:$0xff]
    %v476 = vld [vmem:[#allocation7 + $0x320] sm:$0xff]
    %v477 = vld [vmem:[#allocation7 + $0x328] sm:$0xff]
    %v478 = vld [vmem:[#allocation7 + $0x330] sm:$0xff]
    %v479 = vld [vmem:[#allocation7 + $0x338] sm:$0xff]
    %v480 = vld [vmem:[#allocation7 + $0x340] sm:$0xff]
    %v481 = vld [vmem:[#allocation7 + $0x348] sm:$0xff]
    %v482 = vld [vmem:[#allocation7 + $0x350] sm:$0xff]
    %v483 = vld [vmem:[#allocation7 + $0x358] sm:$0xff]
    %v484 = vld [vmem:[#allocation7 + $0x360] sm:$0xff]
    %v485 = vld [vmem:[#allocation7 + $0x368] sm:$0xff]
    %v486 = vld [vmem:[#allocation7 + $0x370] sm:$0xff]
    %v487 = vld [vmem:[#allocation7 + $0x378] sm:$0xff]
    %v488 = vld [vmem:[#allocation7 + $0x380] sm:$0xff]
    %v489 = vld [vmem:[#allocation7 + $0x388] sm:$0xff]
    %v490 = vld [vmem:[#allocation7 + $0x390] sm:$0xff]
    %v491 = vld [vmem:[#allocation7 + $0x398] sm:$0xff]
    %v492 = vld [vmem:[#allocation7 + $0x3a0] sm:$0xff]
    %v493 = vld [vmem:[#allocation7 + $0x3a8] sm:$0xff]
    %v494 = vld [vmem:[#allocation7 + $0x3b0] sm:$0xff]
    %v495 = vld [vmem:[#allocation7 + $0x3b8] sm:$0xff]
    %v496 = vld [vmem:[#allocation7 + $0x3c0] sm:$0xff]
    %v497 = vld [vmem:[#allocation7 + $0x3c8] sm:$0xff]
    %v498 = vld [vmem:[#allocation7 + $0x3d0] sm:$0xff]
    %v499 = vld [vmem:[#allocation7 + $0x3d8] sm:$0xff]
    %v500 = vld [vmem:[#allocation7 + $0x3e0] sm:$0xff]
    %v501 = vld [vmem:[#allocation7 + $0x3e8] sm:$0xff]
    %v502 = vld [vmem:[#allocation7 + $0x3f0] sm:$0xff]
    %v503 = vld [vmem:[#allocation7 + $0x3f8] sm:$0xff]
    %v504 = vld [vmem:[#allocation7 + $0x400] sm:$0xff]
    %v505 = vld [vmem:[#allocation7 + $0x408] sm:$0xff]
    %v506 = vld [vmem:[#allocation7 + $0x410] sm:$0xff]
    %v507 = vld [vmem:[#allocation7 + $0x418] sm:$0xff]
    %v508 = vld [vmem:[#allocation7 + $0x420] sm:$0xff]
    %v509 = vld [vmem:[#allocation7 + $0x428] sm:$0xff]
    %v510 = vld [vmem:[#allocation7 + $0x430] sm:$0xff]
    %v511 = vld [vmem:[#allocation7 + $0x438] sm:$0xff]
    %v512 = vld [vmem:[#allocation7 + $0x440] sm:$0xff]
    %v513 = vld [vmem:[#allocation7 + $0x448] sm:$0xff]
    %v514 = vld [vmem:[#allocation7 + $0x450] sm:$0xff]
    %v515 = vld [vmem:[#allocation7 + $0x458] sm:$0xff]
    %v516 = vld [vmem:[#allocation7 + $0x460] sm:$0xff]
    %v517 = vld [vmem:[#allocation7 + $0x468] sm:$0xff]
    %v518 = vld [vmem:[#allocation7 + $0x470] sm:$0xff]
    %v519 = vld [vmem:[#allocation7 + $0x478] sm:$0xff]
    %v520 = vld [vmem:[#allocation7 + $0x480] sm:$0xff]
    %v521 = vld [vmem:[#allocation7 + $0x488] sm:$0xff]
    %v522 = vld [vmem:[#allocation7 + $0x490] sm:$0xff]
    %v523 = vld [vmem:[#allocation7 + $0x498] sm:$0xff]
    %v524 = vld [vmem:[#allocation7 + $0x4a0] sm:$0xff]
    %v525 = vld [vmem:[#allocation7 + $0x4a8] sm:$0xff]
    %v526 = vld [vmem:[#allocation7 + $0x4b0] sm:$0xff]
    %v527 = vld [vmem:[#allocation7 + $0x4b8] sm:$0xff]
    %v528 = vld [vmem:[#allocation7 + $0x4c0] sm:$0xff]
    %v529 = vld [vmem:[#allocation7 + $0x4c8] sm:$0xff]
    %v530 = vld [vmem:[#allocation7 + $0x4d0] sm:$0xff]
    %v531 = vld [vmem:[#allocation7 + $0x4d8] sm:$0xff]
    %v532 = vld [vmem:[#allocation7 + $0x4e0] sm:$0xff]
    %v533 = vld [vmem:[#allocation7 + $0x4e8] sm:$0xff]
    %v534 = vld [vmem:[#allocation7 + $0x4f0] sm:$0xff]
    %v535 = vld [vmem:[#allocation7 + $0x4f8] sm:$0xff]
    %v536 = vld [vmem:[#allocation7 + $0x500] sm:$0xff]
    %v537 = vld [vmem:[#allocation7 + $0x508] sm:$0xff]
    %v538 = vld [vmem:[#allocation7 + $0x510] sm:$0xff]
    %v539 = vld [vmem:[#allocation7 + $0x518] sm:$0xff]
    %v540 = vld [vmem:[#allocation7 + $0x520] sm:$0xff]
    %v541 = vld [vmem:[#allocation7 + $0x528] sm:$0xff]
    %v542 = vld [vmem:[#allocation7 + $0x530] sm:$0xff]
    %v543 = vld [vmem:[#allocation7 + $0x538] sm:$0xff]
    %v544 = vld [vmem:[#allocation7 + $0x540] sm:$0xff]
    %v545 = vld [vmem:[#allocation7 + $0x548] sm:$0xff]
    %v546 = vld [vmem:[#allocation7 + $0x550] sm:$0xff]
    %v547 = vld [vmem:[#allocation7 + $0x558] sm:$0xff]
    %v548 = vld [vmem:[#allocation7 + $0x560] sm:$0xff]
    %v549 = vld [vmem:[#allocation7 + $0x568] sm:$0xff]
    %v550 = vld [vmem:[#allocation7 + $0x570] sm:$0xff]
    %v551 = vld [vmem:[#allocation7 + $0x578] sm:$0xff]
    %v552 = vld [vmem:[#allocation7 + $0x580] sm:$0xff]
    %v553 = vld [vmem:[#allocation7 + $0x588] sm:$0xff]
    %v554 = vld [vmem:[#allocation7 + $0x590] sm:$0xff]
    %v555 = vld [vmem:[#allocation7 + $0x598] sm:$0xff]
    %v556 = vld [vmem:[#allocation7 + $0x5a0] sm:$0xff]
    %v557 = vld [vmem:[#allocation7 + $0x5a8] sm:$0xff]
    %v558 = vld [vmem:[#allocation7 + $0x5b0] sm:$0xff]
    %v559 = vld [vmem:[#allocation7 + $0x5b8] sm:$0xff]
    %v560 = vld [vmem:[#allocation7 + $0x5c0] sm:$0xff]
    %v561 = vld [vmem:[#allocation7 + $0x5c8] sm:$0xff]
    %v562 = vld [vmem:[#allocation7 + $0x5d0] sm:$0xff]
    %v563 = vld [vmem:[#allocation7 + $0x5d8] sm:$0xff]
    %v564 = vld [vmem:[#allocation7 + $0x5e0] sm:$0xff]
    %v565 = vld [vmem:[#allocation7 + $0x5e8] sm:$0xff]
    %v566 = vld [vmem:[#allocation7 + $0x5f0] sm:$0xff]
    %v567 = vld [vmem:[#allocation7 + $0x5f8] sm:$0xff]
    %v568 = vld [vmem:[#allocation7 + $0x600] sm:$0xff]
    %v569 = vld [vmem:[#allocation7 + $0x608] sm:$0xff]
    %v570 = vld [vmem:[#allocation7 + $0x610] sm:$0xff]
    %v571 = vld [vmem:[#allocation7 + $0x618] sm:$0xff]
    %v572 = vld [vmem:[#allocation7 + $0x620] sm:$0xff]
    %v573 = vld [vmem:[#allocation7 + $0x628] sm:$0xff]
    %v574 = vld [vmem:[#allocation7 + $0x630] sm:$0xff]
    %v575 = vld [vmem:[#allocation7 + $0x638] sm:$0xff]
    %v576 = vld [vmem:[#allocation7 + $0x640] sm:$0xff]
    %v577 = vld [vmem:[#allocation7 + $0x648] sm:$0xff]
    %v578 = vld [vmem:[#allocation7 + $0x650] sm:$0xff]
    %v579 = vld [vmem:[#allocation7 + $0x658] sm:$0xff]
    %v580 = vld [vmem:[#allocation7 + $0x660] sm:$0xff]
    %v581 = vld [vmem:[#allocation7 + $0x668] sm:$0xff]
    %v582 = vld [vmem:[#allocation7 + $0x670] sm:$0xff]
    %v583 = vld [vmem:[#allocation7 + $0x678] sm:$0xff]
    %v584 = vld [vmem:[#allocation7 + $0x680] sm:$0xff]
    %v585 = vld [vmem:[#allocation7 + $0x688] sm:$0xff]
    %v586 = vld [vmem:[#allocation7 + $0x690] sm:$0xff]
    %v587 = vld [vmem:[#allocation7 + $0x698] sm:$0xff]
    %v588 = vld [vmem:[#allocation7 + $0x6a0] sm:$0xff]
    %v589 = vld [vmem:[#allocation7 + $0x6a8] sm:$0xff]
    %v590 = vld [vmem:[#allocation7 + $0x6b0] sm:$0xff]
    %v591 = vld [vmem:[#allocation7 + $0x6b8] sm:$0xff]
    %v592 = vld [vmem:[#allocation7 + $0x6c0] sm:$0xff]
    %v593 = vld [vmem:[#allocation7 + $0x6c8] sm:$0xff]
    %v594 = vld [vmem:[#allocation7 + $0x6d0] sm:$0xff]
    %v595 = vld [vmem:[#allocation7 + $0x6d8] sm:$0xff]
    %v596 = vld [vmem:[#allocation7 + $0x6e0] sm:$0xff]
    %v597 = vld [vmem:[#allocation7 + $0x6e8] sm:$0xff]
    %v598 = vld [vmem:[#allocation7 + $0x6f0] sm:$0xff]
    %v599 = vld [vmem:[#allocation7 + $0x6f8] sm:$0xff]
    %v600 = vld [vmem:[#allocation7 + $0x700] sm:$0xff]
    %v601 = vld [vmem:[#allocation7 + $0x708] sm:$0xff]
    %v602 = vld [vmem:[#allocation7 + $0x710] sm:$0xff]
    %v603 = vld [vmem:[#allocation7 + $0x718] sm:$0xff]
    %v604 = vld [vmem:[#allocation7 + $0x720] sm:$0xff]
    %v605 = vld [vmem:[#allocation7 + $0x728] sm:$0xff]
    %v606 = vld [vmem:[#allocation7 + $0x730] sm:$0xff]
    %v607 = vld [vmem:[#allocation7 + $0x738] sm:$0xff]
    %v608 = vld [vmem:[#allocation7 + $0x740] sm:$0xff]
    %v609 = vld [vmem:[#allocation7 + $0x748] sm:$0xff]
    %v610 = vld [vmem:[#allocation7 + $0x750] sm:$0xff]
    %v611 = vld [vmem:[#allocation7 + $0x758] sm:$0xff]
    %v612 = vld [vmem:[#allocation7 + $0x760] sm:$0xff]
    %v613 = vld [vmem:[#allocation7 + $0x768] sm:$0xff]
    %v614 = vld [vmem:[#allocation7 + $0x770] sm:$0xff]
    %v615 = vld [vmem:[#allocation7 + $0x778] sm:$0xff]
    %v616 = vld [vmem:[#allocation7 + $0x780] sm:$0xff]
    %v617 = vld [vmem:[#allocation7 + $0x788] sm:$0xff]
    %v618 = vld [vmem:[#allocation7 + $0x790] sm:$0xff]
    %v619 = vld [vmem:[#allocation7 + $0x798] sm:$0xff]
    %v620 = vld [vmem:[#allocation7 + $0x7a0] sm:$0xff]
    %v621 = vld [vmem:[#allocation7 + $0x7a8] sm:$0xff]
    %v622 = vld [vmem:[#allocation7 + $0x7b0] sm:$0xff]
    %v623 = vld [vmem:[#allocation7 + $0x7b8] sm:$0xff]
    %v624 = vld [vmem:[#allocation7 + $0x7c0] sm:$0xff]
    %v625 = vld [vmem:[#allocation7 + $0x7c8] sm:$0xff]
    %v626 = vld [vmem:[#allocation7 + $0x7d0] sm:$0xff]
    %v627 = vld [vmem:[#allocation7 + $0x7d8] sm:$0xff]
    %v628 = vld [vmem:[#allocation7 + $0x7e0] sm:$0xff]
    %v629 = vld [vmem:[#allocation7 + $0x7e8] sm:$0xff]
    %v630 = vld [vmem:[#allocation7 + $0x7f0] sm:$0xff]
    %v631 = vld [vmem:[#allocation7 + $0x7f8] sm:$0xff]
    %v632 = vld [vmem:[%s4] sm:$0xf]
    %v633 = vxor.u32 %v241, 2147483648
    %v634 = vxor.u32 %v243, 2147483648
    %v635 = vxor.u32 %v342, 2147483648
    %v636 = vmul.f32 %v633, 1.442695
    %v637 = vpow.pop %v636
    %v638 = vmul.f32 %v634, 1.442695
    %v639 = vpow.pop %v638
    %v640 = vmul.f32 %v635, 1.442695
    %v641 = vpow.pop %v640
    %v642 = vadd.f32 %v637, 1.0
    %v643 = vadd.f32 %v639, 1.0
    %v644 = vadd.f32 %v641, 1.0
    %v645 = vrcp.pop %v642
    %v646 = vmul.f32 1.0, %v645
    %v647 = vrcp.pop %v643
    %v648 = vmul.f32 1.0, %v647
    %v649 = vrcp.pop %v644
    %v650 = vmul.f32 1.0, %v649
    %v651 = vtanh.pop %v344
    %v652 = vmul.f32 %v648, 0.0
    %v653 = vmul.f32 %v646, %v651
    %v654 = vadd.f32 %v652, %v653
    %v655 = vtanh.pop %v654
    %v656 = vmul.f32 %v650, %v655
    %657 = vmatprep.subr.mxu0 %v377
    %658 = vmatpush1.msra.mxu0 %v376
    %659 = vmatprep.subr.mxu0 %v385
    %660 = vmatpush1.msra.mxu0 %v384
    %661 = vmatprep.subr.mxu0 %v393
    %662 = vmatpush1.msra.mxu0 %v392
    %663 = vmatprep.subr.mxu0 %v401
    %664 = vmatpush1.msra.mxu0 %v400
    %665 = vmatprep.subr.mxu0 %v409
    %666 = vmatpush1.msra.mxu0 %v408
    %667 = vmatprep.subr.mxu0 %v417
    %668 = vmatpush1.msra.mxu0 %v416
    %669 = vmatprep.subr.mxu0 %v425
    %670 = vmatpush1.msra.mxu0 %v424
    %671 = vmatprep.subr.mxu0 %v433
    %672 = vmatpush1.msra.mxu0 %v432
    %673 = vmatprep.subr.mxu0 %v441
    %674 = vmatpush1.msra.mxu0 %v440
    %675 = vmatprep.subr.mxu0 %v449
    %676 = vmatpush1.msra.mxu0 %v448
    %677 = vmatprep.subr.mxu0 %v457
    %678 = vmatpush1.msra.mxu0 %v456
    %679 = vmatprep.subr.mxu0 %v465
    %680 = vmatpush1.msra.mxu0 %v464
    %681 = vmatprep.subr.mxu0 %v473
    %682 = vmatpush1.msra.mxu0 %v472
    %683 = vmatprep.subr.mxu0 %v481
    %684 = vmatpush1.msra.mxu0 %v480
    %685 = vmatprep.subr.mxu0 %v489
    %686 = vmatpush1.msra.mxu0 %v488
    %687 = vmatprep.subr.mxu0 %v497
    %688 = vmatpush1.msra.mxu0 %v496
    %689 = vmatprep.subr.mxu0 %v505
    %690 = vmatpush1.msra.mxu0 %v504
    %691 = vmatprep.subr.mxu0 %v513
    %692 = vmatpush1.msra.mxu0 %v512
    %693 = vmatprep.subr.mxu0 %v521
    %694 = vmatpush1.msra.mxu0 %v520
    %695 = vmatprep.subr.mxu0 %v529
    %696 = vmatpush1.msra.mxu0 %v528
    %697 = vmatprep.subr.mxu0 %v537
    %698 = vmatpush1.msra.mxu0 %v536
    %699 = vmatprep.subr.mxu0 %v545
    %700 = vmatpush1.msra.mxu0 %v544
    %701 = vmatprep.subr.mxu0 %v553
    %702 = vmatpush1.msra.mxu0 %v552
    %703 = vmatprep.subr.mxu0 %v561
    %704 = vmatpush1.msra.mxu0 %v560
    %705 = vmatprep.subr.mxu0 %v569
    %706 = vmatpush1.msra.mxu0 %v568
    %707 = vmatprep.subr.mxu0 %v577
    %708 = vmatpush1.msra.mxu0 %v576
    %709 = vmatprep.subr.mxu0 %v585
    %710 = vmatpush1.msra.mxu0 %v584
    %711 = vmatprep.subr.mxu0 %v593
    %712 = vmatpush1.msra.mxu0 %v592
    %713 = vmatprep.subr.mxu0 %v601
    %714 = vmatpush1.msra.mxu0 %v600
    %715 = vmatprep.subr.mxu0 %v609
    %716 = vmatpush1.msra.mxu0 %v608
    %717 = vmatprep.subr.mxu0 %v617
    %718 = vmatpush1.msra.mxu0 %v616
    %719 = vmatprep.subr.mxu0 %v625
    %720 = vmatpush1.msra.mxu0 %v624
    %721 = vmatprep.mubr.f32.mxu0 0.0
    %722 = vmatmul.mubr.f32.gmra.mrb[0].mxu0 %v656
    %v723 = vpop.f32.mrb[0].mxu0
    %v724 = vadd.f32 0.0, %v723
    %v725 = vpop.f32.mrb[0].mxu0
    %v726 = vadd.f32 0.0, %v725
    %727 = vdwg.mxu0
    %728 = vmatprep.subr.mxu0 %v379
    %729 = vmatpush1.msra.mxu0 %v378
    %730 = vmatprep.subr.mxu0 %v387
    %731 = vmatpush1.msra.mxu0 %v386
    %732 = vmatprep.subr.mxu0 %v395
    %733 = vmatpush1.msra.mxu0 %v394
    %734 = vmatprep.subr.mxu0 %v403
    %735 = vmatpush1.msra.mxu0 %v402
    %736 = vmatprep.subr.mxu0 %v411
    %737 = vmatpush1.msra.mxu0 %v410
    %738 = vmatprep.subr.mxu0 %v419
    %739 = vmatpush1.msra.mxu0 %v418
    %740 = vmatprep.subr.mxu0 %v427
    %741 = vmatpush1.msra.mxu0 %v426
    %742 = vmatprep.subr.mxu0 %v435
    %743 = vmatpush1.msra.mxu0 %v434
    %744 = vmatprep.subr.mxu0 %v443
    %745 = vmatpush1.msra.mxu0 %v442
    %746 = vmatprep.subr.mxu0 %v451
    %747 = vmatpush1.msra.mxu0 %v450
    %748 = vmatprep.subr.mxu0 %v459
    %749 = vmatpush1.msra.mxu0 %v458
    %750 = vmatprep.subr.mxu0 %v467
    %751 = vmatpush1.msra.mxu0 %v466
    %752 = vmatprep.subr.mxu0 %v475
    %753 = vmatpush1.msra.mxu0 %v474
    %754 = vmatprep.subr.mxu0 %v483
    %755 = vmatpush1.msra.mxu0 %v482
    %756 = vmatprep.subr.mxu0 %v491
    %757 = vmatpush1.msra.mxu0 %v490
    %758 = vmatprep.subr.mxu0 %v499
    %759 = vmatpush1.msra.mxu0 %v498
    %760 = vmatprep.subr.mxu0 %v507
    %761 = vmatpush1.msra.mxu0 %v506
    %762 = vmatprep.subr.mxu0 %v515
    %763 = vmatpush1.msra.mxu0 %v514
    %764 = vmatprep.subr.mxu0 %v523
    %765 = vmatpush1.msra.mxu0 %v522
    %766 = vmatprep.subr.mxu0 %v531
    %767 = vmatpush1.msra.mxu0 %v530
    %768 = vmatprep.subr.mxu0 %v539
    %769 = vmatpush1.msra.mxu0 %v538
    %770 = vmatprep.subr.mxu0 %v547
    %771 = vmatpush1.msra.mxu0 %v546
    %772 = vmatprep.subr.mxu0 %v555
    %773 = vmatpush1.msra.mxu0 %v554
    %774 = vmatprep.subr.mxu0 %v563
    %775 = vmatpush1.msra.mxu0 %v562
    %776 = vmatprep.subr.mxu0 %v571
    %777 = vmatpush1.msra.mxu0 %v570
    %778 = vmatprep.subr.mxu0 %v579
    %779 = vmatpush1.msra.mxu0 %v578
    %780 = vmatprep.subr.mxu0 %v587
    %781 = vmatpush1.msra.mxu0 %v586
    %782 = vmatprep.subr.mxu0 %v595
    %783 = vmatpush1.msra.mxu0 %v594
    %784 = vmatprep.subr.mxu0 %v603
    %785 = vmatpush1.msra.mxu0 %v602
    %786 = vmatprep.subr.mxu0 %v611
    %787 = vmatpush1.msra.mxu0 %v610
    %788 = vmatprep.subr.mxu0 %v619
    %789 = vmatpush1.msra.mxu0 %v618
    %790 = vmatprep.subr.mxu0 %v627
    %791 = vmatpush1.msra.mxu0 %v626
    %792 = vmatprep.mubr.f32.mxu0 0.0
    %793 = vmatmul.mubr.f32.gmra.mrb[0].mxu0 %v656
    %v794 = vpop.f32.mrb[0].mxu0
    %v795 = vadd.f32 0.0, %v794
    %v796 = vpop.f32.mrb[0].mxu0
    %v797 = vadd.f32 0.0, %v796
    %798 = vdwg.mxu0
    %799 = vmatprep.subr.mxu0 %v381
    %800 = vmatpush1.msra.mxu0 %v380
    %801 = vmatprep.subr.mxu0 %v389
    %802 = vmatpush1.msra.mxu0 %v388
    %803 = vmatprep.subr.mxu0 %v397
    %804 = vmatpush1.msra.mxu0 %v396
    %805 = vmatprep.subr.mxu0 %v405
    %806 = vmatpush1.msra.mxu0 %v404
    %807 = vmatprep.subr.mxu0 %v413
    %808 = vmatpush1.msra.mxu0 %v412
    %809 = vmatprep.subr.mxu0 %v421
    %810 = vmatpush1.msra.mxu0 %v420
    %811 = vmatprep.subr.mxu0 %v429
    %812 = vmatpush1.msra.mxu0 %v428
    %813 = vmatprep.subr.mxu0 %v437
    %814 = vmatpush1.msra.mxu0 %v436
    %815 = vmatprep.subr.mxu0 %v445
    %816 = vmatpush1.msra.mxu0 %v444
    %817 = vmatprep.subr.mxu0 %v453
    %818 = vmatpush1.msra.mxu0 %v452
    %819 = vmatprep.subr.mxu0 %v461
    %820 = vmatpush1.msra.mxu0 %v460
    %821 = vmatprep.subr.mxu0 %v469
    %822 = vmatpush1.msra.mxu0 %v468
    %823 = vmatprep.subr.mxu0 %v477
    %824 = vmatpush1.msra.mxu0 %v476
    %825 = vmatprep.subr.mxu0 %v485
    %826 = vmatpush1.msra.mxu0 %v484
    %827 = vmatprep.subr.mxu0 %v493
    %828 = vmatpush1.msra.mxu0 %v492
    %829 = vmatprep.subr.mxu0 %v501
    %830 = vmatpush1.msra.mxu0 %v500
    %831 = vmatprep.subr.mxu0 %v509
    %832 = vmatpush1.msra.mxu0 %v508
    %833 = vmatprep.subr.mxu0 %v517
    %834 = vmatpush1.msra.mxu0 %v516
    %835 = vmatprep.subr.mxu0 %v525
    %836 = vmatpush1.msra.mxu0 %v524
    %837 = vmatprep.subr.mxu0 %v533
    %838 = vmatpush1.msra.mxu0 %v532
    %839 = vmatprep.subr.mxu0 %v541
    %840 = vmatpush1.msra.mxu0 %v540
    %841 = vmatprep.subr.mxu0 %v549
    %842 = vmatpush1.msra.mxu0 %v548
    %843 = vmatprep.subr.mxu0 %v557
    %844 = vmatpush1.msra.mxu0 %v556
    %845 = vmatprep.subr.mxu0 %v565
    %846 = vmatpush1.msra.mxu0 %v564
    %847 = vmatprep.subr.mxu0 %v573
    %848 = vmatpush1.msra.mxu0 %v572
    %849 = vmatprep.subr.mxu0 %v581
    %850 = vmatpush1.msra.mxu0 %v580
    %851 = vmatprep.subr.mxu0 %v589
    %852 = vmatpush1.msra.mxu0 %v588
    %853 = vmatprep.subr.mxu0 %v597
    %854 = vmatpush1.msra.mxu0 %v596
    %855 = vmatprep.subr.mxu0 %v605
    %856 = vmatpush1.msra.mxu0 %v604
    %857 = vmatprep.subr.mxu0 %v613
    %858 = vmatpush1.msra.mxu0 %v612
    %859 = vmatprep.subr.mxu0 %v621
    %860 = vmatpush1.msra.mxu0 %v620
    %861 = vmatprep.subr.mxu0 %v629
    %862 = vmatpush1.msra.mxu0 %v628
    %863 = vmatprep.mubr.f32.mxu0 0.0
    %864 = vmatmul.mubr.f32.gmra.mrb[0].mxu0 %v656
    %v865 = vpop.f32.mrb[0].mxu0
    %v866 = vadd.f32 0.0, %v865
    %v867 = vpop.f32.mrb[0].mxu0
    %v868 = vadd.f32 0.0, %v867
    %869 = vdwg.mxu0
    %870 = vmatprep.subr.mxu0 %v383
    %871 = vmatpush1.msra.mxu0 %v382
    %872 = vmatprep.subr.mxu0 %v391
    %873 = vmatpush1.msra.mxu0 %v390
    %874 = vmatprep.subr.mxu0 %v399
    %875 = vmatpush1.msra.mxu0 %v398
    %876 = vmatprep.subr.mxu0 %v407
    %877 = vmatpush1.msra.mxu0 %v406
    %878 = vmatprep.subr.mxu0 %v415
    %879 = vmatpush1.msra.mxu0 %v414
    %880 = vmatprep.subr.mxu0 %v423
    %881 = vmatpush1.msra.mxu0 %v422
    %882 = vmatprep.subr.mxu0 %v431
    %883 = vmatpush1.msra.mxu0 %v430
    %884 = vmatprep.subr.mxu0 %v439
    %885 = vmatpush1.msra.mxu0 %v438
    %886 = vmatprep.subr.mxu0 %v447
    %887 = vmatpush1.msra.mxu0 %v446
    %888 = vmatprep.subr.mxu0 %v455
    %889 = vmatpush1.msra.mxu0 %v454
    %890 = vmatprep.subr.mxu0 %v463
    %891 = vmatpush1.msra.mxu0 %v462
    %892 = vmatprep.subr.mxu0 %v471
    %893 = vmatpush1.msra.mxu0 %v470
    %894 = vmatprep.subr.mxu0 %v479
    %895 = vmatpush1.msra.mxu0 %v478
    %896 = vmatprep.subr.mxu0 %v487
    %897 = vmatpush1.msra.mxu0 %v486
    %898 = vmatprep.subr.mxu0 %v495
    %899 = vmatpush1.msra.mxu0 %v494
    %900 = vmatprep.subr.mxu0 %v503
    %901 = vmatpush1.msra.mxu0 %v502
    %902 = vmatprep.subr.mxu0 %v511
    %903 = vmatpush1.msra.mxu0 %v510
    %904 = vmatprep.subr.mxu0 %v519
    %905 = vmatpush1.msra.mxu0 %v518
    %906 = vmatprep.subr.mxu0 %v527
    %907 = vmatpush1.msra.mxu0 %v526
    %908 = vmatprep.subr.mxu0 %v535
    %909 = vmatpush1.msra.mxu0 %v534
    %910 = vmatprep.subr.mxu0 %v543
    %911 = vmatpush1.msra.mxu0 %v542
    %912 = vmatprep.subr.mxu0 %v551
    %913 = vmatpush1.msra.mxu0 %v550
    %914 = vmatprep.subr.mxu0 %v559
    %915 = vmatpush1.msra.mxu0 %v558
    %916 = vmatprep.subr.mxu0 %v567
    %917 = vmatpush1.msra.mxu0 %v566
    %918 = vmatprep.subr.mxu0 %v575
    %919 = vmatpush1.msra.mxu0 %v574
    %920 = vmatprep.subr.mxu0 %v583
    %921 = vmatpush1.msra.mxu0 %v582
    %922 = vmatprep.subr.mxu0 %v591
    %923 = vmatpush1.msra.mxu0 %v590
    %924 = vmatprep.subr.mxu0 %v599
    %925 = vmatpush1.msra.mxu0 %v598
    %926 = vmatprep.subr.mxu0 %v607
    %927 = vmatpush1.msra.mxu0 %v606
    %928 = vmatprep.subr.mxu0 %v615
    %929 = vmatpush1.msra.mxu0 %v614
    %930 = vmatprep.subr.mxu0 %v623
    %931 = vmatpush1.msra.mxu0 %v622
    %932 = vmatprep.subr.mxu0 %v631
    %933 = vmatpush1.msra.mxu0 %v630
    %934 = vmatprep.mubr.f32.mxu0 0.0
    %935 = vmatmul.mubr.f32.gmra.mrb[0].mxu0 %v656
    %v936 = vpop.f32.mrb[0].mxu0
    %v937 = vadd.f32 0.0, %v936
    %v938 = vpop.f32.mrb[0].mxu0
    %v939 = vadd.f32 0.0, %v938
    %940 = vdwg.mxu0
    %v942 = vlaneseq
    %v943 = vshrl.u32 %v942, 7
    %v944 = vsub.s32 0, %v943
    %v945 = vrot.slane %v632, %v944
    %v946 = vlaneseq
    %v947 = vshrl.u32 %v946, 7
    %v948 = vsub.s32 1, %v947
    %v949 = vrot.slane %v632, %v948
    %v950 = vlaneseq
    %v951 = vshrl.u32 %v950, 7
    %v952 = vsub.s32 2, %v951
    %v953 = vrot.slane %v632, %v952
    %v954 = vlaneseq
    %v955 = vshrl.u32 %v954, 7
    %v956 = vsub.s32 3, %v955
    %v957 = vrot.slane %v632, %v956
    %v962 = vadd.f32 %v724, %v945
    %v963 = vadd.f32 %v726, %v949
    %v964 = vadd.f32 %v795, %v953
    %v965 = vadd.f32 %v797, %v957
    %v966 = vxor.u32 %v962, 2147483648
    %v967 = vxor.u32 %v963, 2147483648
    %v968 = vxor.u32 %v964, 2147483648
    %v969 = vmul.f32 %v966, 1.442695
    %v970 = vpow.pop %v969
    %v971 = vmul.f32 %v967, 1.442695
    %v972 = vpow.pop %v971
    %v973 = vmul.f32 %v968, 1.442695
    %v974 = vpow.pop %v973
    %v975 = vadd.f32 %v970, 1.0
    %v976 = vadd.f32 %v972, 1.0
    %v977 = vadd.f32 %v974, 1.0
    %v978 = vrcp.pop %v975
    %v979 = vmul.f32 1.0, %v978
    %v980 = vrcp.pop %v976
    %v981 = vmul.f32 1.0, %v980
    %v982 = vrcp.pop %v977
    %v983 = vmul.f32 1.0, %v982
    %v984 = vtanh.pop %v965
    %v985 = vmul.f32 %v981, 0.0
    %v986 = vmul.f32 %v979, %v984
    %v987 = vadd.f32 %v985, %v986
    %v988 = vtanh.pop %v987
    %v989 = vmul.f32 %v983, %v988
    %v990 = vadd.f32 %v247, %v866
    %v991 = vadd.f32 %v249, %v868
    %v992 = vadd.f32 %v348, %v937
    %v993 = vadd.f32 %v350, %v939
    %v994 = vxor.u32 %v990, 2147483648
    %v995 = vxor.u32 %v991, 2147483648
    %v996 = vxor.u32 %v992, 2147483648
    %v997 = vmul.f32 %v994, 1.442695
    %v998 = vpow.pop %v997
    %v999 = vmul.f32 %v995, 1.442695
    %v1000 = vpow.pop %v999
    %v1001 = vmul.f32 %v996, 1.442695
    %v1002 = vpow.pop %v1001
    %v1003 = vadd.f32 %v998, 1.0
    %v1004 = vadd.f32 %v1000, 1.0
    %v1005 = vadd.f32 %v1002, 1.0
    %v1006 = vrcp.pop %v1003
    %v1007 = vmul.f32 1.0, %v1006
    %v1008 = vrcp.pop %v1004
    %v1009 = vmul.f32 1.0, %v1008
    %v1010 = vrcp.pop %v1005
    %v1011 = vmul.f32 1.0, %v1010
    %v1012 = vtanh.pop %v993
    %v1013 = vmul.f32 %v1009, %v654
    %v1014 = vmul.f32 %v1007, %v1012
    %v1015 = vadd.f32 %v1013, %v1014
    %v1016 = vtanh.pop %v1015
    %v1017 = vmul.f32 %v1011, %v1016
    %1018 = vmatprep.subr.mxu0 %v377
    %1019 = vmatpush1.msra.mxu0 %v376
    %1020 = vmatprep.subr.mxu0 %v385
    %1021 = vmatpush1.msra.mxu0 %v384
    %1022 = vmatprep.subr.mxu0 %v393
    %1023 = vmatpush1.msra.mxu0 %v392
    %1024 = vmatprep.subr.mxu0 %v401
    %1025 = vmatpush1.msra.mxu0 %v400
    %1026 = vmatprep.subr.mxu0 %v409
    %1027 = vmatpush1.msra.mxu0 %v408
    %1028 = vmatprep.subr.mxu0 %v417
    %1029 = vmatpush1.msra.mxu0 %v416
    %1030 = vmatprep.subr.mxu0 %v425
    %1031 = vmatpush1.msra.mxu0 %v424
    %1032 = vmatprep.subr.mxu0 %v433
    %1033 = vmatpush1.msra.mxu0 %v432
    %1034 = vmatprep.subr.mxu0 %v441
    %1035 = vmatpush1.msra.mxu0 %v440
    %1036 = vmatprep.subr.mxu0 %v449
    %1037 = vmatpush1.msra.mxu0 %v448
    %1038 = vmatprep.subr.mxu0 %v457
    %1039 = vmatpush1.msra.mxu0 %v456
    %1040 = vmatprep.subr.mxu0 %v465
    %1041 = vmatpush1.msra.mxu0 %v464
    %1042 = vmatprep.subr.mxu0 %v473
    %1043 = vmatpush1.msra.mxu0 %v472
    %1044 = vmatprep.subr.mxu0 %v481
    %1045 = vmatpush1.msra.mxu0 %v480
    %1046 = vmatprep.subr.mxu0 %v489
    %1047 = vmatpush1.msra.mxu0 %v488
    %1048 = vmatprep.subr.mxu0 %v497
    %1049 = vmatpush1.msra.mxu0 %v496
    %1050 = vmatprep.subr.mxu0 %v505
    %1051 = vmatpush1.msra.mxu0 %v504
    %1052 = vmatprep.subr.mxu0 %v513
    %1053 = vmatpush1.msra.mxu0 %v512
    %1054 = vmatprep.subr.mxu0 %v521
    %1055 = vmatpush1.msra.mxu0 %v520
    %1056 = vmatprep.subr.mxu0 %v529
    %1057 = vmatpush1.msra.mxu0 %v528
    %1058 = vmatprep.subr.mxu0 %v537
    %1059 = vmatpush1.msra.mxu0 %v536
    %1060 = vmatprep.subr.mxu0 %v545
    %1061 = vmatpush1.msra.mxu0 %v544
    %1062 = vmatprep.subr.mxu0 %v553
    %1063 = vmatpush1.msra.mxu0 %v552
    %1064 = vmatprep.subr.mxu0 %v561
    %1065 = vmatpush1.msra.mxu0 %v560
    %1066 = vmatprep.subr.mxu0 %v569
    %1067 = vmatpush1.msra.mxu0 %v568
    %1068 = vmatprep.subr.mxu0 %v577
    %1069 = vmatpush1.msra.mxu0 %v576
    %1070 = vmatprep.subr.mxu0 %v585
    %1071 = vmatpush1.msra.mxu0 %v584
    %1072 = vmatprep.subr.mxu0 %v593
    %1073 = vmatpush1.msra.mxu0 %v592
    %1074 = vmatprep.subr.mxu0 %v601
    %1075 = vmatpush1.msra.mxu0 %v600
    %1076 = vmatprep.subr.mxu0 %v609
    %1077 = vmatpush1.msra.mxu0 %v608
    %1078 = vmatprep.subr.mxu0 %v617
    %1079 = vmatpush1.msra.mxu0 %v616
    %1080 = vmatprep.subr.mxu0 %v625
    %1081 = vmatpush1.msra.mxu0 %v624
    %1082 = vmatprep.mubr.f32.mxu0 %v989
    %1083 = vmatmul.mubr.f32.gmra.mrb[0].mxu0 %v1017
    %v1084 = vpop.f32.mrb[0].mxu0
    %v1085 = vadd.f32 0.0, %v1084
    %v1086 = vpop.f32.mrb[0].mxu0
    %v1087 = vadd.f32 0.0, %v1086
    %1088 = vdwg.mxu0
    %1089 = vmatprep.subr.mxu0 %v379
    %1090 = vmatpush1.msra.mxu0 %v378
    %1091 = vmatprep.subr.mxu0 %v387
    %1092 = vmatpush1.msra.mxu0 %v386
    %1093 = vmatprep.subr.mxu0 %v395
    %1094 = vmatpush1.msra.mxu0 %v394
    %1095 = vmatprep.subr.mxu0 %v403
    %1096 = vmatpush1.msra.mxu0 %v402
    %1097 = vmatprep.subr.mxu0 %v411
    %1098 = vmatpush1.msra.mxu0 %v410
    %1099 = vmatprep.subr.mxu0 %v419
    %1100 = vmatpush1.msra.mxu0 %v418
    %1101 = vmatprep.subr.mxu0 %v427
    %1102 = vmatpush1.msra.mxu0 %v426
    %1103 = vmatprep.subr.mxu0 %v435
    %1104 = vmatpush1.msra.mxu0 %v434
    %1105 = vmatprep.subr.mxu0 %v443
    %1106 = vmatpush1.msra.mxu0 %v442
    %1107 = vmatprep.subr.mxu0 %v451
    %1108 = vmatpush1.msra.mxu0 %v450
    %1109 = vmatprep.subr.mxu0 %v459
    %1110 = vmatpush1.msra.mxu0 %v458
    %1111 = vmatprep.subr.mxu0 %v467
    %1112 = vmatpush1.msra.mxu0 %v466
    %1113 = vmatprep.subr.mxu0 %v475
    %1114 = vmatpush1.msra.mxu0 %v474
    %1115 = vmatprep.subr.mxu0 %v483
    %1116 = vmatpush1.msra.mxu0 %v482
    %1117 = vmatprep.subr.mxu0 %v491
    %1118 = vmatpush1.msra.mxu0 %v490
    %1119 = vmatprep.subr.mxu0 %v499
    %1120 = vmatpush1.msra.mxu0 %v498
    %1121 = vmatprep.subr.mxu0 %v507
    %1122 = vmatpush1.msra.mxu0 %v506
    %1123 = vmatprep.subr.mxu0 %v515
    %1124 = vmatpush1.msra.mxu0 %v514
    %1125 = vmatprep.subr.mxu0 %v523
    %1126 = vmatpush1.msra.mxu0 %v522
    %1127 = vmatprep.subr.mxu0 %v531
    %1128 = vmatpush1.msra.mxu0 %v530
    %1129 = vmatprep.subr.mxu0 %v539
    %1130 = vmatpush1.msra.mxu0 %v538
    %1131 = vmatprep.subr.mxu0 %v547
    %1132 = vmatpush1.msra.mxu0 %v546
    %1133 = vmatprep.subr.mxu0 %v555
    %1134 = vmatpush1.msra.mxu0 %v554
    %1135 = vmatprep.subr.mxu0 %v563
    %1136 = vmatpush1.msra.mxu0 %v562
    %1137 = vmatprep.subr.mxu0 %v571
    %1138 = vmatpush1.msra.mxu0 %v570
    %1139 = vmatprep.subr.mxu0 %v579
    %1140 = vmatpush1.msra.mxu0 %v578
    %1141 = vmatprep.subr.mxu0 %v587
    %1142 = vmatpush1.msra.mxu0 %v586
    %1143 = vmatprep.subr.mxu0 %v595
    %1144 = vmatpush1.msra.mxu0 %v594
    %1145 = vmatprep.subr.mxu0 %v603
    %1146 = vmatpush1.msra.mxu0 %v602
    %1147 = vmatprep.subr.mxu0 %v611
    %1148 = vmatpush1.msra.mxu0 %v610
    %1149 = vmatprep.subr.mxu0 %v619
    %1150 = vmatpush1.msra.mxu0 %v618
    %1151 = vmatprep.subr.mxu0 %v627
    %1152 = vmatpush1.msra.mxu0 %v626
    %1153 = vmatprep.mubr.f32.mxu0 %v989
    %1154 = vmatmul.mubr.f32.gmra.mrb[0].mxu0 %v1017
    %v1155 = vpop.f32.mrb[0].mxu0
    %v1156 = vadd.f32 0.0, %v1155
    %v1157 = vpop.f32.mrb[0].mxu0
    %v1158 = vadd.f32 0.0, %v1157
    %1159 = vdwg.mxu0
    %1160 = vmatprep.subr.mxu0 %v381
    %1161 = vmatpush1.msra.mxu0 %v380
    %1162 = vmatprep.subr.mxu0 %v389
    %1163 = vmatpush1.msra.mxu0 %v388
    %1164 = vmatprep.subr.mxu0 %v397
    %1165 = vmatpush1.msra.mxu0 %v396
    %1166 = vmatprep.subr.mxu0 %v405
    %1167 = vmatpush1.msra.mxu0 %v404
    %1168 = vmatprep.subr.mxu0 %v413
    %1169 = vmatpush1.msra.mxu0 %v412
    %1170 = vmatprep.subr.mxu0 %v421
    %1171 = vmatpush1.msra.mxu0 %v420
    %1172 = vmatprep.subr.mxu0 %v429
    %1173 = vmatpush1.msra.mxu0 %v428
    %1174 = vmatprep.subr.mxu0 %v437
    %1175 = vmatpush1.msra.mxu0 %v436
    %1176 = vmatprep.subr.mxu0 %v445
    %1177 = vmatpush1.msra.mxu0 %v444
    %1178 = vmatprep.subr.mxu0 %v453
    %1179 = vmatpush1.msra.mxu0 %v452
    %1180 = vmatprep.subr.mxu0 %v461
    %1181 = vmatpush1.msra.mxu0 %v460
    %1182 = vmatprep.subr.mxu0 %v469
    %1183 = vmatpush1.msra.mxu0 %v468
    %1184 = vmatprep.subr.mxu0 %v477
    %1185 = vmatpush1.msra.mxu0 %v476
    %1186 = vmatprep.subr.mxu0 %v485
    %1187 = vmatpush1.msra.mxu0 %v484
    %1188 = vmatprep.subr.mxu0 %v493
    %1189 = vmatpush1.msra.mxu0 %v492
    %1190 = vmatprep.subr.mxu0 %v501
    %1191 = vmatpush1.msra.mxu0 %v500
    %1192 = vmatprep.subr.mxu0 %v509
    %1193 = vmatpush1.msra.mxu0 %v508
    %1194 = vmatprep.subr.mxu0 %v517
    %1195 = vmatpush1.msra.mxu0 %v516
    %1196 = vmatprep.subr.mxu0 %v525
    %1197 = vmatpush1.msra.mxu0 %v524
    %1198 = vmatprep.subr.mxu0 %v533
    %1199 = vmatpush1.msra.mxu0 %v532
    %1200 = vmatprep.subr.mxu0 %v541
    %1201 = vmatpush1.msra.mxu0 %v540
    %1202 = vmatprep.subr.mxu0 %v549
    %1203 = vmatpush1.msra.mxu0 %v548
    %1204 = vmatprep.subr.mxu0 %v557
    %1205 = vmatpush1.msra.mxu0 %v556
    %1206 = vmatprep.subr.mxu0 %v565
    %1207 = vmatpush1.msra.mxu0 %v564
    %1208 = vmatprep.subr.mxu0 %v573
    %1209 = vmatpush1.msra.mxu0 %v572
    %1210 = vmatprep.subr.mxu0 %v581
    %1211 = vmatpush1.msra.mxu0 %v580
    %1212 = vmatprep.subr.mxu0 %v589
    %1213 = vmatpush1.msra.mxu0 %v588
    %1214 = vmatprep.subr.mxu0 %v597
    %1215 = vmatpush1.msra.mxu0 %v596
    %1216 = vmatprep.subr.mxu0 %v605
    %1217 = vmatpush1.msra.mxu0 %v604
    %1218 = vmatprep.subr.mxu0 %v613
    %1219 = vmatpush1.msra.mxu0 %v612
    %1220 = vmatprep.subr.mxu0 %v621
    %1221 = vmatpush1.msra.mxu0 %v620
    %1222 = vmatprep.subr.mxu0 %v629
    %1223 = vmatpush1.msra.mxu0 %v628
    %1224 = vmatprep.mubr.f32.mxu0 %v989
    %1225 = vmatmul.mubr.f32.gmra.mrb[0].mxu0 %v1017
    %v1226 = vpop.f32.mrb[0].mxu0
    %v1227 = vadd.f32 0.0, %v1226
    %v1228 = vpop.f32.mrb[0].mxu0
    %v1229 = vadd.f32 0.0, %v1228
    %1230 = vdwg.mxu0
    %1231 = vmatprep.subr.mxu0 %v383
    %1232 = vmatpush1.msra.mxu0 %v382
    %1233 = vmatprep.subr.mxu0 %v391
    %1234 = vmatpush1.msra.mxu0 %v390
    %1235 = vmatprep.subr.mxu0 %v399
    %1236 = vmatpush1.msra.mxu0 %v398
    %1237 = vmatprep.subr.mxu0 %v407
    %1238 = vmatpush1.msra.mxu0 %v406
    %1239 = vmatprep.subr.mxu0 %v415
    %1240 = vmatpush1.msra.mxu0 %v414
    %1241 = vmatprep.subr.mxu0 %v423
    %1242 = vmatpush1.msra.mxu0 %v422
    %1243 = vmatprep.subr.mxu0 %v431
    %1244 = vmatpush1.msra.mxu0 %v430
    %1245 = vmatprep.subr.mxu0 %v439
    %1246 = vmatpush1.msra.mxu0 %v438
    %1247 = vmatprep.subr.mxu0 %v447
    %1248 = vmatpush1.msra.mxu0 %v446
    %1249 = vmatprep.subr.mxu0 %v455
    %1250 = vmatpush1.msra.mxu0 %v454
    %1251 = vmatprep.subr.mxu0 %v463
    %1252 = vmatpush1.msra.mxu0 %v462
    %1253 = vmatprep.subr.mxu0 %v471
    %1254 = vmatpush1.msra.mxu0 %v470
    %1255 = vmatprep.subr.mxu0 %v479
    %1256 = vmatpush1.msra.mxu0 %v478
    %1257 = vmatprep.subr.mxu0 %v487
    %1258 = vmatpush1.msra.mxu0 %v486
    %1259 = vmatprep.subr.mxu0 %v495
    %1260 = vmatpush1.msra.mxu0 %v494
    %1261 = vmatprep.subr.mxu0 %v503
    %1262 = vmatpush1.msra.mxu0 %v502
    %1263 = vmatprep.subr.mxu0 %v511
    %1264 = vmatpush1.msra.mxu0 %v510
    %1265 = vmatprep.subr.mxu0 %v519
    %1266 = vmatpush1.msra.mxu0 %v518
    %1267 = vmatprep.subr.mxu0 %v527
    %1268 = vmatpush1.msra.mxu0 %v526
    %1269 = vmatprep.subr.mxu0 %v535
    %1270 = vmatpush1.msra.mxu0 %v534
    %1271 = vmatprep.subr.mxu0 %v543
    %1272 = vmatpush1.msra.mxu0 %v542
    %1273 = vmatprep.subr.mxu0 %v551
    %1274 = vmatpush1.msra.mxu0 %v550
    %1275 = vmatprep.subr.mxu0 %v559
    %1276 = vmatpush1.msra.mxu0 %v558
    %1277 = vmatprep.subr.mxu0 %v567
    %1278 = vmatpush1.msra.mxu0 %v566
    %1279 = vmatprep.subr.mxu0 %v575
    %1280 = vmatpush1.msra.mxu0 %v574
    %1281 = vmatprep.subr.mxu0 %v583
    %1282 = vmatpush1.msra.mxu0 %v582
    %1283 = vmatprep.subr.mxu0 %v591
    %1284 = vmatpush1.msra.mxu0 %v590
    %1285 = vmatprep.subr.mxu0 %v599
    %1286 = vmatpush1.msra.mxu0 %v598
    %1287 = vmatprep.subr.mxu0 %v607
    %1288 = vmatpush1.msra.mxu0 %v606
    %1289 = vmatprep.subr.mxu0 %v615
    %1290 = vmatpush1.msra.mxu0 %v614
    %1291 = vmatprep.subr.mxu0 %v623
    %1292 = vmatpush1.msra.mxu0 %v622
    %1293 = vmatprep.subr.mxu0 %v631
    %1294 = vmatpush1.msra.mxu0 %v630
    %1295 = vmatprep.mubr.f32.mxu0 %v989
    %1296 = vmatmul.mubr.f32.gmra.mrb[0].mxu0 %v1017
    %v1297 = vpop.f32.mrb[0].mxu0
    %v1298 = vadd.f32 0.0, %v1297
    %v1299 = vpop.f32.mrb[0].mxu0
    %v1300 = vadd.f32 0.0, %v1299
    %1301 = vdwg.mxu0
    %v1302 = vadd.f32 %v1085, %v945
    %v1303 = vadd.f32 %v1087, %v949
    %v1304 = vadd.f32 %v1156, %v953
    %v1305 = vadd.f32 %v1158, %v957
    %v1306 = vxor.u32 %v1302, 2147483648
    %v1307 = vxor.u32 %v1303, 2147483648
    %v1308 = vxor.u32 %v1304, 2147483648
    %v1309 = vmul.f32 %v1306, 1.442695
    %v1310 = vpow.pop %v1309
    %v1311 = vmul.f32 %v1307, 1.442695
    %v1312 = vpow.pop %v1311
    %v1313 = vmul.f32 %v1308, 1.442695
    %v1314 = vpow.pop %v1313
    %v1315 = vadd.f32 %v1310, 1.0
    %v1316 = vadd.f32 %v1312, 1.0
    %v1317 = vadd.f32 %v1314, 1.0
    %v1318 = vrcp.pop %v1315
    %v1319 = vmul.f32 1.0, %v1318
    %v1320 = vrcp.pop %v1316
    %v1321 = vmul.f32 1.0, %v1320
    %v1322 = vrcp.pop %v1317
    %v1323 = vmul.f32 1.0, %v1322
    %v1324 = vtanh.pop %v1305
    %v1325 = vmul.f32 %v1321, %v987
    %v1326 = vmul.f32 %v1319, %v1324
    %v1327 = vadd.f32 %v1325, %v1326
    %v1328 = vtanh.pop %v1327
    %v1329 = vmul.f32 %v1323, %v1328
    %v1330 = vadd.f32 %v253, %v1227
    %v1331 = vadd.f32 %v255, %v1229
    %v1332 = vadd.f32 %v354, %v1298
    %v1333 = vadd.f32 %v356, %v1300
    %v1334 = vxor.u32 %v1330, 2147483648
    %v1335 = vxor.u32 %v1331, 2147483648
    %v1336 = vxor.u32 %v1332, 2147483648
    %v1337 = vmul.f32 %v1334, 1.442695
    %v1338 = vpow.pop %v1337
    %v1339 = vmul.f32 %v1335, 1.442695
    %v1340 = vpow.pop %v1339
    %v1341 = vmul.f32 %v1336, 1.442695
    %v1342 = vpow.pop %v1341
    %v1343 = vadd.f32 %v1338, 1.0
    %v1344 = vadd.f32 %v1340, 1.0
    %v1345 = vadd.f32 %v1342, 1.0
    %v1346 = vrcp.pop %v1343
    %v1347 = vmul.f32 1.0, %v1346
    %v1348 = vrcp.pop %v1344
    %v1349 = vmul.f32 1.0, %v1348
    %v1350 = vrcp.pop %v1345
    %v1351 = vmul.f32 1.0, %v1350
    %v1352 = vtanh.pop %v1333
    %v1353 = vmul.f32 %v1349, %v1015
    %v1354 = vmul.f32 %v1347, %v1352
    %v1355 = vadd.f32 %v1353, %v1354
    %v1356 = vtanh.pop %v1355
    %v1357 = vmul.f32 %v1351, %v1356
    %1358 = vmatprep.subr.mxu0 %v377
    %1359 = vmatpush1.msra.mxu0 %v376
    %1360 = vmatprep.subr.mxu0 %v385
    %1361 = vmatpush1.msra.mxu0 %v384
    %1362 = vmatprep.subr.mxu0 %v393
    %1363 = vmatpush1.msra.mxu0 %v392
    %1364 = vmatprep.subr.mxu0 %v401
    %1365 = vmatpush1.msra.mxu0 %v400
    %1366 = vmatprep.subr.mxu0 %v409
    %1367 = vmatpush1.msra.mxu0 %v408
    %1368 = vmatprep.subr.mxu0 %v417
    %1369 = vmatpush1.msra.mxu0 %v416
    %1370 = vmatprep.subr.mxu0 %v425
    %1371 = vmatpush1.msra.mxu0 %v424
    %1372 = vmatprep.subr.mxu0 %v433
    %1373 = vmatpush1.msra.mxu0 %v432
    %1374 = vmatprep.subr.mxu0 %v441
    %1375 = vmatpush1.msra.mxu0 %v440
    %1376 = vmatprep.subr.mxu0 %v449
    %1377 = vmatpush1.msra.mxu0 %v448
    %1378 = vmatprep.subr.mxu0 %v457
    %1379 = vmatpush1.msra.mxu0 %v456
    %1380 = vmatprep.subr.mxu0 %v465
    %1381 = vmatpush1.msra.mxu0 %v464
    %1382 = vmatprep.subr.mxu0 %v473
    %1383 = vmatpush1.msra.mxu0 %v472
    %1384 = vmatprep.subr.mxu0 %v481
    %1385 = vmatpush1.msra.mxu0 %v480
    %1386 = vmatprep.subr.mxu0 %v489
    %1387 = vmatpush1.msra.mxu0 %v488
    %1388 = vmatprep.subr.mxu0 %v497
    %1389 = vmatpush1.msra.mxu0 %v496
    %1390 = vmatprep.subr.mxu0 %v505
    %1391 = vmatpush1.msra.mxu0 %v504
    %1392 = vmatprep.subr.mxu0 %v513
    %1393 = vmatpush1.msra.mxu0 %v512
    %1394 = vmatprep.subr.mxu0 %v521
    %1395 = vmatpush1.msra.mxu0 %v520
    %1396 = vmatprep.subr.mxu0 %v529
    %1397 = vmatpush1.msra.mxu0 %v528
    %1398 = vmatprep.subr.mxu0 %v537
    %1399 = vmatpush1.msra.mxu0 %v536
    %1400 = vmatprep.subr.mxu0 %v545
    %1401 = vmatpush1.msra.mxu0 %v544
    %1402 = vmatprep.subr.mxu0 %v553
    %1403 = vmatpush1.msra.mxu0 %v552
    %1404 = vmatprep.subr.mxu0 %v561
    %1405 = vmatpush1.msra.mxu0 %v560
    %1406 = vmatprep.subr.mxu0 %v569
    %1407 = vmatpush1.msra.mxu0 %v568
    %1408 = vmatprep.subr.mxu0 %v577
    %1409 = vmatpush1.msra.mxu0 %v576
    %1410 = vmatprep.subr.mxu0 %v585
    %1411 = vmatpush1.msra.mxu0 %v584
    %1412 = vmatprep.subr.mxu0 %v593
    %1413 = vmatpush1.msra.mxu0 %v592
    %1414 = vmatprep.subr.mxu0 %v601
    %1415 = vmatpush1.msra.mxu0 %v600
    %1416 = vmatprep.subr.mxu0 %v609
    %1417 = vmatpush1.msra.mxu0 %v608
    %1418 = vmatprep.subr.mxu0 %v617
    %1419 = vmatpush1.msra.mxu0 %v616
    %1420 = vmatprep.subr.mxu0 %v625
    %1421 = vmatpush1.msra.mxu0 %v624
    %1422 = vmatprep.mubr.f32.mxu0 %v1329
    %1423 = vmatmul.mubr.f32.gmra.mrb[0].mxu0 %v1357
    %v1424 = vpop.f32.mrb[0].mxu0
    %v1425 = vadd.f32 0.0, %v1424
    %v1426 = vpop.f32.mrb[0].mxu0
    %v1427 = vadd.f32 0.0, %v1426
    %1428 = vdwg.mxu0
    %1429 = vmatprep.subr.mxu0 %v379
    %1430 = vmatpush1.msra.mxu0 %v378
    %1431 = vmatprep.subr.mxu0 %v387
    %1432 = vmatpush1.msra.mxu0 %v386
    %1433 = vmatprep.subr.mxu0 %v395
    %1434 = vmatpush1.msra.mxu0 %v394
    %1435 = vmatprep.subr.mxu0 %v403
    %1436 = vmatpush1.msra.mxu0 %v402
    %1437 = vmatprep.subr.mxu0 %v411
    %1438 = vmatpush1.msra.mxu0 %v410
    %1439 = vmatprep.subr.mxu0 %v419
    %1440 = vmatpush1.msra.mxu0 %v418
    %1441 = vmatprep.subr.mxu0 %v427
    %1442 = vmatpush1.msra.mxu0 %v426
    %1443 = vmatprep.subr.mxu0 %v435
    %1444 = vmatpush1.msra.mxu0 %v434
    %1445 = vmatprep.subr.mxu0 %v443
    %1446 = vmatpush1.msra.mxu0 %v442
    %1447 = vmatprep.subr.mxu0 %v451
    %1448 = vmatpush1.msra.mxu0 %v450
    %1449 = vmatprep.subr.mxu0 %v459
    %1450 = vmatpush1.msra.mxu0 %v458
    %1451 = vmatprep.subr.mxu0 %v467
    %1452 = vmatpush1.msra.mxu0 %v466
    %1453 = vmatprep.subr.mxu0 %v475
    %1454 = vmatpush1.msra.mxu0 %v474
    %1455 = vmatprep.subr.mxu0 %v483
    %1456 = vmatpush1.msra.mxu0 %v482
    %1457 = vmatprep.subr.mxu0 %v491
    %1458 = vmatpush1.msra.mxu0 %v490
    %1459 = vmatprep.subr.mxu0 %v499
    %1460 = vmatpush1.msra.mxu0 %v498
    %1461 = vmatprep.subr.mxu0 %v507
    %1462 = vmatpush1.msra.mxu0 %v506
    %1463 = vmatprep.subr.mxu0 %v515
    %1464 = vmatpush1.msra.mxu0 %v514
    %1465 = vmatprep.subr.mxu0 %v523
    %1466 = vmatpush1.msra.mxu0 %v522
    %1467 = vmatprep.subr.mxu0 %v531
    %1468 = vmatpush1.msra.mxu0 %v530
    %1469 = vmatprep.subr.mxu0 %v539
    %1470 = vmatpush1.msra.mxu0 %v538
    %1471 = vmatprep.subr.mxu0 %v547
    %1472 = vmatpush1.msra.mxu0 %v546
    %1473 = vmatprep.subr.mxu0 %v555
    %1474 = vmatpush1.msra.mxu0 %v554
    %1475 = vmatprep.subr.mxu0 %v563
    %1476 = vmatpush1.msra.mxu0 %v562
    %1477 = vmatprep.subr.mxu0 %v571
    %1478 = vmatpush1.msra.mxu0 %v570
    %1479 = vmatprep.subr.mxu0 %v579
    %1480 = vmatpush1.msra.mxu0 %v578
    %1481 = vmatprep.subr.mxu0 %v587
    %1482 = vmatpush1.msra.mxu0 %v586
    %1483 = vmatprep.subr.mxu0 %v595
    %1484 = vmatpush1.msra.mxu0 %v594
    %1485 = vmatprep.subr.mxu0 %v603
    %1486 = vmatpush1.msra.mxu0 %v602
    %1487 = vmatprep.subr.mxu0 %v611
    %1488 = vmatpush1.msra.mxu0 %v610
    %1489 = vmatprep.subr.mxu0 %v619
    %1490 = vmatpush1.msra.mxu0 %v618
    %1491 = vmatprep.subr.mxu0 %v627
    %1492 = vmatpush1.msra.mxu0 %v626
    %1493 = vmatprep.mubr.f32.mxu0 %v1329
    %1494 = vmatmul.mubr.f32.gmra.mrb[0].mxu0 %v1357
    %v1495 = vpop.f32.mrb[0].mxu0
    %v1496 = vadd.f32 0.0, %v1495
    %v1497 = vpop.f32.mrb[0].mxu0
    %v1498 = vadd.f32 0.0, %v1497
    %1499 = vdwg.mxu0
    %1500 = vmatprep.subr.mxu0 %v381
    %1501 = vmatpush1.msra.mxu0 %v380
    %1502 = vmatprep.subr.mxu0 %v389
    %1503 = vmatpush1.msra.mxu0 %v388
    %1504 = vmatprep.subr.mxu0 %v397
    %1505 = vmatpush1.msra.mxu0 %v396
    %1506 = vmatprep.subr.mxu0 %v405
    %1507 = vmatpush1.msra.mxu0 %v404
    %1508 = vmatprep.subr.mxu0 %v413
    %1509 = vmatpush1.msra.mxu0 %v412
    %1510 = vmatprep.subr.mxu0 %v421
    %1511 = vmatpush1.msra.mxu0 %v420
    %1512 = vmatprep.subr.mxu0 %v429
    %1513 = vmatpush1.msra.mxu0 %v428
    %1514 = vmatprep.subr.mxu0 %v437
    %1515 = vmatpush1.msra.mxu0 %v436
    %1516 = vmatprep.subr.mxu0 %v445
    %1517 = vmatpush1.msra.mxu0 %v444
    %1518 = vmatprep.subr.mxu0 %v453
    %1519 = vmatpush1.msra.mxu0 %v452
    %1520 = vmatprep.subr.mxu0 %v461
    %1521 = vmatpush1.msra.mxu0 %v460
    %1522 = vmatprep.subr.mxu0 %v469
    %1523 = vmatpush1.msra.mxu0 %v468
    %1524 = vmatprep.subr.mxu0 %v477
    %1525 = vmatpush1.msra.mxu0 %v476
    %1526 = vmatprep.subr.mxu0 %v485
    %1527 = vmatpush1.msra.mxu0 %v484
    %1528 = vmatprep.subr.mxu0 %v493
    %1529 = vmatpush1.msra.mxu0 %v492
    %1530 = vmatprep.subr.mxu0 %v501
    %1531 = vmatpush1.msra.mxu0 %v500
    %1532 = vmatprep.subr.mxu0 %v509
    %1533 = vmatpush1.msra.mxu0 %v508
    %1534 = vmatprep.subr.mxu0 %v517
    %1535 = vmatpush1.msra.mxu0 %v516
    %1536 = vmatprep.subr.mxu0 %v525
    %1537 = vmatpush1.msra.mxu0 %v524
    %1538 = vmatprep.subr.mxu0 %v533
    %1539 = vmatpush1.msra.mxu0 %v532
    %1540 = vmatprep.subr.mxu0 %v541
    %1541 = vmatpush1.msra.mxu0 %v540
    %1542 = vmatprep.subr.mxu0 %v549
    %1543 = vmatpush1.msra.mxu0 %v548
    %1544 = vmatprep.subr.mxu0 %v557
    %1545 = vmatpush1.msra.mxu0 %v556
    %1546 = vmatprep.subr.mxu0 %v565
    %1547 = vmatpush1.msra.mxu0 %v564
    %1548 = vmatprep.subr.mxu0 %v573
    %1549 = vmatpush1.msra.mxu0 %v572
    %1550 = vmatprep.subr.mxu0 %v581
    %1551 = vmatpush1.msra.mxu0 %v580
    %1552 = vmatprep.subr.mxu0 %v589
    %1553 = vmatpush1.msra.mxu0 %v588
    %1554 = vmatprep.subr.mxu0 %v597
    %1555 = vmatpush1.msra.mxu0 %v596
    %1556 = vmatprep.subr.mxu0 %v605
    %1557 = vmatpush1.msra.mxu0 %v604
    %1558 = vmatprep.subr.mxu0 %v613
    %1559 = vmatpush1.msra.mxu0 %v612
    %1560 = vmatprep.subr.mxu0 %v621
    %1561 = vmatpush1.msra.mxu0 %v620
    %1562 = vmatprep.subr.mxu0 %v629
    %1563 = vmatpush1.msra.mxu0 %v628
    %1564 = vmatprep.mubr.f32.mxu0 %v1329
    %1565 = vmatmul.mubr.f32.gmra.mrb[0].mxu0 %v1357
    %v1566 = vpop.f32.mrb[0].mxu0
    %v1567 = vadd.f32 0.0, %v1566
    %v1568 = vpop.f32.mrb[0].mxu0
    %v1569 = vadd.f32 0.0, %v1568
    %1570 = vdwg.mxu0
    %1571 = vmatprep.subr.mxu0 %v383
    %1572 = vmatpush1.msra.mxu0 %v382
    %1573 = vmatprep.subr.mxu0 %v391
    %1574 = vmatpush1.msra.mxu0 %v390
    %1575 = vmatprep.subr.mxu0 %v399
    %1576 = vmatpush1.msra.mxu0 %v398
    %1577 = vmatprep.subr.mxu0 %v407
    %1578 = vmatpush1.msra.mxu0 %v406
    %1579 = vmatprep.subr.mxu0 %v415
    %1580 = vmatpush1.msra.mxu0 %v414
    %1581 = vmatprep.subr.mxu0 %v423
    %1582 = vmatpush1.msra.mxu0 %v422
    %1583 = vmatprep.subr.mxu0 %v431
    %1584 = vmatpush1.msra.mxu0 %v430
    %1585 = vmatprep.subr.mxu0 %v439
    %1586 = vmatpush1.msra.mxu0 %v438
    %1587 = vmatprep.subr.mxu0 %v447
    %1588 = vmatpush1.msra.mxu0 %v446
    %1589 = vmatprep.subr.mxu0 %v455
    %1590 = vmatpush1.msra.mxu0 %v454
    %1591 = vmatprep.subr.mxu0 %v463
    %1592 = vmatpush1.msra.mxu0 %v462
    %1593 = vmatprep.subr.mxu0 %v471
    %1594 = vmatpush1.msra.mxu0 %v470
    %1595 = vmatprep.subr.mxu0 %v479
    %1596 = vmatpush1.msra.mxu0 %v478
    %1597 = vmatprep.subr.mxu0 %v487
    %1598 = vmatpush1.msra.mxu0 %v486
    %1599 = vmatprep.subr.mxu0 %v495
    %1600 = vmatpush1.msra.mxu0 %v494
    %1601 = vmatprep.subr.mxu0 %v503
    %1602 = vmatpush1.msra.mxu0 %v502
    %1603 = vmatprep.subr.mxu0 %v511
    %1604 = vmatpush1.msra.mxu0 %v510
    %1605 = vmatprep.subr.mxu0 %v519
    %1606 = vmatpush1.msra.mxu0 %v518
    %1607 = vmatprep.subr.mxu0 %v527
    %1608 = vmatpush1.msra.mxu0 %v526
    %1609 = vmatprep.subr.mxu0 %v535
    %1610 = vmatpush1.msra.mxu0 %v534
    %1611 = vmatprep.subr.mxu0 %v543
    %1612 = vmatpush1.msra.mxu0 %v542
    %1613 = vmatprep.subr.mxu0 %v551
    %1614 = vmatpush1.msra.mxu0 %v550
    %1615 = vmatprep.subr.mxu0 %v559
    %1616 = vmatpush1.msra.mxu0 %v558
    %1617 = vmatprep.subr.mxu0 %v567
    %1618 = vmatpush1.msra.mxu0 %v566
    %1619 = vmatprep.subr.mxu0 %v575
    %1620 = vmatpush1.msra.mxu0 %v574
    %1621 = vmatprep.subr.mxu0 %v583
    %1622 = vmatpush1.msra.mxu0 %v582
    %1623 = vmatprep.subr.mxu0 %v591
    %1624 = vmatpush1.msra.mxu0 %v590
    %1625 = vmatprep.subr.mxu0 %v599
    %1626 = vmatpush1.msra.mxu0 %v598
    %1627 = vmatprep.subr.mxu0 %v607
    %1628 = vmatpush1.msra.mxu0 %v606
    %1629 = vmatprep.subr.mxu0 %v615
    %1630 = vmatpush1.msra.mxu0 %v614
    %1631 = vmatprep.subr.mxu0 %v623
    %1632 = vmatpush1.msra.mxu0 %v622
    %1633 = vmatprep.subr.mxu0 %v631
    %1634 = vmatpush1.msra.mxu0 %v630
    %1635 = vmatprep.mubr.f32.mxu0 %v1329
    %1636 = vmatmul.mubr.f32.gmra.mrb[0].mxu0 %v1357
    %v1637 = vpop.f32.mrb[0].mxu0
    %v1638 = vadd.f32 0.0, %v1637
    %v1639 = vpop.f32.mrb[0].mxu0
    %v1640 = vadd.f32 0.0, %v1639
    %1641 = vdwg.mxu0
    %v1642 = vadd.f32 %v1425, %v945
    %v1643 = vadd.f32 %v1427, %v949
    %v1644 = vadd.f32 %v1496, %v953
    %v1645 = vadd.f32 %v1498, %v957
    %v1646 = vxor.u32 %v1642, 2147483648
    %v1647 = vxor.u32 %v1643, 2147483648
    %v1648 = vxor.u32 %v1644, 2147483648
    %v1649 = vmul.f32 %v1646, 1.442695
    %v1650 = vpow.pop %v1649
    %v1651 = vmul.f32 %v1647, 1.442695
    %v1652 = vpow.pop %v1651
    %v1653 = vmul.f32 %v1648, 1.442695
    %v1654 = vpow.pop %v1653
    %v1655 = vadd.f32 %v1650, 1.0
    %v1656 = vadd.f32 %v1652, 1.0
    %v1657 = vadd.f32 %v1654, 1.0
    %v1658 = vrcp.pop %v1655
    %v1659 = vmul.f32 1.0, %v1658
    %v1660 = vrcp.pop %v1656
    %v1661 = vmul.f32 1.0, %v1660
    %v1662 = vrcp.pop %v1657
    %v1663 = vmul.f32 1.0, %v1662
    %v1664 = vtanh.pop %v1645
    %v1665 = vmul.f32 %v1661, %v1327
    %v1666 = vmul.f32 %v1659, %v1664
    %v1667 = vadd.f32 %v1665, %v1666
    %v1668 = vtanh.pop %v1667
    %v1669 = vmul.f32 %v1663, %v1668
    %v1670 = vadd.f32 %v259, %v1567
    %v1671 = vadd.f32 %v261, %v1569
    %v1672 = vadd.f32 %v360, %v1638
    %v1673 = vadd.f32 %v362, %v1640
    %v1674 = vxor.u32 %v1670, 2147483648
    %v1675 = vxor.u32 %v1671, 2147483648
    %v1676 = vxor.u32 %v1672, 2147483648
    %v1677 = vmul.f32 %v1674, 1.442695
    %v1678 = vpow.pop %v1677
    %v1679 = vmul.f32 %v1675, 1.442695
    %v1680 = vpow.pop %v1679
    %v1681 = vmul.f32 %v1676, 1.442695
    %v1682 = vpow.pop %v1681
    %v1683 = vadd.f32 %v1678, 1.0
    %v1684 = vadd.f32 %v1680, 1.0
    %v1685 = vadd.f32 %v1682, 1.0
    %v1686 = vrcp.pop %v1683
    %v1687 = vmul.f32 1.0, %v1686
    %v1688 = vrcp.pop %v1684
    %v1689 = vmul.f32 1.0, %v1688
    %v1690 = vrcp.pop %v1685
    %v1691 = vmul.f32 1.0, %v1690
    %v1692 = vtanh.pop %v1673
    %v1693 = vmul.f32 %v1689, %v1355
    %v1694 = vmul.f32 %v1687, %v1692
    %v1695 = vadd.f32 %v1693, %v1694
    %v1696 = vtanh.pop %v1695
    %v1697 = vmul.f32 %v1691, %v1696
    %1698 = vmatprep.subr.mxu0 %v377
    %1699 = vmatpush1.msra.mxu0 %v376
    %1700 = vmatprep.subr.mxu0 %v385
    %1701 = vmatpush1.msra.mxu0 %v384
    %1702 = vmatprep.subr.mxu0 %v393
    %1703 = vmatpush1.msra.mxu0 %v392
    %1704 = vmatprep.subr.mxu0 %v401
    %1705 = vmatpush1.msra.mxu0 %v400
    %1706 = vmatprep.subr.mxu0 %v409
    %1707 = vmatpush1.msra.mxu0 %v408
    %1708 = vmatprep.subr.mxu0 %v417
    %1709 = vmatpush1.msra.mxu0 %v416
    %1710 = vmatprep.subr.mxu0 %v425
    %1711 = vmatpush1.msra.mxu0 %v424
    %1712 = vmatprep.subr.mxu0 %v433
    %1713 = vmatpush1.msra.mxu0 %v432
    %1714 = vmatprep.subr.mxu0 %v441
    %1715 = vmatpush1.msra.mxu0 %v440
    %1716 = vmatprep.subr.mxu0 %v449
    %1717 = vmatpush1.msra.mxu0 %v448
    %1718 = vmatprep.subr.mxu0 %v457
    %1719 = vmatpush1.msra.mxu0 %v456
    %1720 = vmatprep.subr.mxu0 %v465
    %1721 = vmatpush1.msra.mxu0 %v464
    %1722 = vmatprep.subr.mxu0 %v473
    %1723 = vmatpush1.msra.mxu0 %v472
    %1724 = vmatprep.subr.mxu0 %v481
    %1725 = vmatpush1.msra.mxu0 %v480
    %1726 = vmatprep.subr.mxu0 %v489
    %1727 = vmatpush1.msra.mxu0 %v488
    %1728 = vmatprep.subr.mxu0 %v497
    %1729 = vmatpush1.msra.mxu0 %v496
    %1730 = vmatprep.subr.mxu0 %v505
    %1731 = vmatpush1.msra.mxu0 %v504
    %1732 = vmatprep.subr.mxu0 %v513
    %1733 = vmatpush1.msra.mxu0 %v512
    %1734 = vmatprep.subr.mxu0 %v521
    %1735 = vmatpush1.msra.mxu0 %v520
    %1736 = vmatprep.subr.mxu0 %v529
    %1737 = vmatpush1.msra.mxu0 %v528
    %1738 = vmatprep.subr.mxu0 %v537
    %1739 = vmatpush1.msra.mxu0 %v536
    %1740 = vmatprep.subr.mxu0 %v545
    %1741 = vmatpush1.msra.mxu0 %v544
    %1742 = vmatprep.subr.mxu0 %v553
    %1743 = vmatpush1.msra.mxu0 %v552
    %1744 = vmatprep.subr.mxu0 %v561
    %1745 = vmatpush1.msra.mxu0 %v560
    %1746 = vmatprep.subr.mxu0 %v569
    %1747 = vmatpush1.msra.mxu0 %v568
    %1748 = vmatprep.subr.mxu0 %v577
    %1749 = vmatpush1.msra.mxu0 %v576
    %1750 = vmatprep.subr.mxu0 %v585
    %1751 = vmatpush1.msra.mxu0 %v584
    %1752 = vmatprep.subr.mxu0 %v593
    %1753 = vmatpush1.msra.mxu0 %v592
    %1754 = vmatprep.subr.mxu0 %v601
    %1755 = vmatpush1.msra.mxu0 %v600
    %1756 = vmatprep.subr.mxu0 %v609
    %1757 = vmatpush1.msra.mxu0 %v608
    %1758 = vmatprep.subr.mxu0 %v617
    %1759 = vmatpush1.msra.mxu0 %v616
    %1760 = vmatprep.subr.mxu0 %v625
    %1761 = vmatpush1.msra.mxu0 %v624
    %1762 = vmatprep.mubr.f32.mxu0 %v1669
    %1763 = vmatmul.mubr.f32.gmra.mrb[0].mxu0 %v1697
    %v1764 = vpop.f32.mrb[0].mxu0
    %v1765 = vadd.f32 0.0, %v1764
    %v1766 = vpop.f32.mrb[0].mxu0
    %v1767 = vadd.f32 0.0, %v1766
    %1768 = vdwg.mxu0
    %1769 = vmatprep.subr.mxu0 %v379
    %1770 = vmatpush1.msra.mxu0 %v378
    %1771 = vmatprep.subr.mxu0 %v387
    %1772 = vmatpush1.msra.mxu0 %v386
    %1773 = vmatprep.subr.mxu0 %v395
    %1774 = vmatpush1.msra.mxu0 %v394
    %1775 = vmatprep.subr.mxu0 %v403
    %1776 = vmatpush1.msra.mxu0 %v402
    %1777 = vmatprep.subr.mxu0 %v411
    %1778 = vmatpush1.msra.mxu0 %v410
    %1779 = vmatprep.subr.mxu0 %v419
    %1780 = vmatpush1.msra.mxu0 %v418
    %1781 = vmatprep.subr.mxu0 %v427
    %1782 = vmatpush1.msra.mxu0 %v426
    %1783 = vmatprep.subr.mxu0 %v435
    %1784 = vmatpush1.msra.mxu0 %v434
    %1785 = vmatprep.subr.mxu0 %v443
    %1786 = vmatpush1.msra.mxu0 %v442
    %1787 = vmatprep.subr.mxu0 %v451
    %1788 = vmatpush1.msra.mxu0 %v450
    %1789 = vmatprep.subr.mxu0 %v459
    %1790 = vmatpush1.msra.mxu0 %v458
    %1791 = vmatprep.subr.mxu0 %v467
    %1792 = vmatpush1.msra.mxu0 %v466
    %1793 = vmatprep.subr.mxu0 %v475
    %1794 = vmatpush1.msra.mxu0 %v474
    %1795 = vmatprep.subr.mxu0 %v483
    %1796 = vmatpush1.msra.mxu0 %v482
    %1797 = vmatprep.subr.mxu0 %v491
    %1798 = vmatpush1.msra.mxu0 %v490
    %1799 = vmatprep.subr.mxu0 %v499
    %1800 = vmatpush1.msra.mxu0 %v498
    %1801 = vmatprep.subr.mxu0 %v507
    %1802 = vmatpush1.msra.mxu0 %v506
    %1803 = vmatprep.subr.mxu0 %v515
    %1804 = vmatpush1.msra.mxu0 %v514
    %1805 = vmatprep.subr.mxu0 %v523
    %1806 = vmatpush1.msra.mxu0 %v522
    %1807 = vmatprep.subr.mxu0 %v531
    %1808 = vmatpush1.msra.mxu0 %v530
    %1809 = vmatprep.subr.mxu0 %v539
    %1810 = vmatpush1.msra.mxu0 %v538
    %1811 = vmatprep.subr.mxu0 %v547
    %1812 = vmatpush1.msra.mxu0 %v546
    %1813 = vmatprep.subr.mxu0 %v555
    %1814 = vmatpush1.msra.mxu0 %v554
    %1815 = vmatprep.subr.mxu0 %v563
    %1816 = vmatpush1.msra.mxu0 %v562
    %1817 = vmatprep.subr.mxu0 %v571
    %1818 = vmatpush1.msra.mxu0 %v570
    %1819 = vmatprep.subr.mxu0 %v579
    %1820 = vmatpush1.msra.mxu0 %v578
    %1821 = vmatprep.subr.mxu0 %v587
    %1822 = vmatpush1.msra.mxu0 %v586
    %1823 = vmatprep.subr.mxu0 %v595
    %1824 = vmatpush1.msra.mxu0 %v594
    %1825 = vmatprep.subr.mxu0 %v603
    %1826 = vmatpush1.msra.mxu0 %v602
    %1827 = vmatprep.subr.mxu0 %v611
    %1828 = vmatpush1.msra.mxu0 %v610
    %1829 = vmatprep.subr.mxu0 %v619
    %1830 = vmatpush1.msra.mxu0 %v618
    %1831 = vmatprep.subr.mxu0 %v627
    %1832 = vmatpush1.msra.mxu0 %v626
    %1833 = vmatprep.mubr.f32.mxu0 %v1669
    %1834 = vmatmul.mubr.f32.gmra.mrb[0].mxu0 %v1697
    %v1835 = vpop.f32.mrb[0].mxu0
    %v1836 = vadd.f32 0.0, %v1835
    %v1837 = vpop.f32.mrb[0].mxu0
    %v1838 = vadd.f32 0.0, %v1837
    %1839 = vdwg.mxu0
    %1840 = vmatprep.subr.mxu0 %v381
    %1841 = vmatpush1.msra.mxu0 %v380
    %1842 = vmatprep.subr.mxu0 %v389
    %1843 = vmatpush1.msra.mxu0 %v388
    %1844 = vmatprep.subr.mxu0 %v397
    %1845 = vmatpush1.msra.mxu0 %v396
    %1846 = vmatprep.subr.mxu0 %v405
    %1847 = vmatpush1.msra.mxu0 %v404
    %1848 = vmatprep.subr.mxu0 %v413
    %1849 = vmatpush1.msra.mxu0 %v412
    %1850 = vmatprep.subr.mxu0 %v421
    %1851 = vmatpush1.msra.mxu0 %v420
    %1852 = vmatprep.subr.mxu0 %v429
    %1853 = vmatpush1.msra.mxu0 %v428
    %1854 = vmatprep.subr.mxu0 %v437
    %1855 = vmatpush1.msra.mxu0 %v436
    %1856 = vmatprep.subr.mxu0 %v445
    %1857 = vmatpush1.msra.mxu0 %v444
    %1858 = vmatprep.subr.mxu0 %v453
    %1859 = vmatpush1.msra.mxu0 %v452
    %1860 = vmatprep.subr.mxu0 %v461
    %1861 = vmatpush1.msra.mxu0 %v460
    %1862 = vmatprep.subr.mxu0 %v469
    %1863 = vmatpush1.msra.mxu0 %v468
    %1864 = vmatprep.subr.mxu0 %v477
    %1865 = vmatpush1.msra.mxu0 %v476
    %1866 = vmatprep.subr.mxu0 %v485
    %1867 = vmatpush1.msra.mxu0 %v484
    %1868 = vmatprep.subr.mxu0 %v493
    %1869 = vmatpush1.msra.mxu0 %v492
    %1870 = vmatprep.subr.mxu0 %v501
    %1871 = vmatpush1.msra.mxu0 %v500
    %1872 = vmatprep.subr.mxu0 %v509
    %1873 = vmatpush1.msra.mxu0 %v508
    %1874 = vmatprep.subr.mxu0 %v517
    %1875 = vmatpush1.msra.mxu0 %v516
    %1876 = vmatprep.subr.mxu0 %v525
    %1877 = vmatpush1.msra.mxu0 %v524
    %1878 = vmatprep.subr.mxu0 %v533
    %1879 = vmatpush1.msra.mxu0 %v532
    %1880 = vmatprep.subr.mxu0 %v541
    %1881 = vmatpush1.msra.mxu0 %v540
    %1882 = vmatprep.subr.mxu0 %v549
    %1883 = vmatpush1.msra.mxu0 %v548
    %1884 = vmatprep.subr.mxu0 %v557
    %1885 = vmatpush1.msra.mxu0 %v556
    %1886 = vmatprep.subr.mxu0 %v565
    %1887 = vmatpush1.msra.mxu0 %v564
    %1888 = vmatprep.subr.mxu0 %v573
    %1889 = vmatpush1.msra.mxu0 %v572
    %1890 = vmatprep.subr.mxu0 %v581
    %1891 = vmatpush1.msra.mxu0 %v580
    %1892 = vmatprep.subr.mxu0 %v589
    %1893 = vmatpush1.msra.mxu0 %v588
    %1894 = vmatprep.subr.mxu0 %v597
    %1895 = vmatpush1.msra.mxu0 %v596
    %1896 = vmatprep.subr.mxu0 %v605
    %1897 = vmatpush1.msra.mxu0 %v604
    %1898 = vmatprep.subr.mxu0 %v613
    %1899 = vmatpush1.msra.mxu0 %v612
    %1900 = vmatprep.subr.mxu0 %v621
    %1901 = vmatpush1.msra.mxu0 %v620
    %1902 = vmatprep.subr.mxu0 %v629
    %1903 = vmatpush1.msra.mxu0 %v628
    %1904 = vmatprep.mubr.f32.mxu0 %v1669
    %1905 = vmatmul.mubr.f32.gmra.mrb[0].mxu0 %v1697
    %v1906 = vpop.f32.mrb[0].mxu0
    %v1907 = vadd.f32 0.0, %v1906
    %v1908 = vpop.f32.mrb[0].mxu0
    %v1909 = vadd.f32 0.0, %v1908
    %1910 = vdwg.mxu0
    %1911 = vmatprep.subr.mxu0 %v383
    %1912 = vmatpush1.msra.mxu0 %v382
    %1913 = vmatprep.subr.mxu0 %v391
    %1914 = vmatpush1.msra.mxu0 %v390
    %1915 = vmatprep.subr.mxu0 %v399
    %1916 = vmatpush1.msra.mxu0 %v398
    %1917 = vmatprep.subr.mxu0 %v407
    %1918 = vmatpush1.msra.mxu0 %v406
    %1919 = vmatprep.subr.mxu0 %v415
    %1920 = vmatpush1.msra.mxu0 %v414
    %1921 = vmatprep.subr.mxu0 %v423
    %1922 = vmatpush1.msra.mxu0 %v422
    %1923 = vmatprep.subr.mxu0 %v431
    %1924 = vmatpush1.msra.mxu0 %v430
    %1925 = vmatprep.subr.mxu0 %v439
    %1926 = vmatpush1.msra.mxu0 %v438
    %1927 = vmatprep.subr.mxu0 %v447
    %1928 = vmatpush1.msra.mxu0 %v446
    %1929 = vmatprep.subr.mxu0 %v455
    %1930 = vmatpush1.msra.mxu0 %v454
    %1931 = vmatprep.subr.mxu0 %v463
    %1932 = vmatpush1.msra.mxu0 %v462
    %1933 = vmatprep.subr.mxu0 %v471
    %1934 = vmatpush1.msra.mxu0 %v470
    %1935 = vmatprep.subr.mxu0 %v479
    %1936 = vmatpush1.msra.mxu0 %v478
    %1937 = vmatprep.subr.mxu0 %v487
    %1938 = vmatpush1.msra.mxu0 %v486
    %1939 = vmatprep.subr.mxu0 %v495
    %1940 = vmatpush1.msra.mxu0 %v494
    %1941 = vmatprep.subr.mxu0 %v503
    %1942 = vmatpush1.msra.mxu0 %v502
    %1943 = vmatprep.subr.mxu0 %v511
    %1944 = vmatpush1.msra.mxu0 %v510
    %1945 = vmatprep.subr.mxu0 %v519
    %1946 = vmatpush1.msra.mxu0 %v518
    %1947 = vmatprep.subr.mxu0 %v527
    %1948 = vmatpush1.msra.mxu0 %v526
    %1949 = vmatprep.subr.mxu0 %v535
    %1950 = vmatpush1.msra.mxu0 %v534
    %1951 = vmatprep.subr.mxu0 %v543
    %1952 = vmatpush1.msra.mxu0 %v542
    %1953 = vmatprep.subr.mxu0 %v551
    %1954 = vmatpush1.msra.mxu0 %v550
    %1955 = vmatprep.subr.mxu0 %v559
    %1956 = vmatpush1.msra.mxu0 %v558
    %1957 = vmatprep.subr.mxu0 %v567
    %1958 = vmatpush1.msra.mxu0 %v566
    %1959 = vmatprep.subr.mxu0 %v575
    %1960 = vmatpush1.msra.mxu0 %v574
    %1961 = vmatprep.subr.mxu0 %v583
    %1962 = vmatpush1.msra.mxu0 %v582
    %1963 = vmatprep.subr.mxu0 %v591
    %1964 = vmatpush1.msra.mxu0 %v590
    %1965 = vmatprep.subr.mxu0 %v599
    %1966 = vmatpush1.msra.mxu0 %v598
    %1967 = vmatprep.subr.mxu0 %v607
    %1968 = vmatpush1.msra.mxu0 %v606
    %1969 = vmatprep.subr.mxu0 %v615
    %1970 = vmatpush1.msra.mxu0 %v614
    %1971 = vmatprep.subr.mxu0 %v623
    %1972 = vmatpush1.msra.mxu0 %v622
    %1973 = vmatprep.subr.mxu0 %v631
    %1974 = vmatpush1.msra.mxu0 %v630
    %1975 = vmatprep.mubr.f32.mxu0 %v1669
    %1976 = vmatmul.mubr.f32.gmra.mrb[0].mxu0 %v1697
    %v1977 = vpop.f32.mrb[0].mxu0
    %v1978 = vadd.f32 0.0, %v1977
    %v1979 = vpop.f32.mrb[0].mxu0
    %v1980 = vadd.f32 0.0, %v1979
    %1981 = vdwg.mxu0
    %v1982 = vadd.f32 %v1765, %v945
    %v1983 = vadd.f32 %v1767, %v949
    %v1984 = vadd.f32 %v1836, %v953
    %v1985 = vadd.f32 %v1838, %v957
    %v1986 = vxor.u32 %v1982, 2147483648
    %v1987 = vxor.u32 %v1983, 2147483648
    %v1988 = vxor.u32 %v1984, 2147483648
    %v1989 = vmul.f32 %v1986, 1.442695
    %v1990 = vpow.pop %v1989
    %v1991 = vmul.f32 %v1987, 1.442695
    %v1992 = vpow.pop %v1991
    %v1993 = vmul.f32 %v1988, 1.442695
    %v1994 = vpow.pop %v1993
    %v1995 = vadd.f32 %v1990, 1.0
    %v1996 = vadd.f32 %v1992, 1.0
    %v1997 = vadd.f32 %v1994, 1.0
    %v1998 = vrcp.pop %v1995
    %v1999 = vmul.f32 1.0, %v1998
    %v2000 = vrcp.pop %v1996
    %v2001 = vmul.f32 1.0, %v2000
    %v2002 = vrcp.pop %v1997
    %v2003 = vmul.f32 1.0, %v2002
    %v2004 = vtanh.pop %v1985
    %v2005 = vmul.f32 %v2001, %v1667
    %v2006 = vmul.f32 %v1999, %v2004
    %v2007 = vadd.f32 %v2005, %v2006
    %v2008 = vtanh.pop %v2007
    %v2009 = vmul.f32 %v2003, %v2008
    %v2010 = vadd.f32 %v265, %v1907
    %v2011 = vadd.f32 %v267, %v1909
    %v2012 = vadd.f32 %v366, %v1978
    %v2013 = vadd.f32 %v368, %v1980
    %v2014 = vxor.u32 %v2010, 2147483648
    %v2015 = vxor.u32 %v2011, 2147483648
    %v2016 = vxor.u32 %v2012, 2147483648
    %v2017 = vmul.f32 %v2014, 1.442695
    %v2018 = vpow.pop %v2017
    %v2019 = vmul.f32 %v2015, 1.442695
    %v2020 = vpow.pop %v2019
    %v2021 = vmul.f32 %v2016, 1.442695
    %v2022 = vpow.pop %v2021
    %v2023 = vadd.f32 %v2018, 1.0
    %v2024 = vadd.f32 %v2020, 1.0
    %v2025 = vadd.f32 %v2022, 1.0
    %v2026 = vrcp.pop %v2023
    %v2027 = vmul.f32 1.0, %v2026
    %v2028 = vrcp.pop %v2024
    %v2029 = vmul.f32 1.0, %v2028
    %v2030 = vrcp.pop %v2025
    %v2031 = vmul.f32 1.0, %v2030
    %v2032 = vtanh.pop %v2013
    %v2033 = vmul.f32 %v2029, %v1695
    %v2034 = vmul.f32 %v2027, %v2032
    %v2035 = vadd.f32 %v2033, %v2034
    %v2036 = vtanh.pop %v2035
    %v2037 = vmul.f32 %v2031, %v2036
    %2038 = vmatprep.subr.mxu0 %v377
    %2039 = vmatpush1.msra.mxu0 %v376
    %2040 = vmatprep.subr.mxu0 %v385
    %2041 = vmatpush1.msra.mxu0 %v384
    %2042 = vmatprep.subr.mxu0 %v393
    %2043 = vmatpush1.msra.mxu0 %v392
    %2044 = vmatprep.subr.mxu0 %v401
    %2045 = vmatpush1.msra.mxu0 %v400
    %2046 = vmatprep.subr.mxu0 %v409
    %2047 = vmatpush1.msra.mxu0 %v408
    %2048 = vmatprep.subr.mxu0 %v417
    %2049 = vmatpush1.msra.mxu0 %v416
    %2050 = vmatprep.subr.mxu0 %v425
    %2051 = vmatpush1.msra.mxu0 %v424
    %2052 = vmatprep.subr.mxu0 %v433
    %2053 = vmatpush1.msra.mxu0 %v432
    %2054 = vmatprep.subr.mxu0 %v441
    %2055 = vmatpush1.msra.mxu0 %v440
    %2056 = vmatprep.subr.mxu0 %v449
    %2057 = vmatpush1.msra.mxu0 %v448
    %2058 = vmatprep.subr.mxu0 %v457
    %2059 = vmatpush1.msra.mxu0 %v456
    %2060 = vmatprep.subr.mxu0 %v465
    %2061 = vmatpush1.msra.mxu0 %v464
    %2062 = vmatprep.subr.mxu0 %v473
    %2063 = vmatpush1.msra.mxu0 %v472
    %2064 = vmatprep.subr.mxu0 %v481
    %2065 = vmatpush1.msra.mxu0 %v480
    %2066 = vmatprep.subr.mxu0 %v489
    %2067 = vmatpush1.msra.mxu0 %v488
    %2068 = vmatprep.subr.mxu0 %v497
    %2069 = vmatpush1.msra.mxu0 %v496
    %2070 = vmatprep.subr.mxu0 %v505
    %2071 = vmatpush1.msra.mxu0 %v504
    %2072 = vmatprep.subr.mxu0 %v513
    %2073 = vmatpush1.msra.mxu0 %v512
    %2074 = vmatprep.subr.mxu0 %v521
    %2075 = vmatpush1.msra.mxu0 %v520
    %2076 = vmatprep.subr.mxu0 %v529
    %2077 = vmatpush1.msra.mxu0 %v528
    %2078 = vmatprep.subr.mxu0 %v537
    %2079 = vmatpush1.msra.mxu0 %v536
    %2080 = vmatprep.subr.mxu0 %v545
    %2081 = vmatpush1.msra.mxu0 %v544
    %2082 = vmatprep.subr.mxu0 %v553
    %2083 = vmatpush1.msra.mxu0 %v552
    %2084 = vmatprep.subr.mxu0 %v561
    %2085 = vmatpush1.msra.mxu0 %v560
    %2086 = vmatprep.subr.mxu0 %v569
    %2087 = vmatpush1.msra.mxu0 %v568
    %2088 = vmatprep.subr.mxu0 %v577
    %2089 = vmatpush1.msra.mxu0 %v576
    %2090 = vmatprep.subr.mxu0 %v585
    %2091 = vmatpush1.msra.mxu0 %v584
    %2092 = vmatprep.subr.mxu0 %v593
    %2093 = vmatpush1.msra.mxu0 %v592
    %2094 = vmatprep.subr.mxu0 %v601
    %2095 = vmatpush1.msra.mxu0 %v600
    %2096 = vmatprep.subr.mxu0 %v609
    %2097 = vmatpush1.msra.mxu0 %v608
    %2098 = vmatprep.subr.mxu0 %v617
    %2099 = vmatpush1.msra.mxu0 %v616
    %2100 = vmatprep.subr.mxu0 %v625
    %2101 = vmatpush1.msra.mxu0 %v624
    %2102 = vmatprep.mubr.f32.mxu0 %v2009
    %2103 = vmatmul.mubr.f32.gmra.mrb[0].mxu0 %v2037
    %v2104 = vpop.f32.mrb[0].mxu0
    %v2105 = vadd.f32 0.0, %v2104
    %v2106 = vpop.f32.mrb[0].mxu0
    %v2107 = vadd.f32 0.0, %v2106
    %2108 = vdwg.mxu0
    %2109 = vmatprep.subr.mxu0 %v379
    %2110 = vmatpush1.msra.mxu0 %v378
    %2111 = vmatprep.subr.mxu0 %v387
    %2112 = vmatpush1.msra.mxu0 %v386
    %2113 = vmatprep.subr.mxu0 %v395
    %2114 = vmatpush1.msra.mxu0 %v394
    %2115 = vmatprep.subr.mxu0 %v403
    %2116 = vmatpush1.msra.mxu0 %v402
    %2117 = vmatprep.subr.mxu0 %v411
    %2118 = vmatpush1.msra.mxu0 %v410
    %2119 = vmatprep.subr.mxu0 %v419
    %2120 = vmatpush1.msra.mxu0 %v418
    %2121 = vmatprep.subr.mxu0 %v427
    %2122 = vmatpush1.msra.mxu0 %v426
    %2123 = vmatprep.subr.mxu0 %v435
    %2124 = vmatpush1.msra.mxu0 %v434
    %2125 = vmatprep.subr.mxu0 %v443
    %2126 = vmatpush1.msra.mxu0 %v442
    %2127 = vmatprep.subr.mxu0 %v451
    %2128 = vmatpush1.msra.mxu0 %v450
    %2129 = vmatprep.subr.mxu0 %v459
    %2130 = vmatpush1.msra.mxu0 %v458
    %2131 = vmatprep.subr.mxu0 %v467
    %2132 = vmatpush1.msra.mxu0 %v466
    %2133 = vmatprep.subr.mxu0 %v475
    %2134 = vmatpush1.msra.mxu0 %v474
    %2135 = vmatprep.subr.mxu0 %v483
    %2136 = vmatpush1.msra.mxu0 %v482
    %2137 = vmatprep.subr.mxu0 %v491
    %2138 = vmatpush1.msra.mxu0 %v490
    %2139 = vmatprep.subr.mxu0 %v499
    %2140 = vmatpush1.msra.mxu0 %v498
    %2141 = vmatprep.subr.mxu0 %v507
    %2142 = vmatpush1.msra.mxu0 %v506
    %2143 = vmatprep.subr.mxu0 %v515
    %2144 = vmatpush1.msra.mxu0 %v514
    %2145 = vmatprep.subr.mxu0 %v523
    %2146 = vmatpush1.msra.mxu0 %v522
    %2147 = vmatprep.subr.mxu0 %v531
    %2148 = vmatpush1.msra.mxu0 %v530
    %2149 = vmatprep.subr.mxu0 %v539
    %2150 = vmatpush1.msra.mxu0 %v538
    %2151 = vmatprep.subr.mxu0 %v547
    %2152 = vmatpush1.msra.mxu0 %v546
    %2153 = vmatprep.subr.mxu0 %v555
    %2154 = vmatpush1.msra.mxu0 %v554
    %2155 = vmatprep.subr.mxu0 %v563
    %2156 = vmatpush1.msra.mxu0 %v562
    %2157 = vmatprep.subr.mxu0 %v571
    %2158 = vmatpush1.msra.mxu0 %v570
    %2159 = vmatprep.subr.mxu0 %v579
    %2160 = vmatpush1.msra.mxu0 %v578
    %2161 = vmatprep.subr.mxu0 %v587
    %2162 = vmatpush1.msra.mxu0 %v586
    %2163 = vmatprep.subr.mxu0 %v595
    %2164 = vmatpush1.msra.mxu0 %v594
    %2165 = vmatprep.subr.mxu0 %v603
    %2166 = vmatpush1.msra.mxu0 %v602
    %2167 = vmatprep.subr.mxu0 %v611
    %2168 = vmatpush1.msra.mxu0 %v610
    %2169 = vmatprep.subr.mxu0 %v619
    %2170 = vmatpush1.msra.mxu0 %v618
    %2171 = vmatprep.subr.mxu0 %v627
    %2172 = vmatpush1.msra.mxu0 %v626
    %2173 = vmatprep.mubr.f32.mxu0 %v2009
    %2174 = vmatmul.mubr.f32.gmra.mrb[0].mxu0 %v2037
    %v2175 = vpop.f32.mrb[0].mxu0
    %v2176 = vadd.f32 0.0, %v2175
    %v2177 = vpop.f32.mrb[0].mxu0
    %v2178 = vadd.f32 0.0, %v2177
    %2179 = vdwg.mxu0
    %2180 = vmatprep.subr.mxu0 %v381
    %2181 = vmatpush1.msra.mxu0 %v380
    %2182 = vmatprep.subr.mxu0 %v389
    %2183 = vmatpush1.msra.mxu0 %v388
    %2184 = vmatprep.subr.mxu0 %v397
    %2185 = vmatpush1.msra.mxu0 %v396
    %2186 = vmatprep.subr.mxu0 %v405
    %2187 = vmatpush1.msra.mxu0 %v404
    %2188 = vmatprep.subr.mxu0 %v413
    %2189 = vmatpush1.msra.mxu0 %v412
    %2190 = vmatprep.subr.mxu0 %v421
    %2191 = vmatpush1.msra.mxu0 %v420
    %2192 = vmatprep.subr.mxu0 %v429
    %2193 = vmatpush1.msra.mxu0 %v428
    %2194 = vmatprep.subr.mxu0 %v437
    %2195 = vmatpush1.msra.mxu0 %v436
    %2196 = vmatprep.subr.mxu0 %v445
    %2197 = vmatpush1.msra.mxu0 %v444
    %2198 = vmatprep.subr.mxu0 %v453
    %2199 = vmatpush1.msra.mxu0 %v452
    %2200 = vmatprep.subr.mxu0 %v461
    %2201 = vmatpush1.msra.mxu0 %v460
    %2202 = vmatprep.subr.mxu0 %v469
    %2203 = vmatpush1.msra.mxu0 %v468
    %2204 = vmatprep.subr.mxu0 %v477
    %2205 = vmatpush1.msra.mxu0 %v476
    %2206 = vmatprep.subr.mxu0 %v485
    %2207 = vmatpush1.msra.mxu0 %v484
    %2208 = vmatprep.subr.mxu0 %v493
    %2209 = vmatpush1.msra.mxu0 %v492
    %2210 = vmatprep.subr.mxu0 %v501
    %2211 = vmatpush1.msra.mxu0 %v500
    %2212 = vmatprep.subr.mxu0 %v509
    %2213 = vmatpush1.msra.mxu0 %v508
    %2214 = vmatprep.subr.mxu0 %v517
    %2215 = vmatpush1.msra.mxu0 %v516
    %2216 = vmatprep.subr.mxu0 %v525
    %2217 = vmatpush1.msra.mxu0 %v524
    %2218 = vmatprep.subr.mxu0 %v533
    %2219 = vmatpush1.msra.mxu0 %v532
    %2220 = vmatprep.subr.mxu0 %v541
    %2221 = vmatpush1.msra.mxu0 %v540
    %2222 = vmatprep.subr.mxu0 %v549
    %2223 = vmatpush1.msra.mxu0 %v548
    %2224 = vmatprep.subr.mxu0 %v557
    %2225 = vmatpush1.msra.mxu0 %v556
    %2226 = vmatprep.subr.mxu0 %v565
    %2227 = vmatpush1.msra.mxu0 %v564
    %2228 = vmatprep.subr.mxu0 %v573
    %2229 = vmatpush1.msra.mxu0 %v572
    %2230 = vmatprep.subr.mxu0 %v581
    %2231 = vmatpush1.msra.mxu0 %v580
    %2232 = vmatprep.subr.mxu0 %v589
    %2233 = vmatpush1.msra.mxu0 %v588
    %2234 = vmatprep.subr.mxu0 %v597
    %2235 = vmatpush1.msra.mxu0 %v596
    %2236 = vmatprep.subr.mxu0 %v605
    %2237 = vmatpush1.msra.mxu0 %v604
    %2238 = vmatprep.subr.mxu0 %v613
    %2239 = vmatpush1.msra.mxu0 %v612
    %2240 = vmatprep.subr.mxu0 %v621
    %2241 = vmatpush1.msra.mxu0 %v620
    %2242 = vmatprep.subr.mxu0 %v629
    %2243 = vmatpush1.msra.mxu0 %v628
    %2244 = vmatprep.mubr.f32.mxu0 %v2009
    %2245 = vmatmul.mubr.f32.gmra.mrb[0].mxu0 %v2037
    %v2246 = vpop.f32.mrb[0].mxu0
    %v2247 = vadd.f32 0.0, %v2246
    %v2248 = vpop.f32.mrb[0].mxu0
    %v2249 = vadd.f32 0.0, %v2248
    %2250 = vdwg.mxu0
    %2251 = vmatprep.subr.mxu0 %v383
    %2252 = vmatpush1.msra.mxu0 %v382
    %2253 = vmatprep.subr.mxu0 %v391
    %2254 = vmatpush1.msra.mxu0 %v390
    %2255 = vmatprep.subr.mxu0 %v399
    %2256 = vmatpush1.msra.mxu0 %v398
    %2257 = vmatprep.subr.mxu0 %v407
    %2258 = vmatpush1.msra.mxu0 %v406
    %2259 = vmatprep.subr.mxu0 %v415
    %2260 = vmatpush1.msra.mxu0 %v414
    %2261 = vmatprep.subr.mxu0 %v423
    %2262 = vmatpush1.msra.mxu0 %v422
    %2263 = vmatprep.subr.mxu0 %v431
    %2264 = vmatpush1.msra.mxu0 %v430
    %2265 = vmatprep.subr.mxu0 %v439
    %2266 = vmatpush1.msra.mxu0 %v438
    %2267 = vmatprep.subr.mxu0 %v447
    %2268 = vmatpush1.msra.mxu0 %v446
    %2269 = vmatprep.subr.mxu0 %v455
    %2270 = vmatpush1.msra.mxu0 %v454
    %2271 = vmatprep.subr.mxu0 %v463
    %2272 = vmatpush1.msra.mxu0 %v462
    %2273 = vmatprep.subr.mxu0 %v471
    %2274 = vmatpush1.msra.mxu0 %v470
    %2275 = vmatprep.subr.mxu0 %v479
    %2276 = vmatpush1.msra.mxu0 %v478
    %2277 = vmatprep.subr.mxu0 %v487
    %2278 = vmatpush1.msra.mxu0 %v486
    %2279 = vmatprep.subr.mxu0 %v495
    %2280 = vmatpush1.msra.mxu0 %v494
    %2281 = vmatprep.subr.mxu0 %v503
    %2282 = vmatpush1.msra.mxu0 %v502
    %2283 = vmatprep.subr.mxu0 %v511
    %2284 = vmatpush1.msra.mxu0 %v510
    %2285 = vmatprep.subr.mxu0 %v519
    %2286 = vmatpush1.msra.mxu0 %v518
    %2287 = vmatprep.subr.mxu0 %v527
    %2288 = vmatpush1.msra.mxu0 %v526
    %2289 = vmatprep.subr.mxu0 %v535
    %2290 = vmatpush1.msra.mxu0 %v534
    %2291 = vmatprep.subr.mxu0 %v543
    %2292 = vmatpush1.msra.mxu0 %v542
    %2293 = vmatprep.subr.mxu0 %v551
    %2294 = vmatpush1.msra.mxu0 %v550
    %2295 = vmatprep.subr.mxu0 %v559
    %2296 = vmatpush1.msra.mxu0 %v558
    %2297 = vmatprep.subr.mxu0 %v567
    %2298 = vmatpush1.msra.mxu0 %v566
    %2299 = vmatprep.subr.mxu0 %v575
    %2300 = vmatpush1.msra.mxu0 %v574
    %2301 = vmatprep.subr.mxu0 %v583
    %2302 = vmatpush1.msra.mxu0 %v582
    %2303 = vmatprep.subr.mxu0 %v591
    %2304 = vmatpush1.msra.mxu0 %v590
    %2305 = vmatprep.subr.mxu0 %v599
    %2306 = vmatpush1.msra.mxu0 %v598
    %2307 = vmatprep.subr.mxu0 %v607
    %2308 = vmatpush1.msra.mxu0 %v606
    %2309 = vmatprep.subr.mxu0 %v615
    %2310 = vmatpush1.msra.mxu0 %v614
    %2311 = vmatprep.subr.mxu0 %v623
    %2312 = vmatpush1.msra.mxu0 %v622
    %2313 = vmatprep.subr.mxu0 %v631
    %2314 = vmatpush1.msra.mxu0 %v630
    %2315 = vmatprep.mubr.f32.mxu0 %v2009
    %2316 = vmatmul.mubr.f32.gmra.mrb[0].mxu0 %v2037
    %v2317 = vpop.f32.mrb[0].mxu0
    %v2318 = vadd.f32 0.0, %v2317
    %v2319 = vpop.f32.mrb[0].mxu0
    %v2320 = vadd.f32 0.0, %v2319
    %2321 = vdwg.mxu0
    %v2322 = vadd.f32 %v2105, %v945
    %v2323 = vadd.f32 %v2107, %v949
    %v2324 = vadd.f32 %v2176, %v953
    %v2325 = vadd.f32 %v2178, %v957
    %v2326 = vxor.u32 %v2322, 2147483648
    %v2327 = vxor.u32 %v2323, 2147483648
    %v2328 = vxor.u32 %v2324, 2147483648
    %v2329 = vmul.f32 %v2326, 1.442695
    %v2330 = vpow.pop %v2329
    %v2331 = vmul.f32 %v2327, 1.442695
    %v2332 = vpow.pop %v2331
    %v2333 = vmul.f32 %v2328, 1.442695
    %v2334 = vpow.pop %v2333
    %v2335 = vadd.f32 %v2330, 1.0
    %v2336 = vadd.f32 %v2332, 1.0
    %v2337 = vadd.f32 %v2334, 1.0
    %v2338 = vrcp.pop %v2335
    %v2339 = vmul.f32 1.0, %v2338
    %v2340 = vrcp.pop %v2336
    %v2341 = vmul.f32 1.0, %v2340
    %v2342 = vrcp.pop %v2337
    %v2343 = vmul.f32 1.0, %v2342
    %v2344 = vtanh.pop %v2325
    %v2345 = vmul.f32 %v2341, %v2007
    %v2346 = vmul.f32 %v2339, %v2344
    %v2347 = vadd.f32 %v2345, %v2346
    %v2348 = vtanh.pop %v2347
    %v2349 = vmul.f32 %v2343, %v2348
    %v2350 = vadd.f32 %v271, %v2247
    %v2351 = vadd.f32 %v273, %v2249
    %v2352 = vadd.f32 %v372, %v2318
    %v2353 = vadd.f32 %v374, %v2320
    %v2354 = vxor.u32 %v2350, 2147483648
    %v2355 = vxor.u32 %v2351, 2147483648
    %v2356 = vxor.u32 %v2352, 2147483648
    %v2357 = vmul.f32 %v2354, 1.442695
    %v2358 = vpow.pop %v2357
    %v2359 = vmul.f32 %v2355, 1.442695
    %v2360 = vpow.pop %v2359
    %v2361 = vmul.f32 %v2356, 1.442695
    %v2362 = vpow.pop %v2361
    %v2363 = vadd.f32 %v2358, 1.0
    %v2364 = vadd.f32 %v2360, 1.0
    %v2365 = vadd.f32 %v2362, 1.0
    %v2366 = vrcp.pop %v2363
    %v2367 = vmul.f32 1.0, %v2366
    %v2368 = vrcp.pop %v2364
    %v2369 = vmul.f32 1.0, %v2368
    %v2370 = vrcp.pop %v2365
    %v2371 = vmul.f32 1.0, %v2370
    %v2372 = vtanh.pop %v2353
    %v2373 = vmul.f32 %v2369, %v2035
    %v2374 = vmul.f32 %v2367, %v2372
    %v2375 = vadd.f32 %v2373, %v2374
    %v2376 = vtanh.pop %v2375
    %v2377 = vmul.f32 %v2371, %v2376
    %2378 = vmatprep.subr.mxu0 %v377
    %2379 = vmatpush1.msra.mxu0 %v376
    %2380 = vmatprep.subr.mxu0 %v385
    %2381 = vmatpush1.msra.mxu0 %v384
    %2382 = vmatprep.subr.mxu0 %v393
    %2383 = vmatpush1.msra.mxu0 %v392
    %2384 = vmatprep.subr.mxu0 %v401
    %2385 = vmatpush1.msra.mxu0 %v400
    %2386 = vmatprep.subr.mxu0 %v409
    %2387 = vmatpush1.msra.mxu0 %v408
    %2388 = vmatprep.subr.mxu0 %v417
    %2389 = vmatpush1.msra.mxu0 %v416
    %2390 = vmatprep.subr.mxu0 %v425
    %2391 = vmatpush1.msra.mxu0 %v424
    %2392 = vmatprep.subr.mxu0 %v433
    %2393 = vmatpush1.msra.mxu0 %v432
    %2394 = vmatprep.subr.mxu0 %v441
    %2395 = vmatpush1.msra.mxu0 %v440
    %2396 = vmatprep.subr.mxu0 %v449
    %2397 = vmatpush1.msra.mxu0 %v448
    %2398 = vmatprep.subr.mxu0 %v457
    %2399 = vmatpush1.msra.mxu0 %v456
    %2400 = vmatprep.subr.mxu0 %v465
    %2401 = vmatpush1.msra.mxu0 %v464
    %2402 = vmatprep.subr.mxu0 %v473
    %2403 = vmatpush1.msra.mxu0 %v472
    %2404 = vmatprep.subr.mxu0 %v481
    %2405 = vmatpush1.msra.mxu0 %v480
    %2406 = vmatprep.subr.mxu0 %v489
    %2407 = vmatpush1.msra.mxu0 %v488
    %2408 = vmatprep.subr.mxu0 %v497
    %2409 = vmatpush1.msra.mxu0 %v496
    %2410 = vmatprep.subr.mxu0 %v505
    %2411 = vmatpush1.msra.mxu0 %v504
    %2412 = vmatprep.subr.mxu0 %v513
    %2413 = vmatpush1.msra.mxu0 %v512
    %2414 = vmatprep.subr.mxu0 %v521
    %2415 = vmatpush1.msra.mxu0 %v520
    %2416 = vmatprep.subr.mxu0 %v529
    %2417 = vmatpush1.msra.mxu0 %v528
    %2418 = vmatprep.subr.mxu0 %v537
    %2419 = vmatpush1.msra.mxu0 %v536
    %2420 = vmatprep.subr.mxu0 %v545
    %2421 = vmatpush1.msra.mxu0 %v544
    %2422 = vmatprep.subr.mxu0 %v553
    %2423 = vmatpush1.msra.mxu0 %v552
    %2424 = vmatprep.subr.mxu0 %v561
    %2425 = vmatpush1.msra.mxu0 %v560
    %2426 = vmatprep.subr.mxu0 %v569
    %2427 = vmatpush1.msra.mxu0 %v568
    %2428 = vmatprep.subr.mxu0 %v577
    %2429 = vmatpush1.msra.mxu0 %v576
    %2430 = vmatprep.subr.mxu0 %v585
    %2431 = vmatpush1.msra.mxu0 %v584
    %2432 = vmatprep.subr.mxu0 %v593
    %2433 = vmatpush1.msra.mxu0 %v592
    %2434 = vmatprep.subr.mxu0 %v601
    %2435 = vmatpush1.msra.mxu0 %v600
    %2436 = vmatprep.subr.mxu0 %v609
    %2437 = vmatpush1.msra.mxu0 %v608
    %2438 = vmatprep.subr.mxu0 %v617
    %2439 = vmatpush1.msra.mxu0 %v616
    %2440 = vmatprep.subr.mxu0 %v625
    %2441 = vmatpush1.msra.mxu0 %v624
    %2442 = vmatprep.mubr.f32.mxu0 %v2349
    %2443 = vmatmul.mubr.f32.gmra.mrb[0].mxu0 %v2377
    %v2444 = vpop.f32.mrb[0].mxu0
    %v2445 = vadd.f32 0.0, %v2444
    %v2446 = vpop.f32.mrb[0].mxu0
    %v2447 = vadd.f32 0.0, %v2446
    %2448 = vdwg.mxu0
    %2449 = vmatprep.subr.mxu0 %v379
    %2450 = vmatpush1.msra.mxu0 %v378
    %2451 = vmatprep.subr.mxu0 %v387
    %2452 = vmatpush1.msra.mxu0 %v386
    %2453 = vmatprep.subr.mxu0 %v395
    %2454 = vmatpush1.msra.mxu0 %v394
    %2455 = vmatprep.subr.mxu0 %v403
    %2456 = vmatpush1.msra.mxu0 %v402
    %2457 = vmatprep.subr.mxu0 %v411
    %2458 = vmatpush1.msra.mxu0 %v410
    %2459 = vmatprep.subr.mxu0 %v419
    %2460 = vmatpush1.msra.mxu0 %v418
    %2461 = vmatprep.subr.mxu0 %v427
    %2462 = vmatpush1.msra.mxu0 %v426
    %2463 = vmatprep.subr.mxu0 %v435
    %2464 = vmatpush1.msra.mxu0 %v434
    %2465 = vmatprep.subr.mxu0 %v443
    %2466 = vmatpush1.msra.mxu0 %v442
    %2467 = vmatprep.subr.mxu0 %v451
    %2468 = vmatpush1.msra.mxu0 %v450
    %2469 = vmatprep.subr.mxu0 %v459
    %2470 = vmatpush1.msra.mxu0 %v458
    %2471 = vmatprep.subr.mxu0 %v467
    %2472 = vmatpush1.msra.mxu0 %v466
    %2473 = vmatprep.subr.mxu0 %v475
    %2474 = vmatpush1.msra.mxu0 %v474
    %2475 = vmatprep.subr.mxu0 %v483
    %2476 = vmatpush1.msra.mxu0 %v482
    %2477 = vmatprep.subr.mxu0 %v491
    %2478 = vmatpush1.msra.mxu0 %v490
    %2479 = vmatprep.subr.mxu0 %v499
    %2480 = vmatpush1.msra.mxu0 %v498
    %2481 = vmatprep.subr.mxu0 %v507
    %2482 = vmatpush1.msra.mxu0 %v506
    %2483 = vmatprep.subr.mxu0 %v515
    %2484 = vmatpush1.msra.mxu0 %v514
    %2485 = vmatprep.subr.mxu0 %v523
    %2486 = vmatpush1.msra.mxu0 %v522
    %2487 = vmatprep.subr.mxu0 %v531
    %2488 = vmatpush1.msra.mxu0 %v530
    %2489 = vmatprep.subr.mxu0 %v539
    %2490 = vmatpush1.msra.mxu0 %v538
    %2491 = vmatprep.subr.mxu0 %v547
    %2492 = vmatpush1.msra.mxu0 %v546
    %2493 = vmatprep.subr.mxu0 %v555
    %2494 = vmatpush1.msra.mxu0 %v554
    %2495 = vmatprep.subr.mxu0 %v563
    %2496 = vmatpush1.msra.mxu0 %v562
    %2497 = vmatprep.subr.mxu0 %v571
    %2498 = vmatpush1.msra.mxu0 %v570
    %2499 = vmatprep.subr.mxu0 %v579
    %2500 = vmatpush1.msra.mxu0 %v578
    %2501 = vmatprep.subr.mxu0 %v587
    %2502 = vmatpush1.msra.mxu0 %v586
    %2503 = vmatprep.subr.mxu0 %v595
    %2504 = vmatpush1.msra.mxu0 %v594
    %2505 = vmatprep.subr.mxu0 %v603
    %2506 = vmatpush1.msra.mxu0 %v602
    %2507 = vmatprep.subr.mxu0 %v611
    %2508 = vmatpush1.msra.mxu0 %v610
    %2509 = vmatprep.subr.mxu0 %v619
    %2510 = vmatpush1.msra.mxu0 %v618
    %2511 = vmatprep.subr.mxu0 %v627
    %2512 = vmatpush1.msra.mxu0 %v626
    %2513 = vmatprep.mubr.f32.mxu0 %v2349
    %2514 = vmatmul.mubr.f32.gmra.mrb[0].mxu0 %v2377
    %v2515 = vpop.f32.mrb[0].mxu0
    %v2516 = vadd.f32 0.0, %v2515
    %v2517 = vpop.f32.mrb[0].mxu0
    %v2518 = vadd.f32 0.0, %v2517
    %2519 = vdwg.mxu0
    %v2520 = vadd.f32 %v2445, %v945
    %v2521 = vadd.f32 %v2447, %v949
    %v2522 = vadd.f32 %v2516, %v953
    %v2523 = vadd.f32 %v2518, %v957
    %v2524 = vxor.u32 %v2520, 2147483648
    %v2525 = vxor.u32 %v2521, 2147483648
    %v2526 = vxor.u32 %v2522, 2147483648
    %v2527 = vmul.f32 %v2524, 1.442695
    %v2528 = vpow.pop %v2527
    %v2529 = vmul.f32 %v2525, 1.442695
    %v2530 = vpow.pop %v2529
    %v2531 = vmul.f32 %v2526, 1.442695
    %v2532 = vpow.pop %v2531
    %v2533 = vadd.f32 %v2528, 1.0
    %v2534 = vadd.f32 %v2530, 1.0
    %v2535 = vadd.f32 %v2532, 1.0
    %v2536 = vrcp.pop %v2533
    %v2537 = vmul.f32 1.0, %v2536
    %v2538 = vrcp.pop %v2534
    %v2539 = vmul.f32 1.0, %v2538
    %v2540 = vrcp.pop %v2535
    %v2541 = vmul.f32 1.0, %v2540
    %v2542 = vtanh.pop %v2523
    %v2543 = vmul.f32 %v2539, %v2347
    %v2544 = vmul.f32 %v2537, %v2542
    %v2545 = vadd.f32 %v2543, %v2544
    %v2546 = vtanh.pop %v2545
    %v2547 = vmul.f32 %v2541, %v2546
    %v2548 = vld [vmem:[#allocation8] sm:$0xff]
    %v2549 = vld [vmem:[#allocation8 + $0x8] sm:$0xff]
    %v2550 = vld [vmem:[#allocation8 + $0x10] sm:$0xff]
    %v2551 = vld [vmem:[#allocation8 + $0x18] sm:$0xff]
    %v2552 = vld [vmem:[#allocation8 + $0x20] sm:$0xff]
    %v2553 = vld [vmem:[#allocation8 + $0x28] sm:$0xff]
    %v2554 = vld [vmem:[#allocation8 + $0x30] sm:$0xff]
    %v2555 = vld [vmem:[#allocation8 + $0x38] sm:$0xff]
    %v2556 = vld [vmem:[#allocation8 + $0x40] sm:$0xff]
    %v2557 = vld [vmem:[#allocation8 + $0x48] sm:$0xff]
    %v2558 = vld [vmem:[#allocation8 + $0x50] sm:$0xff]
    %v2559 = vld [vmem:[#allocation8 + $0x58] sm:$0xff]
    %v2560 = vld [vmem:[#allocation8 + $0x60] sm:$0xff]
    %v2561 = vld [vmem:[#allocation8 + $0x68] sm:$0xff]
    %v2562 = vld [vmem:[#allocation8 + $0x70] sm:$0xff]
    %v2563 = vld [vmem:[#allocation8 + $0x78] sm:$0xff]
    %v2564 = vld [vmem:[%s6] sm:$0x1]
    %v2566 = vlaneseq
    %v2567 = vshrl.u32 %v2566, 7
    %v2568 = vsub.s32 0, %v2567
    %v2569 = vrot.slane %v2564, %v2568
    %2571 = vmatprep.subr.mxu0 0.0
    %2572 = vmatpush1.msra.mxu0 %v2548
    %2573 = vmatprep.subr.mxu0 0.0
    %2574 = vmatpush1.msra.mxu0 %v2549
    %2575 = vmatprep.subr.mxu0 0.0
    %2576 = vmatpush1.msra.mxu0 %v2550
    %2577 = vmatprep.subr.mxu0 0.0
    %2578 = vmatpush1.msra.mxu0 %v2551
    %2579 = vmatprep.subr.mxu0 0.0
    %2580 = vmatpush1.msra.mxu0 %v2552
    %2581 = vmatprep.subr.mxu0 0.0
    %2582 = vmatpush1.msra.mxu0 %v2553
    %2583 = vmatprep.subr.mxu0 0.0
    %2584 = vmatpush1.msra.mxu0 %v2554
    %2585 = vmatprep.subr.mxu0 0.0
    %2586 = vmatpush1.msra.mxu0 %v2555
    %2587 = vmatprep.subr.mxu0 0.0
    %2588 = vmatpush1.msra.mxu0 %v2556
    %2589 = vmatprep.subr.mxu0 0.0
    %2590 = vmatpush1.msra.mxu0 %v2557
    %2591 = vmatprep.subr.mxu0 0.0
    %2592 = vmatpush1.msra.mxu0 %v2558
    %2593 = vmatprep.subr.mxu0 0.0
    %2594 = vmatpush1.msra.mxu0 %v2559
    %2595 = vmatprep.subr.mxu0 0.0
    %2596 = vmatpush1.msra.mxu0 %v2560
    %2597 = vmatprep.subr.mxu0 0.0
    %2598 = vmatpush1.msra.mxu0 %v2561
    %2599 = vmatprep.subr.mxu0 0.0
    %2600 = vmatpush1.msra.mxu0 %v2562
    %2601 = vmatprep.subr.mxu0 0.0
    %2602 = vmatpush1.msra.mxu0 %v2563
    %2603 = vmatprep.subr.mxu0 0.0
    %2604 = vmatpush1.msra.mxu0 0.0
    %2605 = vmatprep.subr.mxu0 0.0
    %2606 = vmatpush1.msra.mxu0 0.0
    %2607 = vmatprep.subr.mxu0 0.0
    %2608 = vmatpush1.msra.mxu0 0.0
    %2609 = vmatprep.subr.mxu0 0.0
    %2610 = vmatpush1.msra.mxu0 0.0
    %2611 = vmatprep.subr.mxu0 0.0
    %2612 = vmatpush1.msra.mxu0 0.0
    %2613 = vmatprep.subr.mxu0 0.0
    %2614 = vmatpush1.msra.mxu0 0.0
    %2615 = vmatprep.subr.mxu0 0.0
    %2616 = vmatpush1.msra.mxu0 0.0
    %2617 = vmatprep.subr.mxu0 0.0
    %2618 = vmatpush1.msra.mxu0 0.0
    %2619 = vmatprep.subr.mxu0 0.0
    %2620 = vmatpush1.msra.mxu0 0.0
    %2621 = vmatprep.subr.mxu0 0.0
    %2622 = vmatpush1.msra.mxu0 0.0
    %2623 = vmatprep.subr.mxu0 0.0
    %2624 = vmatpush1.msra.mxu0 0.0
    %2625 = vmatprep.subr.mxu0 0.0
    %2626 = vmatpush1.msra.mxu0 0.0
    %2627 = vmatprep.subr.mxu0 0.0
    %2628 = vmatpush1.msra.mxu0 0.0
    %2629 = vmatprep.subr.mxu0 0.0
    %2630 = vmatpush1.msra.mxu0 0.0
    %2631 = vmatprep.subr.mxu0 0.0
    %2632 = vmatpush1.msra.mxu0 0.0
    %2633 = vmatprep.subr.mxu0 0.0
    %2634 = vmatpush1.msra.mxu0 0.0
    %2635 = vmatprep.mubr.f32.mxu0 0.0
    %2636 = vmatmul.mubr.f32.gmra.mrb[0].mxu0 %v2547
    %v2637 = vpop.f32.mrb[0].mxu0
    %v2638 = vadd.f32 %v2569, %v2637
    %v2639 = vpop.f32.mrb[0].mxu0
    %2640 = vdwg.mxu0
    %v2641 = vmax.f32 %v2638, 0.0
    %2642 = vst [vmem:[#allocation10] sm:$0xff] %v2641
    // Predicated region
    $region46: #{tpu_custom_call.1} parent=1 // pred_check
      _
    $region47: #{tpu_custom_call.1} parent=1 // pred_check_branch
      %2644 = sbr.rel (0) target = $region49
    $region48: #{tpu_custom_call.1} parent=1 // pred_region
      %s2646 = ssub.s32 128, 128
      %2647 = vsyncadd [#allocation4], %s2646
      %s2649 = sshll.u32 [#allocation10], 4
      %s2650 = int_to_ptr.vmem [resolvable:$true] %s2649
      %2652 = dma.vmem_to_hbm [thread:$0]  %s2650, 128, %s7, [#allocation4]
    $region49: #{tpu_custom_call.1} parent=1 // pred_fallthru
      _
    // Predicated region
    $region50: #{tpu_custom_call.1} parent=1 // pred_check
      _
    $region51: #{tpu_custom_call.1} parent=1 // pred_check_branch
      %2654 = sbr.rel (0) target = $region53
    $region52: #{tpu_custom_call.1} parent=1 // pred_region
      %2655 = dma.done [#allocation4], 128
    $region53: #{tpu_custom_call.1} parent=1 // pred_fallthru
      _
    %2656 = vsyncpa [#allocation3], 1
    %2657 = vsyncpa [#allocation6], 1
    %2658 = vsyncpa [#allocation9], 1
    %2659 = vsyncpa [#allocation4], 1

</llo_original>
